<compile_context>
chip_gen: v5e
topology: v5e:2x2
jax: 0.10.0
libtpu: 0.0.40
codegen_flags: <defaults>
</compile_context>

<pallas_src>
import functools

import jax
import jax.numpy as jnp
from jax.experimental import pallas as pl
from jax.experimental.pallas import tpu as pltpu

LN_EPS = 1e-5  # PyTorch nn.LayerNorm default eps


# ----------------------------- helpers --------------------------------------
def _layernorm(x, g, b):
    mu = jnp.mean(x, axis=-1, keepdims=True)
    var = jnp.mean(jnp.square(x - mu), axis=-1, keepdims=True)
    return (x - mu) * jax.lax.rsqrt(var + LN_EPS) * g + b


# ----------------------------- fused kernel ---------------------------------
def vit_kernel(patches_ref, cls_ref, pos_ref,
               pe_g1_ref, pe_b1_ref, pe_w_ref, pe_bias_ref, pe_g2_ref, pe_b2_ref,
               a_g_ref, a_b_ref, a_wqkv_ref, a_wo_ref, a_bo_ref,
               f_g_ref, f_b_ref, f_w1_ref, f_b1_ref, f_w2_ref, f_b2_ref,
               h_g_ref, h_b_ref, h_w_ref, h_bias_ref,
               o_ref, *, depth, heads, dim_head):
    """One grid step == one batch element (grid axis 0 is 'parallel')."""
    inner = heads * dim_head
    scale = dim_head ** -0.5

    # ---- patch embedding: LN -> Linear -> LN on the (Np, patch_dim) patch rows ----
    p = patches_ref[...]                                            # (Np, patch_dim)
    p = _layernorm(p, pe_g1_ref[...], pe_b1_ref[...])
    p = jnp.dot(p, pe_w_ref[...], preferred_element_type=jnp.float32) + pe_bias_ref[...]
    p = _layernorm(p, pe_g2_ref[...], pe_b2_ref[...])               # (Np, D)

    # ---- prepend learned CLS token, add positional embedding ----
    tok = jnp.concatenate([cls_ref[...], p], axis=0) + pos_ref[...]  # (N, D)

    for l in range(depth):                       # static unroll over layers
        # ----- pre-norm multi-head self-attention + residual -----
        h = _layernorm(tok, a_g_ref[l], a_b_ref[l])
        qkv = jnp.dot(h, a_wqkv_ref[l], preferred_element_type=jnp.float32)  # (N, 3*inner)

        head_outs = []
        for hh in range(heads):                  # static unroll over heads
            s0 = hh * dim_head
            qh = qkv[:, s0:s0 + dim_head]                               # (N, dh)
            kh = qkv[:, inner + s0:inner + s0 + dim_head]               # (N, dh)
            vh = qkv[:, 2 * inner + s0:2 * inner + s0 + dim_head]       # (N, dh)
            # q @ k^T over this batch element only (transposed-RHS MXU matmul)
            dots = jax.lax.dot_general(qh, kh, (((1,), (1,)), ((), ())),
                                       preferred_element_type=jnp.float32) * scale  # (N, N)
            dots = dots - jnp.max(dots, axis=-1, keepdims=True)
            e = jnp.exp(dots)
            attn = e / jnp.sum(e, axis=-1, keepdims=True)               # exact softmax
            head_outs.append(jnp.dot(attn, vh,
                                     preferred_element_type=jnp.float32))  # (N, dh)

        # single K=inner output projection per layer (heads folded along lanes)
        o_heads = jnp.concatenate(head_outs, axis=-1)                   # (N, inner)
        tok = tok + jnp.dot(o_heads, a_wo_ref[l],
                            preferred_element_type=jnp.float32) + a_bo_ref[l]

        # ----- pre-norm MLP (Linear -> GELU -> Linear) + residual -----
        h = _layernorm(tok, f_g_ref[l], f_b_ref[l])
        h = jnp.dot(h, f_w1_ref[l], preferred_element_type=jnp.float32) + f_b1_ref[l]
        h = jax.nn.gelu(h, approximate=True)     # tanh GELU (see TODO above)
        tok = tok + jnp.dot(h, f_w2_ref[l], preferred_element_type=jnp.float32) + f_b2_ref[l]

    # ----- CLS pooling (row 0), final LN, classification head -----
    cls_tok = tok[0:1, :]                                               # (1, D)
    hfin = _layernorm(cls_tok, h_g_ref[...], h_b_ref[...])
    o_ref[...] = (jnp.dot(hfin, h_w_ref[...], preferred_element_type=jnp.float32)
                  + h_bias_ref[...])                                    # (1, classes)


# ----------------------------- parameters -----------------------------------
def init_params(key, *, C, H, W, ph, pw, D, depth, heads, dim_head, mlp_dim, num_classes):
    num_patches = (H // ph) * (W // pw)
    patch_dim = C * ph * pw
    inner = heads * dim_head
    ks = jax.random.split(key, 8)

    def nrm(k, shape, scale=0.02):
        return (scale * jax.random.normal(k, shape)).astype(jnp.float32)

    ones = lambda *s: jnp.ones(s, jnp.float32)
    zeros = lambda *s: jnp.zeros(s, jnp.float32)

    return {
        # patch embedding: LayerNorm(patch_dim) -> Linear(patch_dim, D) -> LayerNorm(D)
        "pe_g1": ones(1, patch_dim), "pe_b1": zeros(1, patch_dim),
        "pe_w": nrm(ks[0], (patch_dim, D)), "pe_bias": zeros(1, D),
        "pe_g2": ones(1, D), "pe_b2": zeros(1, D),
        # CLS token + positional embedding
        "cls": nrm(ks[1], (1, D), 1.0),
        "pos": nrm(ks[2], (1, num_patches + 1, D), 1.0),
        # transformer layers (stacked over depth)
        "a_g": ones(depth, 1, D), "a_b": zeros(depth, 1, D),
        "a_wqkv": nrm(ks[3], (depth, D, 3 * inner)),              # to_qkv (no bias)
        "a_wo": nrm(ks[4], (depth, inner, D)), "a_bo": zeros(depth, 1, D),
        "f_g": ones(depth, 1, D), "f_b": zeros(depth, 1, D),
        "f_w1": nrm(ks[5], (depth, D, mlp_dim)), "f_b1": zeros(depth, 1, mlp_dim),
        "f_w2": nrm(ks[6], (depth, mlp_dim, D)), "f_b2": zeros(depth, 1, D),
        # final LayerNorm + linear head
        "h_g": ones(1, D), "h_b": zeros(1, D),
        "h_w": nrm(ks[7], (D, num_classes)), "h_bias": zeros(1, num_classes),
    }


# ----------------------------- forward --------------------------------------
def vit_forward(x, params, cfg):
    B, C, H, W = x.shape
    ph, pw = cfg["patch_height"], cfg["patch_width"]
    nh, nw = H // ph, W // pw
    Np = nh * nw
    N = Np + 1
    patch_dim = C * ph * pw
    D = params["pe_w"].shape[1]
    num_classes = params["h_w"].shape[1]

    # einops: 'b c (h p1) (w p2) -> b (h w) (p1 p2 c)'
    xp = x.reshape(B, C, nh, ph, nw, pw)
    xp = jnp.transpose(xp, (0, 2, 4, 3, 5, 1))
    patches = xp.reshape(B, Np, patch_dim).astype(jnp.float32)

    pos2d = params["pos"][0, :N]                                    # (N, D)

    args = (patches, params["cls"], pos2d,
            params["pe_g1"], params["pe_b1"], params["pe_w"], params["pe_bias"],
            params["pe_g2"], params["pe_b2"],
            params["a_g"], params["a_b"], params["a_wqkv"], params["a_wo"], params["a_bo"],
            params["f_g"], params["f_b"], params["f_w1"], params["f_b1"],
            params["f_w2"], params["f_b2"],
            params["h_g"], params["h_b"], params["h_w"], params["h_bias"])

    def const_spec(a):
        """Full-array block, same block for every grid step (weights stay resident)."""
        nd = a.ndim
        return pl.BlockSpec(tuple(a.shape), lambda b, nd=nd: (0,) * nd)

    in_specs = ([pl.BlockSpec((None, Np, patch_dim), lambda b: (b, 0, 0))]
                + [const_spec(a) for a in args[1:]])

    kern = functools.partial(vit_kernel, depth=cfg["n_layers"],
                             heads=cfg["heads"], dim_head=cfg["dim_head"])

    logits = pl.pallas_call(
        kern,
        grid=(B,),
        in_specs=in_specs,
        out_specs=pl.BlockSpec((None, 1, num_classes), lambda b: (b, 0, 0)),
        out_shape=jax.ShapeDtypeStruct((B, 1, num_classes), jnp.float32),
        compiler_params=pltpu.CompilerParams(dimension_semantics=("parallel",)),
    )(*args)

    return logits.reshape(B, cfg["output_dim"], cfg["width"], cfg["height"])


# ----------------------------- main -----------------------------------------
if __name__ == "__main__":
    cfg = dict(
        width=16, height=16,
        patch_width=8, patch_height=8,
        input_dim=4, output_dim=2,
        latent_dim=32, n_layers=2, heads=4, mlp_dim=32,
        dim_head=64,  # vit-pytorch default
    )
    num_classes = cfg["output_dim"] * cfg["width"] * cfg["height"]

    key = jax.random.PRNGKey(0)
    kx, kp = jax.random.split(key)
    batch = 2
    x = jax.random.normal(kx, (batch, cfg["input_dim"], cfg["width"], cfg["height"]),
                          dtype=jnp.float32)

    params = init_params(
        kp,
        C=cfg["input_dim"], H=cfg["width"], W=cfg["height"],
        ph=cfg["patch_height"], pw=cfg["patch_width"],
        D=cfg["latent_dim"], depth=cfg["n_layers"], heads=cfg["heads"],
        dim_head=cfg["dim_head"], mlp_dim=cfg["mlp_dim"], num_classes=num_classes,
    )

    fwd = jax.jit(functools.partial(vit_forward, cfg=cfg))
    out = jax.block_until_ready(fwd(x, params))
    assert out.shape == (batch, cfg["output_dim"], cfg["width"], cfg["height"]), out.shape
    assert out.dtype == jnp.float32
    assert bool(jnp.all(jnp.isfinite(out)))
    print("KERNEL_OK")
</pallas_src>

<mosaic_0001>
module attributes {stable_mosaic.version = 11 : i64} {
  func.func @vit_kernel(%arg0: i32, %arg1: memref<1x4x256xf32, #tpu.memory_space<vmem>>, %arg2: memref<1x32xf32, #tpu.memory_space<vmem>>, %arg3: memref<5x32xf32, #tpu.memory_space<vmem>>, %arg4: memref<1x256xf32, #tpu.memory_space<vmem>>, %arg5: memref<1x256xf32, #tpu.memory_space<vmem>>, %arg6: memref<256x32xf32, #tpu.memory_space<vmem>>, %arg7: memref<1x32xf32, #tpu.memory_space<vmem>>, %arg8: memref<1x32xf32, #tpu.memory_space<vmem>>, %arg9: memref<1x32xf32, #tpu.memory_space<vmem>>, %arg10: memref<2x1x32xf32, #tpu.memory_space<vmem>>, %arg11: memref<2x1x32xf32, #tpu.memory_space<vmem>>, %arg12: memref<2x32x768xf32, #tpu.memory_space<vmem>>, %arg13: memref<2x256x32xf32, #tpu.memory_space<vmem>>, %arg14: memref<2x1x32xf32, #tpu.memory_space<vmem>>, %arg15: memref<2x1x32xf32, #tpu.memory_space<vmem>>, %arg16: memref<2x1x32xf32, #tpu.memory_space<vmem>>, %arg17: memref<2x32x32xf32, #tpu.memory_space<vmem>>, %arg18: memref<2x1x32xf32, #tpu.memory_space<vmem>>, %arg19: memref<2x32x32xf32, #tpu.memory_space<vmem>>, %arg20: memref<2x1x32xf32, #tpu.memory_space<vmem>>, %arg21: memref<1x32xf32, #tpu.memory_space<vmem>>, %arg22: memref<1x32xf32, #tpu.memory_space<vmem>>, %arg23: memref<32x512xf32, #tpu.memory_space<vmem>>, %arg24: memref<1x512xf32, #tpu.memory_space<vmem>>, %arg25: memref<1x1x512xf32, #tpu.memory_space<vmem>>) attributes {dimension_semantics = [#tpu.dimension_semantics<parallel>], iteration_bounds = array<i64: 2>, scalar_prefetch = 0 : i64, scratch_operands = 0 : i64, tpu.core_type = #tpu.core_type<tc>, window_params = [{transform_indices = @transform_0, window_bounds = array<i64: 1, 4, 256>}, {pipeline_mode = #tpu.pipeline_mode<synchronous>, transform_indices = @transform_1, window_bounds = array<i64: 1, 32>}, {pipeline_mode = #tpu.pipeline_mode<synchronous>, transform_indices = @transform_2, window_bounds = array<i64: 5, 32>}, {pipeline_mode = #tpu.pipeline_mode<synchronous>, transform_indices = @transform_3, window_bounds = array<i64: 1, 256>}, {pipeline_mode = #tpu.pipeline_mode<synchronous>, transform_indices = @transform_4, window_bounds = array<i64: 1, 256>}, {pipeline_mode = #tpu.pipeline_mode<synchronous>, transform_indices = @transform_5, window_bounds = array<i64: 256, 32>}, {pipeline_mode = #tpu.pipeline_mode<synchronous>, transform_indices = @transform_6, window_bounds = array<i64: 1, 32>}, {pipeline_mode = #tpu.pipeline_mode<synchronous>, transform_indices = @transform_7, window_bounds = array<i64: 1, 32>}, {pipeline_mode = #tpu.pipeline_mode<synchronous>, transform_indices = @transform_8, window_bounds = array<i64: 1, 32>}, {pipeline_mode = #tpu.pipeline_mode<synchronous>, transform_indices = @transform_9, window_bounds = array<i64: 2, 1, 32>}, {pipeline_mode = #tpu.pipeline_mode<synchronous>, transform_indices = @transform_10, window_bounds = array<i64: 2, 1, 32>}, {pipeline_mode = #tpu.pipeline_mode<synchronous>, transform_indices = @transform_11, window_bounds = array<i64: 2, 32, 768>}, {pipeline_mode = #tpu.pipeline_mode<synchronous>, transform_indices = @transform_12, window_bounds = array<i64: 2, 256, 32>}, {pipeline_mode = #tpu.pipeline_mode<synchronous>, transform_indices = @transform_13, window_bounds = array<i64: 2, 1, 32>}, {pipeline_mode = #tpu.pipeline_mode<synchronous>, transform_indices = @transform_14, window_bounds = array<i64: 2, 1, 32>}, {pipeline_mode = #tpu.pipeline_mode<synchronous>, transform_indices = @transform_15, window_bounds = array<i64: 2, 1, 32>}, {pipeline_mode = #tpu.pipeline_mode<synchronous>, transform_indices = @transform_16, window_bounds = array<i64: 2, 32, 32>}, {pipeline_mode = #tpu.pipeline_mode<synchronous>, transform_indices = @transform_17, window_bounds = array<i64: 2, 1, 32>}, {pipeline_mode = #tpu.pipeline_mode<synchronous>, transform_indices = @transform_18, window_bounds = array<i64: 2, 32, 32>}, {pipeline_mode = #tpu.pipeline_mode<synchronous>, transform_indices = @transform_19, window_bounds = array<i64: 2, 1, 32>}, {pipeline_mode = #tpu.pipeline_mode<synchronous>, transform_indices = @transform_20, window_bounds = array<i64: 1, 32>}, {pipeline_mode = #tpu.pipeline_mode<synchronous>, transform_indices = @transform_21, window_bounds = array<i64: 1, 32>}, {pipeline_mode = #tpu.pipeline_mode<synchronous>, transform_indices = @transform_22, window_bounds = array<i64: 32, 512>}, {pipeline_mode = #tpu.pipeline_mode<synchronous>, transform_indices = @transform_23, window_bounds = array<i64: 1, 512>}, {transform_indices = @transform_24, window_bounds = array<i64: 1, 1, 512>}]} {
    %c0 = arith.constant 0 : index
    %c0_0 = arith.constant 0 : index
    %c0_1 = arith.constant 0 : index
    %0 = vector.load %arg1[%c0, %c0_0, %c0_1] : memref<1x4x256xf32, #tpu.memory_space<vmem>>, vector<1x4x256xf32>
    %1 = vector.shape_cast %0 : vector<1x4x256xf32> to vector<4x256xf32>
    %c0_2 = arith.constant 0 : index
    %c0_3 = arith.constant 0 : index
    %2 = vector.load %arg4[%c0_2, %c0_3] : memref<1x256xf32, #tpu.memory_space<vmem>>, vector<1x256xf32>
    %c0_4 = arith.constant 0 : index
    %c0_5 = arith.constant 0 : index
    %3 = vector.load %arg5[%c0_4, %c0_5] : memref<1x256xf32, #tpu.memory_space<vmem>>, vector<1x256xf32>
    %cst = arith.constant dense<0.000000e+00> : vector<4xf32>
    %4 = vector.multi_reduction <add>, %1, %cst [1] : vector<4x256xf32> to vector<4xf32>
    %5 = vector.shape_cast %4 : vector<4xf32> to vector<4x1xf32>
    %cst_6 = arith.constant 2.560000e+02 : f32
    %6 = vector.broadcast %cst_6 : f32 to vector<4x1xf32>
    %7 = arith.divf %5, %6 : vector<4x1xf32>
    %8 = vector.broadcast %7 : vector<4x1xf32> to vector<4x256xf32>
    %9 = arith.subf %1, %8 : vector<4x256xf32>
    %10 = arith.mulf %9, %9 : vector<4x256xf32>
    %cst_7 = arith.constant dense<0.000000e+00> : vector<4xf32>
    %11 = vector.multi_reduction <add>, %10, %cst_7 [1] : vector<4x256xf32> to vector<4xf32>
    %12 = vector.shape_cast %11 : vector<4xf32> to vector<4x1xf32>
    %cst_8 = arith.constant 2.560000e+02 : f32
    %13 = vector.broadcast %cst_8 : f32 to vector<4x1xf32>
    %14 = arith.divf %12, %13 : vector<4x1xf32>
    %15 = vector.broadcast %7 : vector<4x1xf32> to vector<4x256xf32>
    %16 = arith.subf %1, %15 : vector<4x256xf32>
    %cst_9 = arith.constant 9.99999974E-6 : f32
    %17 = vector.broadcast %cst_9 : f32 to vector<4x1xf32>
    %18 = arith.addf %14, %17 : vector<4x1xf32>
    %19 = math.rsqrt %18 : vector<4x1xf32>
    %20 = vector.broadcast %19 : vector<4x1xf32> to vector<4x256xf32>
    %21 = arith.mulf %16, %20 : vector<4x256xf32>
    %22 = vector.broadcast %2 : vector<1x256xf32> to vector<4x256xf32>
    %23 = arith.mulf %21, %22 : vector<4x256xf32>
    %24 = vector.broadcast %3 : vector<1x256xf32> to vector<4x256xf32>
    %25 = arith.addf %23, %24 : vector<4x256xf32>
    %c0_10 = arith.constant 0 : index
    %c0_11 = arith.constant 0 : index
    %26 = vector.load %arg6[%c0_10, %c0_11] : memref<256x32xf32, #tpu.memory_space<vmem>>, vector<256x32xf32>
    %cst_12 = arith.constant dense<0.000000e+00> : vector<4x32xf32>
    %27 = tpu.matmul %25, %26, %cst_12 {dimension_numbers = #tpu.dot_dimension_numbers<[1], [0], [0], [1], [0, 0, 1, 1], [], []>} : vector<4x256xf32>, vector<256x32xf32>, vector<4x32xf32> -> vector<4x32xf32>
    %c0_13 = arith.constant 0 : index
    %c0_14 = arith.constant 0 : index
    %28 = vector.load %arg7[%c0_13, %c0_14] : memref<1x32xf32, #tpu.memory_space<vmem>>, vector<1x32xf32>
    %29 = vector.broadcast %28 : vector<1x32xf32> to vector<4x32xf32>
    %30 = arith.addf %27, %29 : vector<4x32xf32>
    %c0_15 = arith.constant 0 : index
    %c0_16 = arith.constant 0 : index
    %31 = vector.load %arg8[%c0_15, %c0_16] : memref<1x32xf32, #tpu.memory_space<vmem>>, vector<1x32xf32>
    %c0_17 = arith.constant 0 : index
    %c0_18 = arith.constant 0 : index
    %32 = vector.load %arg9[%c0_17, %c0_18] : memref<1x32xf32, #tpu.memory_space<vmem>>, vector<1x32xf32>
    %cst_19 = arith.constant dense<0.000000e+00> : vector<4xf32>
    %33 = vector.multi_reduction <add>, %30, %cst_19 [1] : vector<4x32xf32> to vector<4xf32>
    %34 = vector.shape_cast %33 : vector<4xf32> to vector<4x1xf32>
    %cst_20 = arith.constant 3.200000e+01 : f32
    %35 = vector.broadcast %cst_20 : f32 to vector<4x1xf32>
    %36 = arith.divf %34, %35 : vector<4x1xf32>
    %37 = vector.broadcast %36 : vector<4x1xf32> to vector<4x32xf32>
    %38 = arith.subf %30, %37 : vector<4x32xf32>
    %39 = arith.mulf %38, %38 : vector<4x32xf32>
    %cst_21 = arith.constant dense<0.000000e+00> : vector<4xf32>
    %40 = vector.multi_reduction <add>, %39, %cst_21 [1] : vector<4x32xf32> to vector<4xf32>
    %41 = vector.shape_cast %40 : vector<4xf32> to vector<4x1xf32>
    %cst_22 = arith.constant 3.200000e+01 : f32
    %42 = vector.broadcast %cst_22 : f32 to vector<4x1xf32>
    %43 = arith.divf %41, %42 : vector<4x1xf32>
    %44 = vector.broadcast %36 : vector<4x1xf32> to vector<4x32xf32>
    %45 = arith.subf %30, %44 : vector<4x32xf32>
    %cst_23 = arith.constant 9.99999974E-6 : f32
    %46 = vector.broadcast %cst_23 : f32 to vector<4x1xf32>
    %47 = arith.addf %43, %46 : vector<4x1xf32>
    %48 = math.rsqrt %47 : vector<4x1xf32>
    %49 = vector.broadcast %48 : vector<4x1xf32> to vector<4x32xf32>
    %50 = arith.mulf %45, %49 : vector<4x32xf32>
    %51 = vector.broadcast %31 : vector<1x32xf32> to vector<4x32xf32>
    %52 = arith.mulf %50, %51 : vector<4x32xf32>
    %53 = vector.broadcast %32 : vector<1x32xf32> to vector<4x32xf32>
    %54 = arith.addf %52, %53 : vector<4x32xf32>
    %c0_24 = arith.constant 0 : index
    %c0_25 = arith.constant 0 : index
    %55 = vector.load %arg2[%c0_24, %c0_25] : memref<1x32xf32, #tpu.memory_space<vmem>>, vector<1x32xf32>
    %56 = tpu.concatenate %55, %54 in 0 : vector<1x32xf32>, vector<4x32xf32> -> vector<5x32xf32>
    %c0_26 = arith.constant 0 : index
    %c0_27 = arith.constant 0 : index
    %57 = vector.load %arg3[%c0_26, %c0_27] : memref<5x32xf32, #tpu.memory_space<vmem>>, vector<5x32xf32>
    %58 = arith.addf %56, %57 : vector<5x32xf32>
    %c0_28 = arith.constant 0 : index
    %c0_29 = arith.constant 0 : index
    %c0_30 = arith.constant 0 : index
    %59 = vector.load %arg10[%c0_28, %c0_29, %c0_30] : memref<2x1x32xf32, #tpu.memory_space<vmem>>, vector<1x1x32xf32>
    %60 = vector.shape_cast %59 : vector<1x1x32xf32> to vector<1x32xf32>
    %c0_31 = arith.constant 0 : index
    %c0_32 = arith.constant 0 : index
    %c0_33 = arith.constant 0 : index
    %61 = vector.load %arg11[%c0_31, %c0_32, %c0_33] : memref<2x1x32xf32, #tpu.memory_space<vmem>>, vector<1x1x32xf32>
    %62 = vector.shape_cast %61 : vector<1x1x32xf32> to vector<1x32xf32>
    %cst_34 = arith.constant dense<0.000000e+00> : vector<5xf32>
    %63 = vector.multi_reduction <add>, %58, %cst_34 [1] : vector<5x32xf32> to vector<5xf32>
    %64 = vector.shape_cast %63 : vector<5xf32> to vector<5x1xf32>
    %cst_35 = arith.constant 3.200000e+01 : f32
    %65 = vector.broadcast %cst_35 : f32 to vector<5x1xf32>
    %66 = arith.divf %64, %65 : vector<5x1xf32>
    %67 = vector.broadcast %66 : vector<5x1xf32> to vector<5x32xf32>
    %68 = arith.subf %58, %67 : vector<5x32xf32>
    %69 = arith.mulf %68, %68 : vector<5x32xf32>
    %cst_36 = arith.constant dense<0.000000e+00> : vector<5xf32>
    %70 = vector.multi_reduction <add>, %69, %cst_36 [1] : vector<5x32xf32> to vector<5xf32>
    %71 = vector.shape_cast %70 : vector<5xf32> to vector<5x1xf32>
    %cst_37 = arith.constant 3.200000e+01 : f32
    %72 = vector.broadcast %cst_37 : f32 to vector<5x1xf32>
    %73 = arith.divf %71, %72 : vector<5x1xf32>
    %74 = vector.broadcast %66 : vector<5x1xf32> to vector<5x32xf32>
    %75 = arith.subf %58, %74 : vector<5x32xf32>
    %cst_38 = arith.constant 9.99999974E-6 : f32
    %76 = vector.broadcast %cst_38 : f32 to vector<5x1xf32>
    %77 = arith.addf %73, %76 : vector<5x1xf32>
    %78 = math.rsqrt %77 : vector<5x1xf32>
    %79 = vector.broadcast %78 : vector<5x1xf32> to vector<5x32xf32>
    %80 = arith.mulf %75, %79 : vector<5x32xf32>
    %81 = vector.broadcast %60 : vector<1x32xf32> to vector<5x32xf32>
    %82 = arith.mulf %80, %81 : vector<5x32xf32>
    %83 = vector.broadcast %62 : vector<1x32xf32> to vector<5x32xf32>
    %84 = arith.addf %82, %83 : vector<5x32xf32>
    %c0_39 = arith.constant 0 : index
    %c0_40 = arith.constant 0 : index
    %c0_41 = arith.constant 0 : index
    %85 = vector.load %arg12[%c0_39, %c0_40, %c0_41] : memref<2x32x768xf32, #tpu.memory_space<vmem>>, vector<1x32x768xf32>
    %86 = vector.shape_cast %85 : vector<1x32x768xf32> to vector<32x768xf32>
    %cst_42 = arith.constant dense<0.000000e+00> : vector<5x768xf32>
    %87 = tpu.matmul %84, %86, %cst_42 {dimension_numbers = #tpu.dot_dimension_numbers<[1], [0], [0], [1], [0, 0, 1, 1], [], []>} : vector<5x32xf32>, vector<32x768xf32>, vector<5x768xf32> -> vector<5x768xf32>
    %88 = vector.extract_strided_slice %87 {offsets = [0, 0], sizes = [5, 64], strides = [1, 1]} : vector<5x768xf32> to vector<5x64xf32>
    %89 = vector.extract_strided_slice %87 {offsets = [0, 256], sizes = [5, 64], strides = [1, 1]} : vector<5x768xf32> to vector<5x64xf32>
    %90 = vector.extract_strided_slice %87 {offsets = [0, 512], sizes = [5, 64], strides = [1, 1]} : vector<5x768xf32> to vector<5x64xf32>
    %cst_43 = arith.constant dense<0.000000e+00> : vector<5x5xf32>
    %91 = tpu.matmul %88, %89, %cst_43 {dimension_numbers = #tpu.dot_dimension_numbers<[1], [1], [0], [0], [0, 0, 1, 0], [], []>} : vector<5x64xf32>, vector<5x64xf32>, vector<5x5xf32> -> vector<5x5xf32>
    %cst_44 = arith.constant 1.250000e-01 : f32
    %92 = vector.broadcast %cst_44 : f32 to vector<5x5xf32>
    %93 = arith.mulf %91, %92 : vector<5x5xf32>
    %cst_45 = arith.constant dense<0xFF800000> : vector<5xf32>
    %94 = vector.multi_reduction <maximumf>, %93, %cst_45 [1] : vector<5x5xf32> to vector<5xf32>
    %95 = vector.shape_cast %94 : vector<5xf32> to vector<5x1xf32>
    %96 = vector.broadcast %95 : vector<5x1xf32> to vector<5x5xf32>
    %97 = arith.subf %93, %96 : vector<5x5xf32>
    %98 = math.exp %97 : vector<5x5xf32>
    %cst_46 = arith.constant dense<0.000000e+00> : vector<5xf32>
    %99 = vector.multi_reduction <add>, %98, %cst_46 [1] : vector<5x5xf32> to vector<5xf32>
    %100 = vector.shape_cast %99 : vector<5xf32> to vector<5x1xf32>
    %101 = vector.broadcast %100 : vector<5x1xf32> to vector<5x5xf32>
    %102 = arith.divf %98, %101 : vector<5x5xf32>
    %cst_47 = arith.constant dense<0.000000e+00> : vector<5x64xf32>
    %103 = tpu.matmul %102, %90, %cst_47 {dimension_numbers = #tpu.dot_dimension_numbers<[1], [0], [0], [1], [0, 0, 1, 1], [], []>} : vector<5x5xf32>, vector<5x64xf32>, vector<5x64xf32> -> vector<5x64xf32>
    %104 = vector.extract_strided_slice %87 {offsets = [0, 64], sizes = [5, 64], strides = [1, 1]} : vector<5x768xf32> to vector<5x64xf32>
    %105 = vector.extract_strided_slice %87 {offsets = [0, 320], sizes = [5, 64], strides = [1, 1]} : vector<5x768xf32> to vector<5x64xf32>
    %106 = vector.extract_strided_slice %87 {offsets = [0, 576], sizes = [5, 64], strides = [1, 1]} : vector<5x768xf32> to vector<5x64xf32>
    %cst_48 = arith.constant dense<0.000000e+00> : vector<5x5xf32>
    %107 = tpu.matmul %104, %105, %cst_48 {dimension_numbers = #tpu.dot_dimension_numbers<[1], [1], [0], [0], [0, 0, 1, 0], [], []>} : vector<5x64xf32>, vector<5x64xf32>, vector<5x5xf32> -> vector<5x5xf32>
    %cst_49 = arith.constant 1.250000e-01 : f32
    %108 = vector.broadcast %cst_49 : f32 to vector<5x5xf32>
    %109 = arith.mulf %107, %108 : vector<5x5xf32>
    %cst_50 = arith.constant dense<0xFF800000> : vector<5xf32>
    %110 = vector.multi_reduction <maximumf>, %109, %cst_50 [1] : vector<5x5xf32> to vector<5xf32>
    %111 = vector.shape_cast %110 : vector<5xf32> to vector<5x1xf32>
    %112 = vector.broadcast %111 : vector<5x1xf32> to vector<5x5xf32>
    %113 = arith.subf %109, %112 : vector<5x5xf32>
    %114 = math.exp %113 : vector<5x5xf32>
    %cst_51 = arith.constant dense<0.000000e+00> : vector<5xf32>
    %115 = vector.multi_reduction <add>, %114, %cst_51 [1] : vector<5x5xf32> to vector<5xf32>
    %116 = vector.shape_cast %115 : vector<5xf32> to vector<5x1xf32>
    %117 = vector.broadcast %116 : vector<5x1xf32> to vector<5x5xf32>
    %118 = arith.divf %114, %117 : vector<5x5xf32>
    %cst_52 = arith.constant dense<0.000000e+00> : vector<5x64xf32>
    %119 = tpu.matmul %118, %106, %cst_52 {dimension_numbers = #tpu.dot_dimension_numbers<[1], [0], [0], [1], [0, 0, 1, 1], [], []>} : vector<5x5xf32>, vector<5x64xf32>, vector<5x64xf32> -> vector<5x64xf32>
    %120 = vector.extract_strided_slice %87 {offsets = [0, 128], sizes = [5, 64], strides = [1, 1]} : vector<5x768xf32> to vector<5x64xf32>
    %121 = vector.extract_strided_slice %87 {offsets = [0, 384], sizes = [5, 64], strides = [1, 1]} : vector<5x768xf32> to vector<5x64xf32>
    %122 = vector.extract_strided_slice %87 {offsets = [0, 640], sizes = [5, 64], strides = [1, 1]} : vector<5x768xf32> to vector<5x64xf32>
    %cst_53 = arith.constant dense<0.000000e+00> : vector<5x5xf32>
    %123 = tpu.matmul %120, %121, %cst_53 {dimension_numbers = #tpu.dot_dimension_numbers<[1], [1], [0], [0], [0, 0, 1, 0], [], []>} : vector<5x64xf32>, vector<5x64xf32>, vector<5x5xf32> -> vector<5x5xf32>
    %cst_54 = arith.constant 1.250000e-01 : f32
    %124 = vector.broadcast %cst_54 : f32 to vector<5x5xf32>
    %125 = arith.mulf %123, %124 : vector<5x5xf32>
    %cst_55 = arith.constant dense<0xFF800000> : vector<5xf32>
    %126 = vector.multi_reduction <maximumf>, %125, %cst_55 [1] : vector<5x5xf32> to vector<5xf32>
    %127 = vector.shape_cast %126 : vector<5xf32> to vector<5x1xf32>
    %128 = vector.broadcast %127 : vector<5x1xf32> to vector<5x5xf32>
    %129 = arith.subf %125, %128 : vector<5x5xf32>
    %130 = math.exp %129 : vector<5x5xf32>
    %cst_56 = arith.constant dense<0.000000e+00> : vector<5xf32>
    %131 = vector.multi_reduction <add>, %130, %cst_56 [1] : vector<5x5xf32> to vector<5xf32>
    %132 = vector.shape_cast %131 : vector<5xf32> to vector<5x1xf32>
    %133 = vector.broadcast %132 : vector<5x1xf32> to vector<5x5xf32>
    %134 = arith.divf %130, %133 : vector<5x5xf32>
    %cst_57 = arith.constant dense<0.000000e+00> : vector<5x64xf32>
    %135 = tpu.matmul %134, %122, %cst_57 {dimension_numbers = #tpu.dot_dimension_numbers<[1], [0], [0], [1], [0, 0, 1, 1], [], []>} : vector<5x5xf32>, vector<5x64xf32>, vector<5x64xf32> -> vector<5x64xf32>
    %136 = vector.extract_strided_slice %87 {offsets = [0, 192], sizes = [5, 64], strides = [1, 1]} : vector<5x768xf32> to vector<5x64xf32>
    %137 = vector.extract_strided_slice %87 {offsets = [0, 448], sizes = [5, 64], strides = [1, 1]} : vector<5x768xf32> to vector<5x64xf32>
    %138 = vector.extract_strided_slice %87 {offsets = [0, 704], sizes = [5, 64], strides = [1, 1]} : vector<5x768xf32> to vector<5x64xf32>
    %cst_58 = arith.constant dense<0.000000e+00> : vector<5x5xf32>
    %139 = tpu.matmul %136, %137, %cst_58 {dimension_numbers = #tpu.dot_dimension_numbers<[1], [1], [0], [0], [0, 0, 1, 0], [], []>} : vector<5x64xf32>, vector<5x64xf32>, vector<5x5xf32> -> vector<5x5xf32>
    %cst_59 = arith.constant 1.250000e-01 : f32
    %140 = vector.broadcast %cst_59 : f32 to vector<5x5xf32>
    %141 = arith.mulf %139, %140 : vector<5x5xf32>
    %cst_60 = arith.constant dense<0xFF800000> : vector<5xf32>
    %142 = vector.multi_reduction <maximumf>, %141, %cst_60 [1] : vector<5x5xf32> to vector<5xf32>
    %143 = vector.shape_cast %142 : vector<5xf32> to vector<5x1xf32>
    %144 = vector.broadcast %143 : vector<5x1xf32> to vector<5x5xf32>
    %145 = arith.subf %141, %144 : vector<5x5xf32>
    %146 = math.exp %145 : vector<5x5xf32>
    %cst_61 = arith.constant dense<0.000000e+00> : vector<5xf32>
    %147 = vector.multi_reduction <add>, %146, %cst_61 [1] : vector<5x5xf32> to vector<5xf32>
    %148 = vector.shape_cast %147 : vector<5xf32> to vector<5x1xf32>
    %149 = vector.broadcast %148 : vector<5x1xf32> to vector<5x5xf32>
    %150 = arith.divf %146, %149 : vector<5x5xf32>
    %cst_62 = arith.constant dense<0.000000e+00> : vector<5x64xf32>
    %151 = tpu.matmul %150, %138, %cst_62 {dimension_numbers = #tpu.dot_dimension_numbers<[1], [0], [0], [1], [0, 0, 1, 1], [], []>} : vector<5x5xf32>, vector<5x64xf32>, vector<5x64xf32> -> vector<5x64xf32>
    %152 = tpu.concatenate %103, %119, %135, %151 in 1 : vector<5x64xf32>, vector<5x64xf32>, vector<5x64xf32>, vector<5x64xf32> -> vector<5x256xf32>
    %c0_63 = arith.constant 0 : index
    %c0_64 = arith.constant 0 : index
    %c0_65 = arith.constant 0 : index
    %153 = vector.load %arg13[%c0_63, %c0_64, %c0_65] : memref<2x256x32xf32, #tpu.memory_space<vmem>>, vector<1x256x32xf32>
    %154 = vector.shape_cast %153 : vector<1x256x32xf32> to vector<256x32xf32>
    %cst_66 = arith.constant dense<0.000000e+00> : vector<5x32xf32>
    %155 = tpu.matmul %152, %154, %cst_66 {dimension_numbers = #tpu.dot_dimension_numbers<[1], [0], [0], [1], [0, 0, 1, 1], [], []>} : vector<5x256xf32>, vector<256x32xf32>, vector<5x32xf32> -> vector<5x32xf32>
    %156 = arith.addf %58, %155 : vector<5x32xf32>
    %c0_67 = arith.constant 0 : index
    %c0_68 = arith.constant 0 : index
    %c0_69 = arith.constant 0 : index
    %157 = vector.load %arg14[%c0_67, %c0_68, %c0_69] : memref<2x1x32xf32, #tpu.memory_space<vmem>>, vector<1x1x32xf32>
    %158 = vector.shape_cast %157 : vector<1x1x32xf32> to vector<1x32xf32>
    %159 = vector.broadcast %158 : vector<1x32xf32> to vector<5x32xf32>
    %160 = arith.addf %156, %159 : vector<5x32xf32>
    %c0_70 = arith.constant 0 : index
    %c0_71 = arith.constant 0 : index
    %c0_72 = arith.constant 0 : index
    %161 = vector.load %arg15[%c0_70, %c0_71, %c0_72] : memref<2x1x32xf32, #tpu.memory_space<vmem>>, vector<1x1x32xf32>
    %162 = vector.shape_cast %161 : vector<1x1x32xf32> to vector<1x32xf32>
    %c0_73 = arith.constant 0 : index
    %c0_74 = arith.constant 0 : index
    %c0_75 = arith.constant 0 : index
    %163 = vector.load %arg16[%c0_73, %c0_74, %c0_75] : memref<2x1x32xf32, #tpu.memory_space<vmem>>, vector<1x1x32xf32>
    %164 = vector.shape_cast %163 : vector<1x1x32xf32> to vector<1x32xf32>
    %cst_76 = arith.constant dense<0.000000e+00> : vector<5xf32>
    %165 = vector.multi_reduction <add>, %160, %cst_76 [1] : vector<5x32xf32> to vector<5xf32>
    %166 = vector.shape_cast %165 : vector<5xf32> to vector<5x1xf32>
    %cst_77 = arith.constant 3.200000e+01 : f32
    %167 = vector.broadcast %cst_77 : f32 to vector<5x1xf32>
    %168 = arith.divf %166, %167 : vector<5x1xf32>
    %169 = vector.broadcast %168 : vector<5x1xf32> to vector<5x32xf32>
    %170 = arith.subf %160, %169 : vector<5x32xf32>
    %171 = arith.mulf %170, %170 : vector<5x32xf32>
    %cst_78 = arith.constant dense<0.000000e+00> : vector<5xf32>
    %172 = vector.multi_reduction <add>, %171, %cst_78 [1] : vector<5x32xf32> to vector<5xf32>
    %173 = vector.shape_cast %172 : vector<5xf32> to vector<5x1xf32>
    %cst_79 = arith.constant 3.200000e+01 : f32
    %174 = vector.broadcast %cst_79 : f32 to vector<5x1xf32>
    %175 = arith.divf %173, %174 : vector<5x1xf32>
    %176 = vector.broadcast %168 : vector<5x1xf32> to vector<5x32xf32>
    %177 = arith.subf %160, %176 : vector<5x32xf32>
    %cst_80 = arith.constant 9.99999974E-6 : f32
    %178 = vector.broadcast %cst_80 : f32 to vector<5x1xf32>
    %179 = arith.addf %175, %178 : vector<5x1xf32>
    %180 = math.rsqrt %179 : vector<5x1xf32>
    %181 = vector.broadcast %180 : vector<5x1xf32> to vector<5x32xf32>
    %182 = arith.mulf %177, %181 : vector<5x32xf32>
    %183 = vector.broadcast %162 : vector<1x32xf32> to vector<5x32xf32>
    %184 = arith.mulf %182, %183 : vector<5x32xf32>
    %185 = vector.broadcast %164 : vector<1x32xf32> to vector<5x32xf32>
    %186 = arith.addf %184, %185 : vector<5x32xf32>
    %c0_81 = arith.constant 0 : index
    %c0_82 = arith.constant 0 : index
    %c0_83 = arith.constant 0 : index
    %187 = vector.load %arg17[%c0_81, %c0_82, %c0_83] : memref<2x32x32xf32, #tpu.memory_space<vmem>>, vector<1x32x32xf32>
    %188 = vector.shape_cast %187 : vector<1x32x32xf32> to vector<32x32xf32>
    %cst_84 = arith.constant dense<0.000000e+00> : vector<5x32xf32>
    %189 = tpu.matmul %186, %188, %cst_84 {dimension_numbers = #tpu.dot_dimension_numbers<[1], [0], [0], [1], [0, 0, 1, 1], [], []>} : vector<5x32xf32>, vector<32x32xf32>, vector<5x32xf32> -> vector<5x32xf32>
    %c0_85 = arith.constant 0 : index
    %c0_86 = arith.constant 0 : index
    %c0_87 = arith.constant 0 : index
    %190 = vector.load %arg18[%c0_85, %c0_86, %c0_87] : memref<2x1x32xf32, #tpu.memory_space<vmem>>, vector<1x1x32xf32>
    %191 = vector.shape_cast %190 : vector<1x1x32xf32> to vector<1x32xf32>
    %192 = vector.broadcast %191 : vector<1x32xf32> to vector<5x32xf32>
    %193 = arith.addf %189, %192 : vector<5x32xf32>
    %194 = arith.mulf %193, %193 : vector<5x32xf32>
    %195 = arith.mulf %193, %194 : vector<5x32xf32>
    %cst_88 = arith.constant 4.471500e-02 : f32
    %196 = vector.broadcast %cst_88 : f32 to vector<5x32xf32>
    %197 = arith.mulf %196, %195 : vector<5x32xf32>
    %198 = arith.addf %193, %197 : vector<5x32xf32>
    %cst_89 = arith.constant 0.797884583 : f32
    %199 = vector.broadcast %cst_89 : f32 to vector<5x32xf32>
    %200 = arith.mulf %199, %198 : vector<5x32xf32>
    %201 = math.tanh %200 : vector<5x32xf32>
    %cst_90 = arith.constant 1.000000e+00 : f32
    %202 = vector.broadcast %cst_90 : f32 to vector<5x32xf32>
    %203 = arith.addf %202, %201 : vector<5x32xf32>
    %cst_91 = arith.constant 5.000000e-01 : f32
    %204 = vector.broadcast %cst_91 : f32 to vector<5x32xf32>
    %205 = arith.mulf %204, %203 : vector<5x32xf32>
    %206 = arith.mulf %193, %205 : vector<5x32xf32>
    %c0_92 = arith.constant 0 : index
    %c0_93 = arith.constant 0 : index
    %c0_94 = arith.constant 0 : index
    %207 = vector.load %arg19[%c0_92, %c0_93, %c0_94] : memref<2x32x32xf32, #tpu.memory_space<vmem>>, vector<1x32x32xf32>
    %208 = vector.shape_cast %207 : vector<1x32x32xf32> to vector<32x32xf32>
    %cst_95 = arith.constant dense<0.000000e+00> : vector<5x32xf32>
    %209 = tpu.matmul %206, %208, %cst_95 {dimension_numbers = #tpu.dot_dimension_numbers<[1], [0], [0], [1], [0, 0, 1, 1], [], []>} : vector<5x32xf32>, vector<32x32xf32>, vector<5x32xf32> -> vector<5x32xf32>
    %210 = arith.addf %160, %209 : vector<5x32xf32>
    %c0_96 = arith.constant 0 : index
    %c0_97 = arith.constant 0 : index
    %c0_98 = arith.constant 0 : index
    %211 = vector.load %arg20[%c0_96, %c0_97, %c0_98] : memref<2x1x32xf32, #tpu.memory_space<vmem>>, vector<1x1x32xf32>
    %212 = vector.shape_cast %211 : vector<1x1x32xf32> to vector<1x32xf32>
    %213 = vector.broadcast %212 : vector<1x32xf32> to vector<5x32xf32>
    %214 = arith.addf %210, %213 : vector<5x32xf32>
    %c1 = arith.constant 1 : index
    %c0_99 = arith.constant 0 : index
    %c0_100 = arith.constant 0 : index
    %215 = vector.load %arg10[%c1, %c0_99, %c0_100] : memref<2x1x32xf32, #tpu.memory_space<vmem>>, vector<1x1x32xf32>
    %216 = vector.shape_cast %215 : vector<1x1x32xf32> to vector<1x32xf32>
    %c1_101 = arith.constant 1 : index
    %c0_102 = arith.constant 0 : index
    %c0_103 = arith.constant 0 : index
    %217 = vector.load %arg11[%c1_101, %c0_102, %c0_103] : memref<2x1x32xf32, #tpu.memory_space<vmem>>, vector<1x1x32xf32>
    %218 = vector.shape_cast %217 : vector<1x1x32xf32> to vector<1x32xf32>
    %cst_104 = arith.constant dense<0.000000e+00> : vector<5xf32>
    %219 = vector.multi_reduction <add>, %214, %cst_104 [1] : vector<5x32xf32> to vector<5xf32>
    %220 = vector.shape_cast %219 : vector<5xf32> to vector<5x1xf32>
    %cst_105 = arith.constant 3.200000e+01 : f32
    %221 = vector.broadcast %cst_105 : f32 to vector<5x1xf32>
    %222 = arith.divf %220, %221 : vector<5x1xf32>
    %223 = vector.broadcast %222 : vector<5x1xf32> to vector<5x32xf32>
    %224 = arith.subf %214, %223 : vector<5x32xf32>
    %225 = arith.mulf %224, %224 : vector<5x32xf32>
    %cst_106 = arith.constant dense<0.000000e+00> : vector<5xf32>
    %226 = vector.multi_reduction <add>, %225, %cst_106 [1] : vector<5x32xf32> to vector<5xf32>
    %227 = vector.shape_cast %226 : vector<5xf32> to vector<5x1xf32>
    %cst_107 = arith.constant 3.200000e+01 : f32
    %228 = vector.broadcast %cst_107 : f32 to vector<5x1xf32>
    %229 = arith.divf %227, %228 : vector<5x1xf32>
    %230 = vector.broadcast %222 : vector<5x1xf32> to vector<5x32xf32>
    %231 = arith.subf %214, %230 : vector<5x32xf32>
    %cst_108 = arith.constant 9.99999974E-6 : f32
    %232 = vector.broadcast %cst_108 : f32 to vector<5x1xf32>
    %233 = arith.addf %229, %232 : vector<5x1xf32>
    %234 = math.rsqrt %233 : vector<5x1xf32>
    %235 = vector.broadcast %234 : vector<5x1xf32> to vector<5x32xf32>
    %236 = arith.mulf %231, %235 : vector<5x32xf32>
    %237 = vector.broadcast %216 : vector<1x32xf32> to vector<5x32xf32>
    %238 = arith.mulf %236, %237 : vector<5x32xf32>
    %239 = vector.broadcast %218 : vector<1x32xf32> to vector<5x32xf32>
    %240 = arith.addf %238, %239 : vector<5x32xf32>
    %c1_109 = arith.constant 1 : index
    %c0_110 = arith.constant 0 : index
    %c0_111 = arith.constant 0 : index
    %241 = vector.load %arg12[%c1_109, %c0_110, %c0_111] : memref<2x32x768xf32, #tpu.memory_space<vmem>>, vector<1x32x768xf32>
    %242 = vector.shape_cast %241 : vector<1x32x768xf32> to vector<32x768xf32>
    %cst_112 = arith.constant dense<0.000000e+00> : vector<5x768xf32>
    %243 = tpu.matmul %240, %242, %cst_112 {dimension_numbers = #tpu.dot_dimension_numbers<[1], [0], [0], [1], [0, 0, 1, 1], [], []>} : vector<5x32xf32>, vector<32x768xf32>, vector<5x768xf32> -> vector<5x768xf32>
    %244 = vector.extract_strided_slice %243 {offsets = [0, 0], sizes = [5, 64], strides = [1, 1]} : vector<5x768xf32> to vector<5x64xf32>
    %245 = vector.extract_strided_slice %243 {offsets = [0, 256], sizes = [5, 64], strides = [1, 1]} : vector<5x768xf32> to vector<5x64xf32>
    %246 = vector.extract_strided_slice %243 {offsets = [0, 512], sizes = [5, 64], strides = [1, 1]} : vector<5x768xf32> to vector<5x64xf32>
    %cst_113 = arith.constant dense<0.000000e+00> : vector<5x5xf32>
    %247 = tpu.matmul %244, %245, %cst_113 {dimension_numbers = #tpu.dot_dimension_numbers<[1], [1], [0], [0], [0, 0, 1, 0], [], []>} : vector<5x64xf32>, vector<5x64xf32>, vector<5x5xf32> -> vector<5x5xf32>
    %cst_114 = arith.constant 1.250000e-01 : f32
    %248 = vector.broadcast %cst_114 : f32 to vector<5x5xf32>
    %249 = arith.mulf %247, %248 : vector<5x5xf32>
    %cst_115 = arith.constant dense<0xFF800000> : vector<5xf32>
    %250 = vector.multi_reduction <maximumf>, %249, %cst_115 [1] : vector<5x5xf32> to vector<5xf32>
    %251 = vector.shape_cast %250 : vector<5xf32> to vector<5x1xf32>
    %252 = vector.broadcast %251 : vector<5x1xf32> to vector<5x5xf32>
    %253 = arith.subf %249, %252 : vector<5x5xf32>
    %254 = math.exp %253 : vector<5x5xf32>
    %cst_116 = arith.constant dense<0.000000e+00> : vector<5xf32>
    %255 = vector.multi_reduction <add>, %254, %cst_116 [1] : vector<5x5xf32> to vector<5xf32>
    %256 = vector.shape_cast %255 : vector<5xf32> to vector<5x1xf32>
    %257 = vector.broadcast %256 : vector<5x1xf32> to vector<5x5xf32>
    %258 = arith.divf %254, %257 : vector<5x5xf32>
    %cst_117 = arith.constant dense<0.000000e+00> : vector<5x64xf32>
    %259 = tpu.matmul %258, %246, %cst_117 {dimension_numbers = #tpu.dot_dimension_numbers<[1], [0], [0], [1], [0, 0, 1, 1], [], []>} : vector<5x5xf32>, vector<5x64xf32>, vector<5x64xf32> -> vector<5x64xf32>
    %260 = vector.extract_strided_slice %243 {offsets = [0, 64], sizes = [5, 64], strides = [1, 1]} : vector<5x768xf32> to vector<5x64xf32>
    %261 = vector.extract_strided_slice %243 {offsets = [0, 320], sizes = [5, 64], strides = [1, 1]} : vector<5x768xf32> to vector<5x64xf32>
    %262 = vector.extract_strided_slice %243 {offsets = [0, 576], sizes = [5, 64], strides = [1, 1]} : vector<5x768xf32> to vector<5x64xf32>
    %cst_118 = arith.constant dense<0.000000e+00> : vector<5x5xf32>
    %263 = tpu.matmul %260, %261, %cst_118 {dimension_numbers = #tpu.dot_dimension_numbers<[1], [1], [0], [0], [0, 0, 1, 0], [], []>} : vector<5x64xf32>, vector<5x64xf32>, vector<5x5xf32> -> vector<5x5xf32>
    %cst_119 = arith.constant 1.250000e-01 : f32
    %264 = vector.broadcast %cst_119 : f32 to vector<5x5xf32>
    %265 = arith.mulf %263, %264 : vector<5x5xf32>
    %cst_120 = arith.constant dense<0xFF800000> : vector<5xf32>
    %266 = vector.multi_reduction <maximumf>, %265, %cst_120 [1] : vector<5x5xf32> to vector<5xf32>
    %267 = vector.shape_cast %266 : vector<5xf32> to vector<5x1xf32>
    %268 = vector.broadcast %267 : vector<5x1xf32> to vector<5x5xf32>
    %269 = arith.subf %265, %268 : vector<5x5xf32>
    %270 = math.exp %269 : vector<5x5xf32>
    %cst_121 = arith.constant dense<0.000000e+00> : vector<5xf32>
    %271 = vector.multi_reduction <add>, %270, %cst_121 [1] : vector<5x5xf32> to vector<5xf32>
    %272 = vector.shape_cast %271 : vector<5xf32> to vector<5x1xf32>
    %273 = vector.broadcast %272 : vector<5x1xf32> to vector<5x5xf32>
    %274 = arith.divf %270, %273 : vector<5x5xf32>
    %cst_122 = arith.constant dense<0.000000e+00> : vector<5x64xf32>
    %275 = tpu.matmul %274, %262, %cst_122 {dimension_numbers = #tpu.dot_dimension_numbers<[1], [0], [0], [1], [0, 0, 1, 1], [], []>} : vector<5x5xf32>, vector<5x64xf32>, vector<5x64xf32> -> vector<5x64xf32>
    %276 = vector.extract_strided_slice %243 {offsets = [0, 128], sizes = [5, 64], strides = [1, 1]} : vector<5x768xf32> to vector<5x64xf32>
    %277 = vector.extract_strided_slice %243 {offsets = [0, 384], sizes = [5, 64], strides = [1, 1]} : vector<5x768xf32> to vector<5x64xf32>
    %278 = vector.extract_strided_slice %243 {offsets = [0, 640], sizes = [5, 64], strides = [1, 1]} : vector<5x768xf32> to vector<5x64xf32>
    %cst_123 = arith.constant dense<0.000000e+00> : vector<5x5xf32>
    %279 = tpu.matmul %276, %277, %cst_123 {dimension_numbers = #tpu.dot_dimension_numbers<[1], [1], [0], [0], [0, 0, 1, 0], [], []>} : vector<5x64xf32>, vector<5x64xf32>, vector<5x5xf32> -> vector<5x5xf32>
    %cst_124 = arith.constant 1.250000e-01 : f32
    %280 = vector.broadcast %cst_124 : f32 to vector<5x5xf32>
    %281 = arith.mulf %279, %280 : vector<5x5xf32>
    %cst_125 = arith.constant dense<0xFF800000> : vector<5xf32>
    %282 = vector.multi_reduction <maximumf>, %281, %cst_125 [1] : vector<5x5xf32> to vector<5xf32>
    %283 = vector.shape_cast %282 : vector<5xf32> to vector<5x1xf32>
    %284 = vector.broadcast %283 : vector<5x1xf32> to vector<5x5xf32>
    %285 = arith.subf %281, %284 : vector<5x5xf32>
    %286 = math.exp %285 : vector<5x5xf32>
    %cst_126 = arith.constant dense<0.000000e+00> : vector<5xf32>
    %287 = vector.multi_reduction <add>, %286, %cst_126 [1] : vector<5x5xf32> to vector<5xf32>
    %288 = vector.shape_cast %287 : vector<5xf32> to vector<5x1xf32>
    %289 = vector.broadcast %288 : vector<5x1xf32> to vector<5x5xf32>
    %290 = arith.divf %286, %289 : vector<5x5xf32>
    %cst_127 = arith.constant dense<0.000000e+00> : vector<5x64xf32>
    %291 = tpu.matmul %290, %278, %cst_127 {dimension_numbers = #tpu.dot_dimension_numbers<[1], [0], [0], [1], [0, 0, 1, 1], [], []>} : vector<5x5xf32>, vector<5x64xf32>, vector<5x64xf32> -> vector<5x64xf32>
    %292 = vector.extract_strided_slice %243 {offsets = [0, 192], sizes = [5, 64], strides = [1, 1]} : vector<5x768xf32> to vector<5x64xf32>
    %293 = vector.extract_strided_slice %243 {offsets = [0, 448], sizes = [5, 64], strides = [1, 1]} : vector<5x768xf32> to vector<5x64xf32>
    %294 = vector.extract_strided_slice %243 {offsets = [0, 704], sizes = [5, 64], strides = [1, 1]} : vector<5x768xf32> to vector<5x64xf32>
    %cst_128 = arith.constant dense<0.000000e+00> : vector<5x5xf32>
    %295 = tpu.matmul %292, %293, %cst_128 {dimension_numbers = #tpu.dot_dimension_numbers<[1], [1], [0], [0], [0, 0, 1, 0], [], []>} : vector<5x64xf32>, vector<5x64xf32>, vector<5x5xf32> -> vector<5x5xf32>
    %cst_129 = arith.constant 1.250000e-01 : f32
    %296 = vector.broadcast %cst_129 : f32 to vector<5x5xf32>
    %297 = arith.mulf %295, %296 : vector<5x5xf32>
    %cst_130 = arith.constant dense<0xFF800000> : vector<5xf32>
    %298 = vector.multi_reduction <maximumf>, %297, %cst_130 [1] : vector<5x5xf32> to vector<5xf32>
    %299 = vector.shape_cast %298 : vector<5xf32> to vector<5x1xf32>
    %300 = vector.broadcast %299 : vector<5x1xf32> to vector<5x5xf32>
    %301 = arith.subf %297, %300 : vector<5x5xf32>
    %302 = math.exp %301 : vector<5x5xf32>
    %cst_131 = arith.constant dense<0.000000e+00> : vector<5xf32>
    %303 = vector.multi_reduction <add>, %302, %cst_131 [1] : vector<5x5xf32> to vector<5xf32>
    %304 = vector.shape_cast %303 : vector<5xf32> to vector<5x1xf32>
    %305 = vector.broadcast %304 : vector<5x1xf32> to vector<5x5xf32>
    %306 = arith.divf %302, %305 : vector<5x5xf32>
    %cst_132 = arith.constant dense<0.000000e+00> : vector<5x64xf32>
    %307 = tpu.matmul %306, %294, %cst_132 {dimension_numbers = #tpu.dot_dimension_numbers<[1], [0], [0], [1], [0, 0, 1, 1], [], []>} : vector<5x5xf32>, vector<5x64xf32>, vector<5x64xf32> -> vector<5x64xf32>
    %308 = tpu.concatenate %259, %275, %291, %307 in 1 : vector<5x64xf32>, vector<5x64xf32>, vector<5x64xf32>, vector<5x64xf32> -> vector<5x256xf32>
    %c1_133 = arith.constant 1 : index
    %c0_134 = arith.constant 0 : index
    %c0_135 = arith.constant 0 : index
    %309 = vector.load %arg13[%c1_133, %c0_134, %c0_135] : memref<2x256x32xf32, #tpu.memory_space<vmem>>, vector<1x256x32xf32>
    %310 = vector.shape_cast %309 : vector<1x256x32xf32> to vector<256x32xf32>
    %cst_136 = arith.constant dense<0.000000e+00> : vector<5x32xf32>
    %311 = tpu.matmul %308, %310, %cst_136 {dimension_numbers = #tpu.dot_dimension_numbers<[1], [0], [0], [1], [0, 0, 1, 1], [], []>} : vector<5x256xf32>, vector<256x32xf32>, vector<5x32xf32> -> vector<5x32xf32>
    %312 = arith.addf %214, %311 : vector<5x32xf32>
    %c1_137 = arith.constant 1 : index
    %c0_138 = arith.constant 0 : index
    %c0_139 = arith.constant 0 : index
    %313 = vector.load %arg14[%c1_137, %c0_138, %c0_139] : memref<2x1x32xf32, #tpu.memory_space<vmem>>, vector<1x1x32xf32>
    %314 = vector.shape_cast %313 : vector<1x1x32xf32> to vector<1x32xf32>
    %315 = vector.broadcast %314 : vector<1x32xf32> to vector<5x32xf32>
    %316 = arith.addf %312, %315 : vector<5x32xf32>
    %c1_140 = arith.constant 1 : index
    %c0_141 = arith.constant 0 : index
    %c0_142 = arith.constant 0 : index
    %317 = vector.load %arg15[%c1_140, %c0_141, %c0_142] : memref<2x1x32xf32, #tpu.memory_space<vmem>>, vector<1x1x32xf32>
    %318 = vector.shape_cast %317 : vector<1x1x32xf32> to vector<1x32xf32>
    %c1_143 = arith.constant 1 : index
    %c0_144 = arith.constant 0 : index
    %c0_145 = arith.constant 0 : index
    %319 = vector.load %arg16[%c1_143, %c0_144, %c0_145] : memref<2x1x32xf32, #tpu.memory_space<vmem>>, vector<1x1x32xf32>
    %320 = vector.shape_cast %319 : vector<1x1x32xf32> to vector<1x32xf32>
    %cst_146 = arith.constant dense<0.000000e+00> : vector<5xf32>
    %321 = vector.multi_reduction <add>, %316, %cst_146 [1] : vector<5x32xf32> to vector<5xf32>
    %322 = vector.shape_cast %321 : vector<5xf32> to vector<5x1xf32>
    %cst_147 = arith.constant 3.200000e+01 : f32
    %323 = vector.broadcast %cst_147 : f32 to vector<5x1xf32>
    %324 = arith.divf %322, %323 : vector<5x1xf32>
    %325 = vector.broadcast %324 : vector<5x1xf32> to vector<5x32xf32>
    %326 = arith.subf %316, %325 : vector<5x32xf32>
    %327 = arith.mulf %326, %326 : vector<5x32xf32>
    %cst_148 = arith.constant dense<0.000000e+00> : vector<5xf32>
    %328 = vector.multi_reduction <add>, %327, %cst_148 [1] : vector<5x32xf32> to vector<5xf32>
    %329 = vector.shape_cast %328 : vector<5xf32> to vector<5x1xf32>
    %cst_149 = arith.constant 3.200000e+01 : f32
    %330 = vector.broadcast %cst_149 : f32 to vector<5x1xf32>
    %331 = arith.divf %329, %330 : vector<5x1xf32>
    %332 = vector.broadcast %324 : vector<5x1xf32> to vector<5x32xf32>
    %333 = arith.subf %316, %332 : vector<5x32xf32>
    %cst_150 = arith.constant 9.99999974E-6 : f32
    %334 = vector.broadcast %cst_150 : f32 to vector<5x1xf32>
    %335 = arith.addf %331, %334 : vector<5x1xf32>
    %336 = math.rsqrt %335 : vector<5x1xf32>
    %337 = vector.broadcast %336 : vector<5x1xf32> to vector<5x32xf32>
    %338 = arith.mulf %333, %337 : vector<5x32xf32>
    %339 = vector.broadcast %318 : vector<1x32xf32> to vector<5x32xf32>
    %340 = arith.mulf %338, %339 : vector<5x32xf32>
    %341 = vector.broadcast %320 : vector<1x32xf32> to vector<5x32xf32>
    %342 = arith.addf %340, %341 : vector<5x32xf32>
    %c1_151 = arith.constant 1 : index
    %c0_152 = arith.constant 0 : index
    %c0_153 = arith.constant 0 : index
    %343 = vector.load %arg17[%c1_151, %c0_152, %c0_153] : memref<2x32x32xf32, #tpu.memory_space<vmem>>, vector<1x32x32xf32>
    %344 = vector.shape_cast %343 : vector<1x32x32xf32> to vector<32x32xf32>
    %cst_154 = arith.constant dense<0.000000e+00> : vector<5x32xf32>
    %345 = tpu.matmul %342, %344, %cst_154 {dimension_numbers = #tpu.dot_dimension_numbers<[1], [0], [0], [1], [0, 0, 1, 1], [], []>} : vector<5x32xf32>, vector<32x32xf32>, vector<5x32xf32> -> vector<5x32xf32>
    %c1_155 = arith.constant 1 : index
    %c0_156 = arith.constant 0 : index
    %c0_157 = arith.constant 0 : index
    %346 = vector.load %arg18[%c1_155, %c0_156, %c0_157] : memref<2x1x32xf32, #tpu.memory_space<vmem>>, vector<1x1x32xf32>
    %347 = vector.shape_cast %346 : vector<1x1x32xf32> to vector<1x32xf32>
    %348 = vector.broadcast %347 : vector<1x32xf32> to vector<5x32xf32>
    %349 = arith.addf %345, %348 : vector<5x32xf32>
    %350 = arith.mulf %349, %349 : vector<5x32xf32>
    %351 = arith.mulf %349, %350 : vector<5x32xf32>
    %cst_158 = arith.constant 4.471500e-02 : f32
    %352 = vector.broadcast %cst_158 : f32 to vector<5x32xf32>
    %353 = arith.mulf %352, %351 : vector<5x32xf32>
    %354 = arith.addf %349, %353 : vector<5x32xf32>
    %cst_159 = arith.constant 0.797884583 : f32
    %355 = vector.broadcast %cst_159 : f32 to vector<5x32xf32>
    %356 = arith.mulf %355, %354 : vector<5x32xf32>
    %357 = math.tanh %356 : vector<5x32xf32>
    %cst_160 = arith.constant 1.000000e+00 : f32
    %358 = vector.broadcast %cst_160 : f32 to vector<5x32xf32>
    %359 = arith.addf %358, %357 : vector<5x32xf32>
    %cst_161 = arith.constant 5.000000e-01 : f32
    %360 = vector.broadcast %cst_161 : f32 to vector<5x32xf32>
    %361 = arith.mulf %360, %359 : vector<5x32xf32>
    %362 = arith.mulf %349, %361 : vector<5x32xf32>
    %c1_162 = arith.constant 1 : index
    %c0_163 = arith.constant 0 : index
    %c0_164 = arith.constant 0 : index
    %363 = vector.load %arg19[%c1_162, %c0_163, %c0_164] : memref<2x32x32xf32, #tpu.memory_space<vmem>>, vector<1x32x32xf32>
    %364 = vector.shape_cast %363 : vector<1x32x32xf32> to vector<32x32xf32>
    %cst_165 = arith.constant dense<0.000000e+00> : vector<5x32xf32>
    %365 = tpu.matmul %362, %364, %cst_165 {dimension_numbers = #tpu.dot_dimension_numbers<[1], [0], [0], [1], [0, 0, 1, 1], [], []>} : vector<5x32xf32>, vector<32x32xf32>, vector<5x32xf32> -> vector<5x32xf32>
    %366 = arith.addf %316, %365 : vector<5x32xf32>
    %c1_166 = arith.constant 1 : index
    %c0_167 = arith.constant 0 : index
    %c0_168 = arith.constant 0 : index
    %367 = vector.load %arg20[%c1_166, %c0_167, %c0_168] : memref<2x1x32xf32, #tpu.memory_space<vmem>>, vector<1x1x32xf32>
    %368 = vector.shape_cast %367 : vector<1x1x32xf32> to vector<1x32xf32>
    %369 = vector.broadcast %368 : vector<1x32xf32> to vector<5x32xf32>
    %370 = arith.addf %366, %369 : vector<5x32xf32>
    %371 = vector.extract_strided_slice %370 {offsets = [0, 0], sizes = [1, 32], strides = [1, 1]} : vector<5x32xf32> to vector<1x32xf32>
    %c0_169 = arith.constant 0 : index
    %c0_170 = arith.constant 0 : index
    %372 = vector.load %arg21[%c0_169, %c0_170] : memref<1x32xf32, #tpu.memory_space<vmem>>, vector<1x32xf32>
    %c0_171 = arith.constant 0 : index
    %c0_172 = arith.constant 0 : index
    %373 = vector.load %arg22[%c0_171, %c0_172] : memref<1x32xf32, #tpu.memory_space<vmem>>, vector<1x32xf32>
    %cst_173 = arith.constant dense<0.000000e+00> : vector<1xf32>
    %374 = vector.multi_reduction <add>, %371, %cst_173 [1] : vector<1x32xf32> to vector<1xf32>
    %375 = vector.shape_cast %374 : vector<1xf32> to vector<1x1xf32>
    %cst_174 = arith.constant 3.200000e+01 : f32
    %376 = vector.broadcast %cst_174 : f32 to vector<1x1xf32>
    %377 = arith.divf %375, %376 : vector<1x1xf32>
    %378 = vector.broadcast %377 : vector<1x1xf32> to vector<1x32xf32>
    %379 = arith.subf %371, %378 : vector<1x32xf32>
    %380 = arith.mulf %379, %379 : vector<1x32xf32>
    %cst_175 = arith.constant dense<0.000000e+00> : vector<1xf32>
    %381 = vector.multi_reduction <add>, %380, %cst_175 [1] : vector<1x32xf32> to vector<1xf32>
    %382 = vector.shape_cast %381 : vector<1xf32> to vector<1x1xf32>
    %cst_176 = arith.constant 3.200000e+01 : f32
    %383 = vector.broadcast %cst_176 : f32 to vector<1x1xf32>
    %384 = arith.divf %382, %383 : vector<1x1xf32>
    %385 = vector.broadcast %377 : vector<1x1xf32> to vector<1x32xf32>
    %386 = arith.subf %371, %385 : vector<1x32xf32>
    %cst_177 = arith.constant 9.99999974E-6 : f32
    %387 = vector.broadcast %cst_177 : f32 to vector<1x1xf32>
    %388 = arith.addf %384, %387 : vector<1x1xf32>
    %389 = math.rsqrt %388 : vector<1x1xf32>
    %390 = vector.broadcast %389 : vector<1x1xf32> to vector<1x32xf32>
    %391 = arith.mulf %386, %390 : vector<1x32xf32>
    %392 = arith.mulf %391, %372 : vector<1x32xf32>
    %393 = arith.addf %392, %373 : vector<1x32xf32>
    %c0_178 = arith.constant 0 : index
    %c0_179 = arith.constant 0 : index
    %394 = vector.load %arg23[%c0_178, %c0_179] : memref<32x512xf32, #tpu.memory_space<vmem>>, vector<32x512xf32>
    %cst_180 = arith.constant dense<0.000000e+00> : vector<1x512xf32>
    %395 = tpu.matmul %393, %394, %cst_180 {dimension_numbers = #tpu.dot_dimension_numbers<[1], [0], [0], [1], [0, 0, 1, 1], [], []>} : vector<1x32xf32>, vector<32x512xf32>, vector<1x512xf32> -> vector<1x512xf32>
    %c0_181 = arith.constant 0 : index
    %c0_182 = arith.constant 0 : index
    %396 = vector.load %arg24[%c0_181, %c0_182] : memref<1x512xf32, #tpu.memory_space<vmem>>, vector<1x512xf32>
    %397 = arith.addf %395, %396 : vector<1x512xf32>
    %c0_183 = arith.constant 0 : index
    %c0_184 = arith.constant 0 : index
    %c0_185 = arith.constant 0 : index
    %398 = vector.load %arg25[%c0_183, %c0_184, %c0_185] : memref<1x1x512xf32, #tpu.memory_space<vmem>>, vector<1x1x512xf32>
    %399 = vector.shape_cast %398 : vector<1x1x512xf32> to vector<1x512xf32>
    %400 = vector.shape_cast %397 : vector<1x512xf32> to vector<1x1x512xf32>
    tpu.vector_store %arg25[%c0_183, %c0_184, %c0_185], %400 {strides = array<i32>} : memref<1x1x512xf32, #tpu.memory_space<vmem>>, vector<1x1x512xf32>,
    return
  }
  func.func @transform_0(%arg0: i32) -> (i32, i32, i32) {
    %c0_i32 = arith.constant 0 : i32
    %c0_i32_0 = arith.constant 0 : i32
    %c0_i32_1 = arith.constant 0 : i32
    return %arg0, %c0_i32, %c0_i32_0 : i32, i32, i32
  }
  func.func @transform_1(%arg0: i32) -> (i32, i32) {
    %c0_i32 = arith.constant 0 : i32
    %c0_i32_0 = arith.constant 0 : i32
    %c0_i32_1 = arith.constant 0 : i32
    return %c0_i32, %c0_i32_0 : i32, i32
  }
  func.func @transform_2(%arg0: i32) -> (i32, i32) {
    %c0_i32 = arith.constant 0 : i32
    %c0_i32_0 = arith.constant 0 : i32
    %c0_i32_1 = arith.constant 0 : i32
    return %c0_i32, %c0_i32_0 : i32, i32
  }
  func.func @transform_3(%arg0: i32) -> (i32, i32) {
    %c0_i32 = arith.constant 0 : i32
    %c0_i32_0 = arith.constant 0 : i32
    %c0_i32_1 = arith.constant 0 : i32
    return %c0_i32, %c0_i32_0 : i32, i32
  }
  func.func @transform_4(%arg0: i32) -> (i32, i32) {
    %c0_i32 = arith.constant 0 : i32
    %c0_i32_0 = arith.constant 0 : i32
    %c0_i32_1 = arith.constant 0 : i32
    return %c0_i32, %c0_i32_0 : i32, i32
  }
  func.func @transform_5(%arg0: i32) -> (i32, i32) {
    %c0_i32 = arith.constant 0 : i32
    %c0_i32_0 = arith.constant 0 : i32
    %c0_i32_1 = arith.constant 0 : i32
    return %c0_i32, %c0_i32_0 : i32, i32
  }
  func.func @transform_6(%arg0: i32) -> (i32, i32) {
    %c0_i32 = arith.constant 0 : i32
    %c0_i32_0 = arith.constant 0 : i32
    %c0_i32_1 = arith.constant 0 : i32
    return %c0_i32, %c0_i32_0 : i32, i32
  }
  func.func @transform_7(%arg0: i32) -> (i32, i32) {
    %c0_i32 = arith.constant 0 : i32
    %c0_i32_0 = arith.constant 0 : i32
    %c0_i32_1 = arith.constant 0 : i32
    return %c0_i32, %c0_i32_0 : i32, i32
  }
  func.func @transform_8(%arg0: i32) -> (i32, i32) {
    %c0_i32 = arith.constant 0 : i32
    %c0_i32_0 = arith.constant 0 : i32
    %c0_i32_1 = arith.constant 0 : i32
    return %c0_i32, %c0_i32_0 : i32, i32
  }
  func.func @transform_9(%arg0: i32) -> (i32, i32, i32) {
    %c0_i32 = arith.constant 0 : i32
    %c0_i32_0 = arith.constant 0 : i32
    %c0_i32_1 = arith.constant 0 : i32
    %c0_i32_2 = arith.constant 0 : i32
    return %c0_i32, %c0_i32_0, %c0_i32_1 : i32, i32, i32
  }
  func.func @transform_10(%arg0: i32) -> (i32, i32, i32) {
    %c0_i32 = arith.constant 0 : i32
    %c0_i32_0 = arith.constant 0 : i32
    %c0_i32_1 = arith.constant 0 : i32
    %c0_i32_2 = arith.constant 0 : i32
    return %c0_i32, %c0_i32_0, %c0_i32_1 : i32, i32, i32
  }
  func.func @transform_11(%arg0: i32) -> (i32, i32, i32) {
    %c0_i32 = arith.constant 0 : i32
    %c0_i32_0 = arith.constant 0 : i32
    %c0_i32_1 = arith.constant 0 : i32
    %c0_i32_2 = arith.constant 0 : i32
    return %c0_i32, %c0_i32_0, %c0_i32_1 : i32, i32, i32
  }
  func.func @transform_12(%arg0: i32) -> (i32, i32, i32) {
    %c0_i32 = arith.constant 0 : i32
    %c0_i32_0 = arith.constant 0 : i32
    %c0_i32_1 = arith.constant 0 : i32
    %c0_i32_2 = arith.constant 0 : i32
    return %c0_i32, %c0_i32_0, %c0_i32_1 : i32, i32, i32
  }
  func.func @transform_13(%arg0: i32) -> (i32, i32, i32) {
    %c0_i32 = arith.constant 0 : i32
    %c0_i32_0 = arith.constant 0 : i32
    %c0_i32_1 = arith.constant 0 : i32
    %c0_i32_2 = arith.constant 0 : i32
    return %c0_i32, %c0_i32_0, %c0_i32_1 : i32, i32, i32
  }
  func.func @transform_14(%arg0: i32) -> (i32, i32, i32) {
    %c0_i32 = arith.constant 0 : i32
    %c0_i32_0 = arith.constant 0 : i32
    %c0_i32_1 = arith.constant 0 : i32
    %c0_i32_2 = arith.constant 0 : i32
    return %c0_i32, %c0_i32_0, %c0_i32_1 : i32, i32, i32
  }
  func.func @transform_15(%arg0: i32) -> (i32, i32, i32) {
    %c0_i32 = arith.constant 0 : i32
    %c0_i32_0 = arith.constant 0 : i32
    %c0_i32_1 = arith.constant 0 : i32
    %c0_i32_2 = arith.constant 0 : i32
    return %c0_i32, %c0_i32_0, %c0_i32_1 : i32, i32, i32
  }
  func.func @transform_16(%arg0: i32) -> (i32, i32, i32) {
    %c0_i32 = arith.constant 0 : i32
    %c0_i32_0 = arith.constant 0 : i32
    %c0_i32_1 = arith.constant 0 : i32
    %c0_i32_2 = arith.constant 0 : i32
    return %c0_i32, %c0_i32_0, %c0_i32_1 : i32, i32, i32
  }
  func.func @transform_17(%arg0: i32) -> (i32, i32, i32) {
    %c0_i32 = arith.constant 0 : i32
    %c0_i32_0 = arith.constant 0 : i32
    %c0_i32_1 = arith.constant 0 : i32
    %c0_i32_2 = arith.constant 0 : i32
    return %c0_i32, %c0_i32_0, %c0_i32_1 : i32, i32, i32
  }
  func.func @transform_18(%arg0: i32) -> (i32, i32, i32) {
    %c0_i32 = arith.constant 0 : i32
    %c0_i32_0 = arith.constant 0 : i32
    %c0_i32_1 = arith.constant 0 : i32
    %c0_i32_2 = arith.constant 0 : i32
    return %c0_i32, %c0_i32_0, %c0_i32_1 : i32, i32, i32
  }
  func.func @transform_19(%arg0: i32) -> (i32, i32, i32) {
    %c0_i32 = arith.constant 0 : i32
    %c0_i32_0 = arith.constant 0 : i32
    %c0_i32_1 = arith.constant 0 : i32
    %c0_i32_2 = arith.constant 0 : i32
    return %c0_i32, %c0_i32_0, %c0_i32_1 : i32, i32, i32
  }
  func.func @transform_20(%arg0: i32) -> (i32, i32) {
    %c0_i32 = arith.constant 0 : i32
    %c0_i32_0 = arith.constant 0 : i32
    %c0_i32_1 = arith.constant 0 : i32
    return %c0_i32, %c0_i32_0 : i32, i32
  }
  func.func @transform_21(%arg0: i32) -> (i32, i32) {
    %c0_i32 = arith.constant 0 : i32
    %c0_i32_0 = arith.constant 0 : i32
    %c0_i32_1 = arith.constant 0 : i32
    return %c0_i32, %c0_i32_0 : i32, i32
  }
  func.func @transform_22(%arg0: i32) -> (i32, i32) {
    %c0_i32 = arith.constant 0 : i32
    %c0_i32_0 = arith.constant 0 : i32
    %c0_i32_1 = arith.constant 0 : i32
    return %c0_i32, %c0_i32_0 : i32, i32
  }
  func.func @transform_23(%arg0: i32) -> (i32, i32) {
    %c0_i32 = arith.constant 0 : i32
    %c0_i32_0 = arith.constant 0 : i32
    %c0_i32_1 = arith.constant 0 : i32
    return %c0_i32, %c0_i32_0 : i32, i32
  }
  func.func @transform_24(%arg0: i32) -> (i32, i32, i32) {
    %c0_i32 = arith.constant 0 : i32
    %c0_i32_0 = arith.constant 0 : i32
    %c0_i32_1 = arith.constant 0 : i32
    return %arg0, %c0_i32, %c0_i32_0 : i32, i32, i32
  }
}

</mosaic_0001>

<llo_original>
// kernel: vit_forward.1
$region0: #{vit_forward.1}
  #allocation0 [shape = 'u32[]', space=smem, size = 0x4, offset = 0x4, fixed_abs, tag = 'smem constant byte address 0x4 - core index']
  #allocation1 [shape = 'u32[72,128]{1,0:T(1,128)}', space=vmem, size = 0x9000, scoped, tag = 'internal scratch']
  %s0 = inlined_call_operand.vmem [shape: f32[2,4,256], index: 0, kind: input, shape index: {}]
  %s1 = inlined_call_operand.vmem [shape: f32[1,32], index: 1, kind: input, shape index: {}]
  %s2 = inlined_call_operand.vmem [shape: f32[5,32], index: 2, kind: input, shape index: {}]
  %s3 = inlined_call_operand.vmem [shape: f32[1,256], index: 3, kind: input, shape index: {}]
  %s4 = inlined_call_operand.vmem [shape: f32[1,256], index: 4, kind: input, shape index: {}]
  %s5 = inlined_call_operand.vmem [shape: f32[256,32], index: 5, kind: input, shape index: {}]
  %s6 = inlined_call_operand.vmem [shape: f32[1,32], index: 6, kind: input, shape index: {}]
  %s7 = inlined_call_operand.vmem [shape: f32[1,32], index: 7, kind: input, shape index: {}]
  %s8 = inlined_call_operand.vmem [shape: f32[1,32], index: 8, kind: input, shape index: {}]
  %s9 = inlined_call_operand.vmem [shape: f32[2,1,32], index: 9, kind: input, shape index: {}]
  %s10 = inlined_call_operand.vmem [shape: f32[2,1,32], index: 10, kind: input, shape index: {}]
  %s11 = inlined_call_operand.vmem [shape: f32[2,32,768], index: 11, kind: input, shape index: {}]
  %s12 = inlined_call_operand.vmem [shape: f32[2,256,32], index: 12, kind: input, shape index: {}]
  %s13 = inlined_call_operand.vmem [shape: f32[2,1,32], index: 13, kind: input, shape index: {}]
  %s14 = inlined_call_operand.vmem [shape: f32[2,1,32], index: 14, kind: input, shape index: {}]
  %s15 = inlined_call_operand.vmem [shape: f32[2,1,32], index: 15, kind: input, shape index: {}]
  %s16 = inlined_call_operand.vmem [shape: f32[2,32,32], index: 16, kind: input, shape index: {}]
  %s17 = inlined_call_operand.vmem [shape: f32[2,1,32], index: 17, kind: input, shape index: {}]
  %s18 = inlined_call_operand.vmem [shape: f32[2,32,32], index: 18, kind: input, shape index: {}]
  %s19 = inlined_call_operand.vmem [shape: f32[2,1,32], index: 19, kind: input, shape index: {}]
  %s20 = inlined_call_operand.vmem [shape: f32[1,32], index: 20, kind: input, shape index: {}]
  %s21 = inlined_call_operand.vmem [shape: f32[1,32], index: 21, kind: input, shape index: {}]
  %s22 = inlined_call_operand.vmem [shape: f32[32,512], index: 22, kind: input, shape index: {}]
  %s23 = inlined_call_operand.vmem [shape: f32[1,512], index: 23, kind: input, shape index: {}]
  %s24 = inlined_call_operand.vmem [shape: f32[2,1,512], index: 24, kind: output, shape index: {}]
  %s25 = sld [smem:[#allocation0]]
  $region129: #{vit_forward.1} parent=0
    _
  %s27 = ssub.s32 1, %s25
  %s28 = scalar_select 0, %s27, %s25
  loop: start=0, step=1, limit=4
  $region2: #{vit_forward.1} parent=0 // loop_pre_header
    _
  $region3: #{vit_forward.1} parent=0 // loop_header
    %s30 = sphi 0, %s34
    %p31 = scmp.ge.s32.totalorder %s30, 4
    %s40 = sphi 0, %s42
    %s43 = sphi 0, %s40
    %s44 = sphi 0, %s43
    %s60 = sphi 0, %s44
    %s64 = sphi 0, %s64
    %s66 = sphi 0, %s64
    %s67 = sphi 0, %s66
    %s81 = sphi 0, %s67
    %s85 = sphi 0, %s85
    %s87 = sphi 0, %s85
    %s88 = sphi 0, %s87
    %s102 = sphi 0, %s88
    %s106 = sphi 0, %s106
    %s108 = sphi 0, %s106
    %s109 = sphi 0, %s108
    %s123 = sphi 0, %s109
    %s127 = sphi 0, %s127
    %s129 = sphi 0, %s127
    %s130 = sphi 0, %s129
    %s144 = sphi 0, %s130
    %s148 = sphi 0, %s148
    %s150 = sphi 0, %s148
    %s151 = sphi 0, %s150
    %s165 = sphi 0, %s151
    %s169 = sphi 0, %s169
    %s171 = sphi 0, %s169
    %s172 = sphi 0, %s171
    %s186 = sphi 0, %s172
    %s190 = sphi 0, %s190
    %s192 = sphi 0, %s190
    %s193 = sphi 0, %s192
    %s207 = sphi 0, %s193
    %s211 = sphi 0, %s211
    %s213 = sphi 0, %s211
    %s214 = sphi 0, %s213
    %s228 = sphi 0, %s214
    %s232 = sphi 0, %s232
    %s234 = sphi 0, %s232
    %s235 = sphi 0, %s234
    %s249 = sphi 0, %s235
    %s253 = sphi 0, %s253
    %s255 = sphi 0, %s253
    %s256 = sphi 0, %s255
    %s270 = sphi 0, %s256
    %s274 = sphi 0, %s274
    %s276 = sphi 0, %s274
    %s277 = sphi 0, %s276
    %s291 = sphi 0, %s277
    %s295 = sphi 0, %s295
    %s297 = sphi 0, %s295
    %s298 = sphi 0, %s297
    %s312 = sphi 0, %s298
    %s316 = sphi 0, %s316
    %s318 = sphi 0, %s316
    %s319 = sphi 0, %s318
    %s333 = sphi 0, %s319
    %s337 = sphi 0, %s337
    %s339 = sphi 0, %s337
    %s340 = sphi 0, %s339
    %s354 = sphi 0, %s340
    %s358 = sphi 0, %s358
    %s360 = sphi 0, %s358
    %s361 = sphi 0, %s360
    %s375 = sphi 0, %s361
    %s379 = sphi 0, %s379
    %s381 = sphi 0, %s379
    %s382 = sphi 0, %s381
    %s396 = sphi 0, %s382
    %s400 = sphi 0, %s400
    %s402 = sphi 0, %s400
    %s403 = sphi 0, %s402
    %s417 = sphi 0, %s403
    %s421 = sphi 0, %s421
    %s423 = sphi 0, %s421
    %s424 = sphi 0, %s423
    %s438 = sphi 0, %s424
    %s442 = sphi 0, %s442
    %s444 = sphi 0, %s442
    %s445 = sphi 0, %s444
    %s459 = sphi 0, %s445
    %s463 = sphi 0, %s463
    %s465 = sphi 0, %s463
    %s466 = sphi 0, %s465
    %s480 = sphi 0, %s466
    %s484 = sphi 0, %s484
    %s486 = sphi 0, %s484
    %s487 = sphi 0, %s486
    %s501 = sphi 0, %s487
    %s505 = sphi 0, %s505
    %s507 = sphi 0, %s505
    %s508 = sphi 0, %s507
    %s522 = sphi 0, %s508
    %s526 = sphi 0, %s526
    %s528 = sphi 0, %s526
    %s529 = sphi 0, %s528
    %s543 = sphi 0, %s529
    %s549 = sphi 0, %s551
    %s552 = sphi 0, %s549
    %s553 = sphi 0, %s552
    %s569 = sphi 0, %s553
  $region4: #{vit_forward.1} parent=0 // loop_header_branch
    %33 = sbr.rel (%p31) target = $region8
  $region5: #{vit_forward.1} parent=0 // loop_body
    %s35 = ssub.s32 %s30, 1
    %s36 = ssub.s32 %s30, 2
    %s37 = sadd.s32 %s30, 1
    %s38 = ssub.s32 %s30, %s37
    %p39 = scmp.eq.s32.totalorder %s38, 0
    %s41 = sadd.s32 %s40, 1
    %s42 = scalar_select %p39, %s40, %s41
    %p45 = pneg %p39
    %p46 = scmp.eq.s32.totalorder %s30, 1
    %p47 = por %p45, %p46
    %p48 = scmp.ne.s32.totalorder %s40, %s43
    %p49 = scmp.eq.s32.totalorder %s30, 0
    %p50 = por %p48, %p49
    %p51 = scmp.ne.s32.totalorder %s40, %s43
    %p52 = scmp.eq.s32.totalorder %s35, 1
    %p53 = por %p51, %p52
    %p54 = scmp.ne.s32.totalorder %s43, %s44
    %p55 = scmp.eq.s32.totalorder %s35, 0
    %p56 = por %p54, %p55
    %p57 = scmp.ne.s32.totalorder %s43, %s44
    %p58 = scmp.eq.s32.totalorder %s36, 1
    %p59 = por %p57, %p58
    %p61 = scmp.ne.s32.totalorder %s44, %s60
    %p62 = scmp.eq.s32.totalorder %s36, 0
    %p63 = por %p61, %p62
    %s65 = sadd.s32 %s64, 1
    %p68 = scmp.eq.s32.totalorder %s30, 1
    %p69 = scmp.ne.s32.totalorder %s64, %s66
    %p70 = scmp.eq.s32.totalorder %s30, 0
    %p71 = por %p69, %p70
    %p72 = scmp.ne.s32.totalorder %s64, %s66
    %p73 = scmp.eq.s32.totalorder %s35, 1
    %p74 = por %p72, %p73
    %p75 = scmp.ne.s32.totalorder %s66, %s67
    %p76 = scmp.eq.s32.totalorder %s35, 0
    %p77 = por %p75, %p76
    %p78 = scmp.ne.s32.totalorder %s66, %s67
    %p79 = scmp.eq.s32.totalorder %s36, 1
    %p80 = por %p78, %p79
    %p82 = scmp.ne.s32.totalorder %s67, %s81
    %p83 = scmp.eq.s32.totalorder %s36, 0
    %p84 = por %p82, %p83
    %s86 = sadd.s32 %s85, 1
    %p89 = scmp.eq.s32.totalorder %s30, 1
    %p90 = scmp.ne.s32.totalorder %s85, %s87
    %p91 = scmp.eq.s32.totalorder %s30, 0
    %p92 = por %p90, %p91
    %p93 = scmp.ne.s32.totalorder %s85, %s87
    %p94 = scmp.eq.s32.totalorder %s35, 1
    %p95 = por %p93, %p94
    %p96 = scmp.ne.s32.totalorder %s87, %s88
    %p97 = scmp.eq.s32.totalorder %s35, 0
    %p98 = por %p96, %p97
    %p99 = scmp.ne.s32.totalorder %s87, %s88
    %p100 = scmp.eq.s32.totalorder %s36, 1
    %p101 = por %p99, %p100
    %p103 = scmp.ne.s32.totalorder %s88, %s102
    %p104 = scmp.eq.s32.totalorder %s36, 0
    %p105 = por %p103, %p104
    %s107 = sadd.s32 %s106, 1
    %p110 = scmp.eq.s32.totalorder %s30, 1
    %p111 = scmp.ne.s32.totalorder %s106, %s108
    %p112 = scmp.eq.s32.totalorder %s30, 0
    %p113 = por %p111, %p112
    %p114 = scmp.ne.s32.totalorder %s106, %s108
    %p115 = scmp.eq.s32.totalorder %s35, 1
    %p116 = por %p114, %p115
    %p117 = scmp.ne.s32.totalorder %s108, %s109
    %p118 = scmp.eq.s32.totalorder %s35, 0
    %p119 = por %p117, %p118
    %p120 = scmp.ne.s32.totalorder %s108, %s109
    %p121 = scmp.eq.s32.totalorder %s36, 1
    %p122 = por %p120, %p121
    %p124 = scmp.ne.s32.totalorder %s109, %s123
    %p125 = scmp.eq.s32.totalorder %s36, 0
    %p126 = por %p124, %p125
    %s128 = sadd.s32 %s127, 1
    %p131 = scmp.eq.s32.totalorder %s30, 1
    %p132 = scmp.ne.s32.totalorder %s127, %s129
    %p133 = scmp.eq.s32.totalorder %s30, 0
    %p134 = por %p132, %p133
    %p135 = scmp.ne.s32.totalorder %s127, %s129
    %p136 = scmp.eq.s32.totalorder %s35, 1
    %p137 = por %p135, %p136
    %p138 = scmp.ne.s32.totalorder %s129, %s130
    %p139 = scmp.eq.s32.totalorder %s35, 0
    %p140 = por %p138, %p139
    %p141 = scmp.ne.s32.totalorder %s129, %s130
    %p142 = scmp.eq.s32.totalorder %s36, 1
    %p143 = por %p141, %p142
    %p145 = scmp.ne.s32.totalorder %s130, %s144
    %p146 = scmp.eq.s32.totalorder %s36, 0
    %p147 = por %p145, %p146
    %s149 = sadd.s32 %s148, 1
    %p152 = scmp.eq.s32.totalorder %s30, 1
    %p153 = scmp.ne.s32.totalorder %s148, %s150
    %p154 = scmp.eq.s32.totalorder %s30, 0
    %p155 = por %p153, %p154
    %p156 = scmp.ne.s32.totalorder %s148, %s150
    %p157 = scmp.eq.s32.totalorder %s35, 1
    %p158 = por %p156, %p157
    %p159 = scmp.ne.s32.totalorder %s150, %s151
    %p160 = scmp.eq.s32.totalorder %s35, 0
    %p161 = por %p159, %p160
    %p162 = scmp.ne.s32.totalorder %s150, %s151
    %p163 = scmp.eq.s32.totalorder %s36, 1
    %p164 = por %p162, %p163
    %p166 = scmp.ne.s32.totalorder %s151, %s165
    %p167 = scmp.eq.s32.totalorder %s36, 0
    %p168 = por %p166, %p167
    %s170 = sadd.s32 %s169, 1
    %p173 = scmp.eq.s32.totalorder %s30, 1
    %p174 = scmp.ne.s32.totalorder %s169, %s171
    %p175 = scmp.eq.s32.totalorder %s30, 0
    %p176 = por %p174, %p175
    %p177 = scmp.ne.s32.totalorder %s169, %s171
    %p178 = scmp.eq.s32.totalorder %s35, 1
    %p179 = por %p177, %p178
    %p180 = scmp.ne.s32.totalorder %s171, %s172
    %p181 = scmp.eq.s32.totalorder %s35, 0
    %p182 = por %p180, %p181
    %p183 = scmp.ne.s32.totalorder %s171, %s172
    %p184 = scmp.eq.s32.totalorder %s36, 1
    %p185 = por %p183, %p184
    %p187 = scmp.ne.s32.totalorder %s172, %s186
    %p188 = scmp.eq.s32.totalorder %s36, 0
    %p189 = por %p187, %p188
    %s191 = sadd.s32 %s190, 1
    %p194 = scmp.eq.s32.totalorder %s30, 1
    %p195 = scmp.ne.s32.totalorder %s190, %s192
    %p196 = scmp.eq.s32.totalorder %s30, 0
    %p197 = por %p195, %p196
    %p198 = scmp.ne.s32.totalorder %s190, %s192
    %p199 = scmp.eq.s32.totalorder %s35, 1
    %p200 = por %p198, %p199
    %p201 = scmp.ne.s32.totalorder %s192, %s193
    %p202 = scmp.eq.s32.totalorder %s35, 0
    %p203 = por %p201, %p202
    %p204 = scmp.ne.s32.totalorder %s192, %s193
    %p205 = scmp.eq.s32.totalorder %s36, 1
    %p206 = por %p204, %p205
    %p208 = scmp.ne.s32.totalorder %s193, %s207
    %p209 = scmp.eq.s32.totalorder %s36, 0
    %p210 = por %p208, %p209
    %s212 = sadd.s32 %s211, 1
    %p215 = scmp.eq.s32.totalorder %s30, 1
    %p216 = scmp.ne.s32.totalorder %s211, %s213
    %p217 = scmp.eq.s32.totalorder %s30, 0
    %p218 = por %p216, %p217
    %p219 = scmp.ne.s32.totalorder %s211, %s213
    %p220 = scmp.eq.s32.totalorder %s35, 1
    %p221 = por %p219, %p220
    %p222 = scmp.ne.s32.totalorder %s213, %s214
    %p223 = scmp.eq.s32.totalorder %s35, 0
    %p224 = por %p222, %p223
    %p225 = scmp.ne.s32.totalorder %s213, %s214
    %p226 = scmp.eq.s32.totalorder %s36, 1
    %p227 = por %p225, %p226
    %p229 = scmp.ne.s32.totalorder %s214, %s228
    %p230 = scmp.eq.s32.totalorder %s36, 0
    %p231 = por %p229, %p230
    %s233 = sadd.s32 %s232, 1
    %p236 = scmp.eq.s32.totalorder %s30, 1
    %p237 = scmp.ne.s32.totalorder %s232, %s234
    %p238 = scmp.eq.s32.totalorder %s30, 0
    %p239 = por %p237, %p238
    %p240 = scmp.ne.s32.totalorder %s232, %s234
    %p241 = scmp.eq.s32.totalorder %s35, 1
    %p242 = por %p240, %p241
    %p243 = scmp.ne.s32.totalorder %s234, %s235
    %p244 = scmp.eq.s32.totalorder %s35, 0
    %p245 = por %p243, %p244
    %p246 = scmp.ne.s32.totalorder %s234, %s235
    %p247 = scmp.eq.s32.totalorder %s36, 1
    %p248 = por %p246, %p247
    %p250 = scmp.ne.s32.totalorder %s235, %s249
    %p251 = scmp.eq.s32.totalorder %s36, 0
    %p252 = por %p250, %p251
    %s254 = sadd.s32 %s253, 1
    %p257 = scmp.eq.s32.totalorder %s30, 1
    %p258 = scmp.ne.s32.totalorder %s253, %s255
    %p259 = scmp.eq.s32.totalorder %s30, 0
    %p260 = por %p258, %p259
    %p261 = scmp.ne.s32.totalorder %s253, %s255
    %p262 = scmp.eq.s32.totalorder %s35, 1
    %p263 = por %p261, %p262
    %p264 = scmp.ne.s32.totalorder %s255, %s256
    %p265 = scmp.eq.s32.totalorder %s35, 0
    %p266 = por %p264, %p265
    %p267 = scmp.ne.s32.totalorder %s255, %s256
    %p268 = scmp.eq.s32.totalorder %s36, 1
    %p269 = por %p267, %p268
    %p271 = scmp.ne.s32.totalorder %s256, %s270
    %p272 = scmp.eq.s32.totalorder %s36, 0
    %p273 = por %p271, %p272
    %s275 = sadd.s32 %s274, 1
    %p278 = scmp.eq.s32.totalorder %s30, 1
    %p279 = scmp.ne.s32.totalorder %s274, %s276
    %p280 = scmp.eq.s32.totalorder %s30, 0
    %p281 = por %p279, %p280
    %p282 = scmp.ne.s32.totalorder %s274, %s276
    %p283 = scmp.eq.s32.totalorder %s35, 1
    %p284 = por %p282, %p283
    %p285 = scmp.ne.s32.totalorder %s276, %s277
    %p286 = scmp.eq.s32.totalorder %s35, 0
    %p287 = por %p285, %p286
    %p288 = scmp.ne.s32.totalorder %s276, %s277
    %p289 = scmp.eq.s32.totalorder %s36, 1
    %p290 = por %p288, %p289
    %p292 = scmp.ne.s32.totalorder %s277, %s291
    %p293 = scmp.eq.s32.totalorder %s36, 0
    %p294 = por %p292, %p293
    %s296 = sadd.s32 %s295, 1
    %p299 = scmp.eq.s32.totalorder %s30, 1
    %p300 = scmp.ne.s32.totalorder %s295, %s297
    %p301 = scmp.eq.s32.totalorder %s30, 0
    %p302 = por %p300, %p301
    %p303 = scmp.ne.s32.totalorder %s295, %s297
    %p304 = scmp.eq.s32.totalorder %s35, 1
    %p305 = por %p303, %p304
    %p306 = scmp.ne.s32.totalorder %s297, %s298
    %p307 = scmp.eq.s32.totalorder %s35, 0
    %p308 = por %p306, %p307
    %p309 = scmp.ne.s32.totalorder %s297, %s298
    %p310 = scmp.eq.s32.totalorder %s36, 1
    %p311 = por %p309, %p310
    %p313 = scmp.ne.s32.totalorder %s298, %s312
    %p314 = scmp.eq.s32.totalorder %s36, 0
    %p315 = por %p313, %p314
    %s317 = sadd.s32 %s316, 1
    %p320 = scmp.eq.s32.totalorder %s30, 1
    %p321 = scmp.ne.s32.totalorder %s316, %s318
    %p322 = scmp.eq.s32.totalorder %s30, 0
    %p323 = por %p321, %p322
    %p324 = scmp.ne.s32.totalorder %s316, %s318
    %p325 = scmp.eq.s32.totalorder %s35, 1
    %p326 = por %p324, %p325
    %p327 = scmp.ne.s32.totalorder %s318, %s319
    %p328 = scmp.eq.s32.totalorder %s35, 0
    %p329 = por %p327, %p328
    %p330 = scmp.ne.s32.totalorder %s318, %s319
    %p331 = scmp.eq.s32.totalorder %s36, 1
    %p332 = por %p330, %p331
    %p334 = scmp.ne.s32.totalorder %s319, %s333
    %p335 = scmp.eq.s32.totalorder %s36, 0
    %p336 = por %p334, %p335
    %s338 = sadd.s32 %s337, 1
    %p341 = scmp.eq.s32.totalorder %s30, 1
    %p342 = scmp.ne.s32.totalorder %s337, %s339
    %p343 = scmp.eq.s32.totalorder %s30, 0
    %p344 = por %p342, %p343
    %p345 = scmp.ne.s32.totalorder %s337, %s339
    %p346 = scmp.eq.s32.totalorder %s35, 1
    %p347 = por %p345, %p346
    %p348 = scmp.ne.s32.totalorder %s339, %s340
    %p349 = scmp.eq.s32.totalorder %s35, 0
    %p350 = por %p348, %p349
    %p351 = scmp.ne.s32.totalorder %s339, %s340
    %p352 = scmp.eq.s32.totalorder %s36, 1
    %p353 = por %p351, %p352
    %p355 = scmp.ne.s32.totalorder %s340, %s354
    %p356 = scmp.eq.s32.totalorder %s36, 0
    %p357 = por %p355, %p356
    %s359 = sadd.s32 %s358, 1
    %p362 = scmp.eq.s32.totalorder %s30, 1
    %p363 = scmp.ne.s32.totalorder %s358, %s360
    %p364 = scmp.eq.s32.totalorder %s30, 0
    %p365 = por %p363, %p364
    %p366 = scmp.ne.s32.totalorder %s358, %s360
    %p367 = scmp.eq.s32.totalorder %s35, 1
    %p368 = por %p366, %p367
    %p369 = scmp.ne.s32.totalorder %s360, %s361
    %p370 = scmp.eq.s32.totalorder %s35, 0
    %p371 = por %p369, %p370
    %p372 = scmp.ne.s32.totalorder %s360, %s361
    %p373 = scmp.eq.s32.totalorder %s36, 1
    %p374 = por %p372, %p373
    %p376 = scmp.ne.s32.totalorder %s361, %s375
    %p377 = scmp.eq.s32.totalorder %s36, 0
    %p378 = por %p376, %p377
    %s380 = sadd.s32 %s379, 1
    %p383 = scmp.eq.s32.totalorder %s30, 1
    %p384 = scmp.ne.s32.totalorder %s379, %s381
    %p385 = scmp.eq.s32.totalorder %s30, 0
    %p386 = por %p384, %p385
    %p387 = scmp.ne.s32.totalorder %s379, %s381
    %p388 = scmp.eq.s32.totalorder %s35, 1
    %p389 = por %p387, %p388
    %p390 = scmp.ne.s32.totalorder %s381, %s382
    %p391 = scmp.eq.s32.totalorder %s35, 0
    %p392 = por %p390, %p391
    %p393 = scmp.ne.s32.totalorder %s381, %s382
    %p394 = scmp.eq.s32.totalorder %s36, 1
    %p395 = por %p393, %p394
    %p397 = scmp.ne.s32.totalorder %s382, %s396
    %p398 = scmp.eq.s32.totalorder %s36, 0
    %p399 = por %p397, %p398
    %s401 = sadd.s32 %s400, 1
    %p404 = scmp.eq.s32.totalorder %s30, 1
    %p405 = scmp.ne.s32.totalorder %s400, %s402
    %p406 = scmp.eq.s32.totalorder %s30, 0
    %p407 = por %p405, %p406
    %p408 = scmp.ne.s32.totalorder %s400, %s402
    %p409 = scmp.eq.s32.totalorder %s35, 1
    %p410 = por %p408, %p409
    %p411 = scmp.ne.s32.totalorder %s402, %s403
    %p412 = scmp.eq.s32.totalorder %s35, 0
    %p413 = por %p411, %p412
    %p414 = scmp.ne.s32.totalorder %s402, %s403
    %p415 = scmp.eq.s32.totalorder %s36, 1
    %p416 = por %p414, %p415
    %p418 = scmp.ne.s32.totalorder %s403, %s417
    %p419 = scmp.eq.s32.totalorder %s36, 0
    %p420 = por %p418, %p419
    %s422 = sadd.s32 %s421, 1
    %p425 = scmp.eq.s32.totalorder %s30, 1
    %p426 = scmp.ne.s32.totalorder %s421, %s423
    %p427 = scmp.eq.s32.totalorder %s30, 0
    %p428 = por %p426, %p427
    %p429 = scmp.ne.s32.totalorder %s421, %s423
    %p430 = scmp.eq.s32.totalorder %s35, 1
    %p431 = por %p429, %p430
    %p432 = scmp.ne.s32.totalorder %s423, %s424
    %p433 = scmp.eq.s32.totalorder %s35, 0
    %p434 = por %p432, %p433
    %p435 = scmp.ne.s32.totalorder %s423, %s424
    %p436 = scmp.eq.s32.totalorder %s36, 1
    %p437 = por %p435, %p436
    %p439 = scmp.ne.s32.totalorder %s424, %s438
    %p440 = scmp.eq.s32.totalorder %s36, 0
    %p441 = por %p439, %p440
    %s443 = sadd.s32 %s442, 1
    %p446 = scmp.eq.s32.totalorder %s30, 1
    %p447 = scmp.ne.s32.totalorder %s442, %s444
    %p448 = scmp.eq.s32.totalorder %s30, 0
    %p449 = por %p447, %p448
    %p450 = scmp.ne.s32.totalorder %s442, %s444
    %p451 = scmp.eq.s32.totalorder %s35, 1
    %p452 = por %p450, %p451
    %p453 = scmp.ne.s32.totalorder %s444, %s445
    %p454 = scmp.eq.s32.totalorder %s35, 0
    %p455 = por %p453, %p454
    %p456 = scmp.ne.s32.totalorder %s444, %s445
    %p457 = scmp.eq.s32.totalorder %s36, 1
    %p458 = por %p456, %p457
    %p460 = scmp.ne.s32.totalorder %s445, %s459
    %p461 = scmp.eq.s32.totalorder %s36, 0
    %p462 = por %p460, %p461
    %s464 = sadd.s32 %s463, 1
    %p467 = scmp.eq.s32.totalorder %s30, 1
    %p468 = scmp.ne.s32.totalorder %s463, %s465
    %p469 = scmp.eq.s32.totalorder %s30, 0
    %p470 = por %p468, %p469
    %p471 = scmp.ne.s32.totalorder %s463, %s465
    %p472 = scmp.eq.s32.totalorder %s35, 1
    %p473 = por %p471, %p472
    %p474 = scmp.ne.s32.totalorder %s465, %s466
    %p475 = scmp.eq.s32.totalorder %s35, 0
    %p476 = por %p474, %p475
    %p477 = scmp.ne.s32.totalorder %s465, %s466
    %p478 = scmp.eq.s32.totalorder %s36, 1
    %p479 = por %p477, %p478
    %p481 = scmp.ne.s32.totalorder %s466, %s480
    %p482 = scmp.eq.s32.totalorder %s36, 0
    %p483 = por %p481, %p482
    %s485 = sadd.s32 %s484, 1
    %p488 = scmp.eq.s32.totalorder %s30, 1
    %p489 = scmp.ne.s32.totalorder %s484, %s486
    %p490 = scmp.eq.s32.totalorder %s30, 0
    %p491 = por %p489, %p490
    %p492 = scmp.ne.s32.totalorder %s484, %s486
    %p493 = scmp.eq.s32.totalorder %s35, 1
    %p494 = por %p492, %p493
    %p495 = scmp.ne.s32.totalorder %s486, %s487
    %p496 = scmp.eq.s32.totalorder %s35, 0
    %p497 = por %p495, %p496
    %p498 = scmp.ne.s32.totalorder %s486, %s487
    %p499 = scmp.eq.s32.totalorder %s36, 1
    %p500 = por %p498, %p499
    %p502 = scmp.ne.s32.totalorder %s487, %s501
    %p503 = scmp.eq.s32.totalorder %s36, 0
    %p504 = por %p502, %p503
    %s506 = sadd.s32 %s505, 1
    %p509 = scmp.eq.s32.totalorder %s30, 1
    %p510 = scmp.ne.s32.totalorder %s505, %s507
    %p511 = scmp.eq.s32.totalorder %s30, 0
    %p512 = por %p510, %p511
    %p513 = scmp.ne.s32.totalorder %s505, %s507
    %p514 = scmp.eq.s32.totalorder %s35, 1
    %p515 = por %p513, %p514
    %p516 = scmp.ne.s32.totalorder %s507, %s508
    %p517 = scmp.eq.s32.totalorder %s35, 0
    %p518 = por %p516, %p517
    %p519 = scmp.ne.s32.totalorder %s507, %s508
    %p520 = scmp.eq.s32.totalorder %s36, 1
    %p521 = por %p519, %p520
    %p523 = scmp.ne.s32.totalorder %s508, %s522
    %p524 = scmp.eq.s32.totalorder %s36, 0
    %p525 = por %p523, %p524
    %s527 = sadd.s32 %s526, 1
    %p530 = scmp.eq.s32.totalorder %s30, 1
    %p531 = scmp.ne.s32.totalorder %s526, %s528
    %p532 = scmp.eq.s32.totalorder %s30, 0
    %p533 = por %p531, %p532
    %p534 = scmp.ne.s32.totalorder %s526, %s528
    %p535 = scmp.eq.s32.totalorder %s35, 1
    %p536 = por %p534, %p535
    %p537 = scmp.ne.s32.totalorder %s528, %s529
    %p538 = scmp.eq.s32.totalorder %s35, 0
    %p539 = por %p537, %p538
    %p540 = scmp.ne.s32.totalorder %s528, %s529
    %p541 = scmp.eq.s32.totalorder %s36, 1
    %p542 = por %p540, %p541
    %p544 = scmp.ne.s32.totalorder %s529, %s543
    %p545 = scmp.eq.s32.totalorder %s36, 0
    %p546 = por %p544, %p545
    %s547 = ssub.s32 %s30, %s37
    %p548 = scmp.eq.s32.totalorder %s547, 0
    %s550 = sadd.s32 %s549, 1
    %s551 = scalar_select %p548, %s549, %s550
    %p554 = pneg %p548
    %p555 = scmp.eq.s32.totalorder %s30, 1
    %p556 = por %p554, %p555
    %p557 = scmp.ne.s32.totalorder %s549, %s552
    %p558 = scmp.eq.s32.totalorder %s30, 0
    %p559 = por %p557, %p558
    %p560 = scmp.ne.s32.totalorder %s549, %s552
    %p561 = scmp.eq.s32.totalorder %s35, 1
    %p562 = por %p560, %p561
    %p563 = scmp.ne.s32.totalorder %s552, %s553
    %p564 = scmp.eq.s32.totalorder %s35, 0
    %p565 = por %p563, %p564
    %p566 = scmp.ne.s32.totalorder %s552, %s553
    %p567 = scmp.eq.s32.totalorder %s36, 1
    %p568 = por %p566, %p567
    %p570 = scmp.ne.s32.totalorder %s553, %s569
    %p571 = scmp.eq.s32.totalorder %s36, 0
    %p572 = por %p570, %p571
    %p573 = scmp.le.s32.totalorder 1, %s30
    %p574 = scmp.lt.s32.totalorder %s30, 3
    %p575 = pnand %p573, %p574
    %p576 = pneg %p575
    // Predicated region
    $region9: #{vit_forward.1} parent=5 // pred_check
      _
    $region10: #{vit_forward.1} parent=5 // pred_check_branch
      %578 = sbr.rel (%p575) target = $region12
    $region11: #{vit_forward.1} parent=5 // pred_region
      %s579 = ssub.s32 %s30, 1
      // Predicated region
      $region13: #{vit_forward.1} parent=11 // pred_check
        %p580 = pneg %p77
      $region14: #{vit_forward.1} parent=11 // pred_check_branch
        %582 = sbr.rel (%p580) target = $region16
      $region15: #{vit_forward.1} parent=11 // pred_region
        _
      $region16: #{vit_forward.1} parent=11 // pred_fallthru
        _
      // Predicated region
      $region17: #{vit_forward.1} parent=11 // pred_check
        %p583 = pneg %p98
      $region18: #{vit_forward.1} parent=11 // pred_check_branch
        %585 = sbr.rel (%p583) target = $region20
      $region19: #{vit_forward.1} parent=11 // pred_region
        _
      $region20: #{vit_forward.1} parent=11 // pred_fallthru
        _
      // Predicated region
      $region21: #{vit_forward.1} parent=11 // pred_check
        %p586 = pneg %p119
      $region22: #{vit_forward.1} parent=11 // pred_check_branch
        %588 = sbr.rel (%p586) target = $region24
      $region23: #{vit_forward.1} parent=11 // pred_region
        _
      $region24: #{vit_forward.1} parent=11 // pred_fallthru
        _
      // Predicated region
      $region25: #{vit_forward.1} parent=11 // pred_check
        %p589 = pneg %p140
      $region26: #{vit_forward.1} parent=11 // pred_check_branch
        %591 = sbr.rel (%p589) target = $region28
      $region27: #{vit_forward.1} parent=11 // pred_region
        _
      $region28: #{vit_forward.1} parent=11 // pred_fallthru
        _
      // Predicated region
      $region29: #{vit_forward.1} parent=11 // pred_check
        %p592 = pneg %p161
      $region30: #{vit_forward.1} parent=11 // pred_check_branch
        %594 = sbr.rel (%p592) target = $region32
      $region31: #{vit_forward.1} parent=11 // pred_region
        _
      $region32: #{vit_forward.1} parent=11 // pred_fallthru
        _
      // Predicated region
      $region33: #{vit_forward.1} parent=11 // pred_check
        %p595 = pneg %p182
      $region34: #{vit_forward.1} parent=11 // pred_check_branch
        %597 = sbr.rel (%p595) target = $region36
      $region35: #{vit_forward.1} parent=11 // pred_region
        _
      $region36: #{vit_forward.1} parent=11 // pred_fallthru
        _
      // Predicated region
      $region37: #{vit_forward.1} parent=11 // pred_check
        %p598 = pneg %p203
      $region38: #{vit_forward.1} parent=11 // pred_check_branch
        %600 = sbr.rel (%p598) target = $region40
      $region39: #{vit_forward.1} parent=11 // pred_region
        _
      $region40: #{vit_forward.1} parent=11 // pred_fallthru
        _
      // Predicated region
      $region41: #{vit_forward.1} parent=11 // pred_check
        %p601 = pneg %p224
      $region42: #{vit_forward.1} parent=11 // pred_check_branch
        %603 = sbr.rel (%p601) target = $region44
      $region43: #{vit_forward.1} parent=11 // pred_region
        _
      $region44: #{vit_forward.1} parent=11 // pred_fallthru
        _
      // Predicated region
      $region45: #{vit_forward.1} parent=11 // pred_check
        %p604 = pneg %p245
      $region46: #{vit_forward.1} parent=11 // pred_check_branch
        %606 = sbr.rel (%p604) target = $region48
      $region47: #{vit_forward.1} parent=11 // pred_region
        _
      $region48: #{vit_forward.1} parent=11 // pred_fallthru
        _
      // Predicated region
      $region49: #{vit_forward.1} parent=11 // pred_check
        %p607 = pneg %p266
      $region50: #{vit_forward.1} parent=11 // pred_check_branch
        %609 = sbr.rel (%p607) target = $region52
      $region51: #{vit_forward.1} parent=11 // pred_region
        _
      $region52: #{vit_forward.1} parent=11 // pred_fallthru
        _
      // Predicated region
      $region53: #{vit_forward.1} parent=11 // pred_check
        %p610 = pneg %p287
      $region54: #{vit_forward.1} parent=11 // pred_check_branch
        %612 = sbr.rel (%p610) target = $region56
      $region55: #{vit_forward.1} parent=11 // pred_region
        _
      $region56: #{vit_forward.1} parent=11 // pred_fallthru
        _
      // Predicated region
      $region57: #{vit_forward.1} parent=11 // pred_check
        %p613 = pneg %p308
      $region58: #{vit_forward.1} parent=11 // pred_check_branch
        %615 = sbr.rel (%p613) target = $region60
      $region59: #{vit_forward.1} parent=11 // pred_region
        _
      $region60: #{vit_forward.1} parent=11 // pred_fallthru
        _
      // Predicated region
      $region61: #{vit_forward.1} parent=11 // pred_check
        %p616 = pneg %p329
      $region62: #{vit_forward.1} parent=11 // pred_check_branch
        %618 = sbr.rel (%p616) target = $region64
      $region63: #{vit_forward.1} parent=11 // pred_region
        _
      $region64: #{vit_forward.1} parent=11 // pred_fallthru
        _
      // Predicated region
      $region65: #{vit_forward.1} parent=11 // pred_check
        %p619 = pneg %p350
      $region66: #{vit_forward.1} parent=11 // pred_check_branch
        %621 = sbr.rel (%p619) target = $region68
      $region67: #{vit_forward.1} parent=11 // pred_region
        _
      $region68: #{vit_forward.1} parent=11 // pred_fallthru
        _
      // Predicated region
      $region69: #{vit_forward.1} parent=11 // pred_check
        %p622 = pneg %p371
      $region70: #{vit_forward.1} parent=11 // pred_check_branch
        %624 = sbr.rel (%p622) target = $region72
      $region71: #{vit_forward.1} parent=11 // pred_region
        _
      $region72: #{vit_forward.1} parent=11 // pred_fallthru
        _
      // Predicated region
      $region73: #{vit_forward.1} parent=11 // pred_check
        %p625 = pneg %p392
      $region74: #{vit_forward.1} parent=11 // pred_check_branch
        %627 = sbr.rel (%p625) target = $region76
      $region75: #{vit_forward.1} parent=11 // pred_region
        _
      $region76: #{vit_forward.1} parent=11 // pred_fallthru
        _
      // Predicated region
      $region77: #{vit_forward.1} parent=11 // pred_check
        %p628 = pneg %p413
      $region78: #{vit_forward.1} parent=11 // pred_check_branch
        %630 = sbr.rel (%p628) target = $region80
      $region79: #{vit_forward.1} parent=11 // pred_region
        _
      $region80: #{vit_forward.1} parent=11 // pred_fallthru
        _
      // Predicated region
      $region81: #{vit_forward.1} parent=11 // pred_check
        %p631 = pneg %p434
      $region82: #{vit_forward.1} parent=11 // pred_check_branch
        %633 = sbr.rel (%p631) target = $region84
      $region83: #{vit_forward.1} parent=11 // pred_region
        _
      $region84: #{vit_forward.1} parent=11 // pred_fallthru
        _
      // Predicated region
      $region85: #{vit_forward.1} parent=11 // pred_check
        %p634 = pneg %p455
      $region86: #{vit_forward.1} parent=11 // pred_check_branch
        %636 = sbr.rel (%p634) target = $region88
      $region87: #{vit_forward.1} parent=11 // pred_region
        _
      $region88: #{vit_forward.1} parent=11 // pred_fallthru
        _
      // Predicated region
      $region89: #{vit_forward.1} parent=11 // pred_check
        %p637 = pneg %p476
      $region90: #{vit_forward.1} parent=11 // pred_check_branch
        %639 = sbr.rel (%p637) target = $region92
      $region91: #{vit_forward.1} parent=11 // pred_region
        _
      $region92: #{vit_forward.1} parent=11 // pred_fallthru
        _
      // Predicated region
      $region93: #{vit_forward.1} parent=11 // pred_check
        %p640 = pneg %p497
      $region94: #{vit_forward.1} parent=11 // pred_check_branch
        %642 = sbr.rel (%p640) target = $region96
      $region95: #{vit_forward.1} parent=11 // pred_region
        _
      $region96: #{vit_forward.1} parent=11 // pred_fallthru
        _
      // Predicated region
      $region97: #{vit_forward.1} parent=11 // pred_check
        %p643 = pneg %p518
      $region98: #{vit_forward.1} parent=11 // pred_check_branch
        %645 = sbr.rel (%p643) target = $region100
      $region99: #{vit_forward.1} parent=11 // pred_region
        _
      $region100: #{vit_forward.1} parent=11 // pred_fallthru
        _
      // Predicated region
      $region101: #{vit_forward.1} parent=11 // pred_check
        %p646 = pneg %p539
      $region102: #{vit_forward.1} parent=11 // pred_check_branch
        %648 = sbr.rel (%p646) target = $region104
      $region103: #{vit_forward.1} parent=11 // pred_region
        _
      $region104: #{vit_forward.1} parent=11 // pred_fallthru
        _
    $region12: #{vit_forward.1} parent=5 // pred_fallthru
      _
    %p649 = scmp.lt.s32.totalorder %s30, 2
    // Predicated region
    $region105: #{vit_forward.1} parent=5 // pred_check
      %p650 = pneg %p649
    $region106: #{vit_forward.1} parent=5 // pred_check_branch
      %652 = sbr.rel (%p650) target = $region108
    $region107: #{vit_forward.1} parent=5 // pred_region
      // Predicated region
      $region109: #{vit_forward.1} parent=107 // pred_check
        %p653 = pneg %p50
      $region110: #{vit_forward.1} parent=107 // pred_check_branch
        %655 = sbr.rel (%p653) target = $region112
      $region111: #{vit_forward.1} parent=107 // pred_region
        %p656 = scmp.lt.s32.totalorder %s30, 1
        %s657 = scalar_select %p656, %s30, 1
        %s658 = smul.addr %s657, 2
        %s659 = smul.addr %s658, 4
        %s660 = scalar_lea.vmem %s0, %s659
      $region112: #{vit_forward.1} parent=107 // pred_fallthru
        _
    $region108: #{vit_forward.1} parent=5 // pred_fallthru
      _
    %p661 = scmp.le.s32.totalorder 1, %s30
    %p662 = scmp.lt.s32.totalorder %s30, 3
    %p663 = pnand %p661, %p662
    %p664 = pneg %p663
    // Predicated region
    $region113: #{vit_forward.1} parent=5 // pred_check
      _
    $region114: #{vit_forward.1} parent=5 // pred_check_branch
      %666 = sbr.rel (%p663) target = $region116
    $region115: #{vit_forward.1} parent=5 // pred_region
      %s667 = ssub.s32 %s30, 1
      %p668 = scmp.lt.s32.totalorder %s35, 1
      %s669 = scalar_select %p668, %s35, 1
      %s670 = smul.addr %s669, 2
      %s671 = smul.addr %s670, 4
      %s672 = scalar_lea.vmem %s0, %s671
      %p673 = pneg %p56
      %p674 = pneg %p53
      %p675 = pneg %p77
      %p676 = pneg %p74
      %p677 = pneg %p98
      %p678 = pneg %p95
      %p679 = pneg %p119
      %p680 = pneg %p116
      %p681 = pneg %p140
      %p682 = pneg %p137
      %p683 = pneg %p161
      %p684 = pneg %p158
      %p685 = pneg %p182
      %p686 = pneg %p179
      %p687 = pneg %p203
      %p688 = pneg %p200
      %p689 = pneg %p224
      %p690 = pneg %p221
      %p691 = pneg %p245
      %p692 = pneg %p242
      %p693 = pneg %p266
      %p694 = pneg %p263
      %p695 = pneg %p287
      %p696 = pneg %p284
      %p697 = pneg %p308
      %p698 = pneg %p305
      %p699 = pneg %p329
      %p700 = pneg %p326
      %p701 = pneg %p350
      %p702 = pneg %p347
      %p703 = pneg %p371
      %p704 = pneg %p368
      %p705 = pneg %p392
      %p706 = pneg %p389
      %p707 = pneg %p413
      %p708 = pneg %p410
      %p709 = pneg %p434
      %p710 = pneg %p431
      %p711 = pneg %p455
      %p712 = pneg %p452
      %p713 = pneg %p476
      %p714 = pneg %p473
      %p715 = pneg %p497
      %p716 = pneg %p494
      %p717 = pneg %p518
      %p718 = pneg %p515
      %p719 = pneg %p539
      %p720 = pneg %p536
      %p721 = pneg %p565
      %p722 = pneg %p562
      %p723 = scmp.lt.s32.totalorder %s35, 1
      %s724 = scalar_select %p723, %s35, 1
      %s725 = smul.addr %s724, 4
      %s726 = scalar_lea.vmem %s24, %s725
      %p727 = scmp.lt.s32.totalorder %s35, 1
      %s728 = scalar_select %p727, %s35, 1
      %s729 = smul.addr %s728, 2
      %s730 = smul.addr %s729, 4
      %s731 = scalar_lea.vmem %s0, %s730
      %p732 = scmp.lt.s32.totalorder %s35, 1
      %s733 = scalar_select %p732, %s35, 1
      %s734 = smul.addr %s733, 4
      %s735 = scalar_lea.vmem %s24, %s734
      %v736 = vld [vmem:[%s731] sm:$0xff]
      %v737 = vld [vmem:[%s3] sm:$0x3]
      %v738 = vld [vmem:[%s4] sm:$0x3]
      %740 = vst [vmem:[#allocation1] ss:$2 sm:$0xff] %v736
      %v741 = vld.sshfl [vmem:[#allocation1] sm:$0xff pattern:$0x75316420]
      %v742 = vld.sshfl [vmem:[#allocation1 + $0x8] sm:$0xff pattern:$0x75316420]
      %vm745 = vcmask 1043456
      %v746 = vsel %vm745, %v741, 0.0
      %v747 = vsel %vm745, %v742, 0.0
      %v748 = vadd.f32 %v746, %v747
      %749 = vadd.xlane.f32.xlu0 %v748
      %v750 = vpop.xlane.xlu0 %749
      %v751 = vrcp.pop 256.0
      %v752 = vmul.f32 256.0, %v751
      %v753 = vsub.f32 1.0, %v752
      %v754 = vmul.f32 %v751, %v753
      %v755 = vadd.f32 %v751, %v754
      %vm756 = vweird.f32 %v751
      %v757 = vsel %vm756, %v751, %v755
      %v758 = vmul.f32 %v750, %v757
      %v761 = vunpack.c.l.s4 839922192
      %v762 = vunpack.c.0.s8 %v761
      %v763 = vperm.slane %v758, %v762
      %v765 = vsub.f32 %v736, %v763
      %v766 = vmul.f32 %v765, %v765
      %768 = vst [vmem:[#allocation1] ss:$2 sm:$0xff] %v766
      %v769 = vld.sshfl [vmem:[#allocation1] sm:$0xff pattern:$0x75316420]
      %v770 = vld.sshfl [vmem:[#allocation1 + $0x8] sm:$0xff pattern:$0x75316420]
      %v773 = vsel %vm745, %v769, 0.0
      %v774 = vsel %vm745, %v770, 0.0
      %v775 = vadd.f32 %v773, %v774
      %776 = vadd.xlane.f32.xlu0 %v775
      %v777 = vpop.xlane.xlu0 %776
      %v778 = vmul.f32 %v777, %v757
      %v779 = vadd.f32 %v778, 1e-05
      %v780 = vrsqrt.pop %v779
      %v781 = vmul.f32 %v780, %v779
      %v782 = vmul.f32 %v781, %v780
      %v783 = vmul.f32 0.5, %v782
      %v784 = vsub.f32 1.5, %v783
      %v785 = vmul.f32 %v780, %v784
      %vm786 = vweird.f32 %v779
      %vm787 = vweird.f32 %v780
      %vm788 = vmor %vm786, %vm787
      %v789 = vsel %vm788, %v780, %v785
      %v792 = vunpack.c.l.s4 839922192
      %v793 = vunpack.c.0.s8 %v792
      %v794 = vperm.slane %v789, %v793
      %v796 = vmul.f32 %v765, %v794
      %v798 = vperm.slane %v737, 0
      %v799 = vperm.slane %v737, 1
      %v800 = vrot.slane %v799, 4
      %v801 = vsel %vm745, %v798, %v800
      %v803 = vmul.f32 %v796, %v801
      %v805 = vperm.slane %v738, 0
      %v806 = vperm.slane %v738, 1
      %v807 = vrot.slane %v806, 4
      %v808 = vsel %vm745, %v805, %v807
      %v810 = vadd.f32 %v803, %v808
      %v811 = vld [vmem:[%s5] sm:$0xff]
      %v812 = vld [vmem:[%s5 + $0x8] sm:$0xff]
      %v813 = vld [vmem:[%s5 + $0x10] sm:$0xff]
      %v814 = vld [vmem:[%s5 + $0x18] sm:$0xff]
      %v815 = vld [vmem:[%s5 + $0x20] sm:$0xff]
      %v816 = vld [vmem:[%s5 + $0x28] sm:$0xff]
      %v817 = vld [vmem:[%s5 + $0x30] sm:$0xff]
      %v818 = vld [vmem:[%s5 + $0x38] sm:$0xff]
      %v819 = vld [vmem:[%s5 + $0x40] sm:$0xff]
      %v820 = vld [vmem:[%s5 + $0x48] sm:$0xff]
      %v821 = vld [vmem:[%s5 + $0x50] sm:$0xff]
      %v822 = vld [vmem:[%s5 + $0x58] sm:$0xff]
      %v823 = vld [vmem:[%s5 + $0x60] sm:$0xff]
      %v824 = vld [vmem:[%s5 + $0x68] sm:$0xff]
      %v825 = vld [vmem:[%s5 + $0x70] sm:$0xff]
      %v826 = vld [vmem:[%s5 + $0x78] sm:$0xff]
      %v827 = vld [vmem:[%s5 + $0x80] sm:$0xff]
      %v828 = vld [vmem:[%s5 + $0x88] sm:$0xff]
      %v829 = vld [vmem:[%s5 + $0x90] sm:$0xff]
      %v830 = vld [vmem:[%s5 + $0x98] sm:$0xff]
      %v831 = vld [vmem:[%s5 + $0xa0] sm:$0xff]
      %v832 = vld [vmem:[%s5 + $0xa8] sm:$0xff]
      %v833 = vld [vmem:[%s5 + $0xb0] sm:$0xff]
      %v834 = vld [vmem:[%s5 + $0xb8] sm:$0xff]
      %v835 = vld [vmem:[%s5 + $0xc0] sm:$0xff]
      %v836 = vld [vmem:[%s5 + $0xc8] sm:$0xff]
      %v837 = vld [vmem:[%s5 + $0xd0] sm:$0xff]
      %v838 = vld [vmem:[%s5 + $0xd8] sm:$0xff]
      %v839 = vld [vmem:[%s5 + $0xe0] sm:$0xff]
      %v840 = vld [vmem:[%s5 + $0xe8] sm:$0xff]
      %v841 = vld [vmem:[%s5 + $0xf0] sm:$0xff]
      %v842 = vld [vmem:[%s5 + $0xf8] sm:$0xff]
      %v843 = vld [vmem:[%s6] sm:$0x1]
      %v845 = vperm.slane %v843, 0
      %848 = vst [vmem:[#allocation1] ss:$2 sm:$0xff] %v810
      %v849 = vld.sshfl [vmem:[#allocation1] sm:$0xff pattern:$0x75316420]
      %v850 = vld.sshfl [vmem:[#allocation1 + $0x8] sm:$0xff pattern:$0x75316420]
      %853 = vmatpush.msra.mxu0 %v826
      %854 = vmatpush.msra.mxu0 %v825
      %855 = vmatpush.msra.mxu0 %v824
      %856 = vmatpush.msra.mxu0 %v823
      %857 = vmatpush.msra.mxu0 %v822
      %858 = vmatpush.msra.mxu0 %v821
      %859 = vmatpush.msra.mxu0 %v820
      %860 = vmatpush.msra.mxu0 %v819
      %861 = vmatpush.msra.mxu0 %v818
      %862 = vmatpush.msra.mxu0 %v817
      %863 = vmatpush.msra.mxu0 %v816
      %864 = vmatpush.msra.mxu0 %v815
      %865 = vmatpush.msra.mxu0 %v814
      %866 = vmatpush.msra.mxu0 %v813
      %867 = vmatpush.msra.mxu0 %v812
      %868 = vmatpush.msra.mxu0 %v811
      %869 = vmatmul.f32.gmra.mxu0 %v849
      %v870 = vpop.f32.mrf.mxu0
      %v871 = vadd.f32 %v845, %v870
      %872 = vdwg.mxu0
      %873 = vmatpush.msra.mxu0 %v842
      %874 = vmatpush.msra.mxu0 %v841
      %875 = vmatpush.msra.mxu0 %v840
      %876 = vmatpush.msra.mxu0 %v839
      %877 = vmatpush.msra.mxu0 %v838
      %878 = vmatpush.msra.mxu0 %v837
      %879 = vmatpush.msra.mxu0 %v836
      %880 = vmatpush.msra.mxu0 %v835
      %881 = vmatpush.msra.mxu0 %v834
      %882 = vmatpush.msra.mxu0 %v833
      %883 = vmatpush.msra.mxu0 %v832
      %884 = vmatpush.msra.mxu0 %v831
      %885 = vmatpush.msra.mxu0 %v830
      %886 = vmatpush.msra.mxu0 %v829
      %887 = vmatpush.msra.mxu0 %v828
      %888 = vmatpush.msra.mxu0 %v827
      %889 = vmatmul.f32.gmra.mxu0 %v850
      %v890 = vpop.f32.mrf.mxu0
      %v891 = vadd.f32 %v871, %v890
      %892 = vdwg.mxu0
      %v893 = vld [vmem:[%s7] sm:$0x1]
      %v894 = vld [vmem:[%s8] sm:$0x1]
      %vm895 = vcmask 257024
      %v896 = vsel %vm895, %v891, 0.0
      %897 = vadd.xlane.f32.xlu0 %v896
      %v898 = vpop.xlane.xlu0 %897
      %v899 = vrcp.pop 32.0
      %v900 = vmul.f32 32.0, %v899
      %v901 = vsub.f32 1.0, %v900
      %v902 = vmul.f32 %v899, %v901
      %v903 = vadd.f32 %v899, %v902
      %vm904 = vweird.f32 %v899
      %v905 = vsel %vm904, %v899, %v903
      %v906 = vmul.f32 %v898, %v905
      %v907 = vsub.f32 %v891, %v906
      %v908 = vmul.f32 %v907, %v907
      %v909 = vsel %vm895, %v908, 0.0
      %910 = vadd.xlane.f32.xlu0 %v909
      %v911 = vpop.xlane.xlu0 %910
      %v912 = vmul.f32 %v911, %v905
      %v913 = vadd.f32 %v912, 1e-05
      %v914 = vrsqrt.pop %v913
      %v915 = vmul.f32 %v914, %v913
      %v916 = vmul.f32 %v915, %v914
      %v917 = vmul.f32 0.5, %v916
      %v918 = vsub.f32 1.5, %v917
      %v919 = vmul.f32 %v914, %v918
      %vm920 = vweird.f32 %v913
      %vm921 = vweird.f32 %v914
      %vm922 = vmor %vm920, %vm921
      %v923 = vsel %vm922, %v914, %v919
      %v924 = vmul.f32 %v907, %v923
      %v926 = vperm.slane %v893, 0
      %v928 = vmul.f32 %v924, %v926
      %v930 = vperm.slane %v894, 0
      %v932 = vadd.f32 %v928, %v930
      %v933 = vld [vmem:[%s1] sm:$0x1]
      %v935 = vrot.slane %v932, 7
      %vm937 = vcmask 1040384
      %v938 = vsel %vm937, %v933, %v935
      %v939 = vld [vmem:[%s2] sm:$0x1f]
      %v940 = vadd.f32 %v938, %v939
      %v941 = vld [vmem:[%s9] sm:$0x1]
      %v942 = vld [vmem:[%s10] sm:$0x1]
      %vm943 = vcmask 258048
      %v944 = vsel %vm943, %v940, 0.0
      %945 = vadd.xlane.f32.xlu0 %v944
      %v946 = vpop.xlane.xlu0 %945
      %v947 = vmul.f32 %v946, %v905
      %v948 = vsub.f32 %v940, %v947
      %v949 = vmul.f32 %v948, %v948
      %v950 = vsel %vm943, %v949, 0.0
      %951 = vadd.xlane.f32.xlu0 %v950
      %v952 = vpop.xlane.xlu0 %951
      %v953 = vmul.f32 %v952, %v905
      %v954 = vadd.f32 %v953, 1e-05
      %v955 = vrsqrt.pop %v954
      %v956 = vmul.f32 %v955, %v954
      %v957 = vmul.f32 %v956, %v955
      %v958 = vmul.f32 0.5, %v957
      %v959 = vsub.f32 1.5, %v958
      %v960 = vmul.f32 %v955, %v959
      %vm961 = vweird.f32 %v954
      %vm962 = vweird.f32 %v955
      %vm963 = vmor %vm961, %vm962
      %v964 = vsel %vm963, %v955, %v960
      %v965 = vmul.f32 %v948, %v964
      %v967 = vperm.slane %v941, 0
      %v969 = vmul.f32 %v965, %v967
      %v971 = vperm.slane %v942, 0
      %v973 = vadd.f32 %v969, %v971
      %v974 = vld [vmem:[%s11] sm:$0xff]
      %v975 = vld [vmem:[%s11 + $0x8] sm:$0xff]
      %v976 = vld [vmem:[%s11 + $0x10] sm:$0xff]
      %v977 = vld [vmem:[%s11 + $0x18] sm:$0xff]
      %v978 = vld [vmem:[%s11 + $0x20] sm:$0xff]
      %v979 = vld [vmem:[%s11 + $0x28] sm:$0xff]
      %v980 = vld [vmem:[%s11 + $0x30] sm:$0xff]
      %v981 = vld [vmem:[%s11 + $0x38] sm:$0xff]
      %v982 = vld [vmem:[%s11 + $0x40] sm:$0xff]
      %v983 = vld [vmem:[%s11 + $0x48] sm:$0xff]
      %v984 = vld [vmem:[%s11 + $0x50] sm:$0xff]
      %v985 = vld [vmem:[%s11 + $0x58] sm:$0xff]
      %v986 = vld [vmem:[%s11 + $0x60] sm:$0xff]
      %v987 = vld [vmem:[%s11 + $0x68] sm:$0xff]
      %v988 = vld [vmem:[%s11 + $0x70] sm:$0xff]
      %v989 = vld [vmem:[%s11 + $0x78] sm:$0xff]
      %v990 = vld [vmem:[%s11 + $0x80] sm:$0xff]
      %v991 = vld [vmem:[%s11 + $0x88] sm:$0xff]
      %v992 = vld [vmem:[%s11 + $0x90] sm:$0xff]
      %v993 = vld [vmem:[%s11 + $0x98] sm:$0xff]
      %v994 = vld [vmem:[%s11 + $0xa0] sm:$0xff]
      %v995 = vld [vmem:[%s11 + $0xa8] sm:$0xff]
      %v996 = vld [vmem:[%s11 + $0xb0] sm:$0xff]
      %v997 = vld [vmem:[%s11 + $0xb8] sm:$0xff]
      %vm998 = vcmask 261120
      %v1000 = vsel %vm998, %v973, 0
      %1002 = vmatpush.msra.mxu0 0.0
      %1003 = vmatpush.msra.mxu0 0.0
      %1004 = vmatpush.msra.mxu0 0.0
      %1005 = vmatpush.msra.mxu0 0.0
      %1006 = vmatpush.msra.mxu0 0.0
      %1007 = vmatpush.msra.mxu0 0.0
      %1008 = vmatpush.msra.mxu0 0.0
      %1009 = vmatpush.msra.mxu0 0.0
      %1010 = vmatpush.msra.mxu0 0.0
      %1011 = vmatpush.msra.mxu0 0.0
      %1012 = vmatpush.msra.mxu0 0.0
      %1013 = vmatpush.msra.mxu0 0.0
      %1014 = vmatpush.msra.mxu0 %v992
      %1015 = vmatpush.msra.mxu0 %v986
      %1016 = vmatpush.msra.mxu0 %v980
      %1017 = vmatpush.msra.mxu0 %v974
      %1018 = vmatmul.f32.gmra.mxu0 %v1000
      %v1019 = vpop.f32.mrf.mxu0
      %v1020 = vadd.f32 0.0, %v1019
      %1021 = vdwg.mxu0
      %1022 = vmatpush.msra.mxu0 0.0
      %1023 = vmatpush.msra.mxu0 0.0
      %1024 = vmatpush.msra.mxu0 0.0
      %1025 = vmatpush.msra.mxu0 0.0
      %1026 = vmatpush.msra.mxu0 0.0
      %1027 = vmatpush.msra.mxu0 0.0
      %1028 = vmatpush.msra.mxu0 0.0
      %1029 = vmatpush.msra.mxu0 0.0
      %1030 = vmatpush.msra.mxu0 0.0
      %1031 = vmatpush.msra.mxu0 0.0
      %1032 = vmatpush.msra.mxu0 0.0
      %1033 = vmatpush.msra.mxu0 0.0
      %1034 = vmatpush.msra.mxu0 %v993
      %1035 = vmatpush.msra.mxu0 %v987
      %1036 = vmatpush.msra.mxu0 %v981
      %1037 = vmatpush.msra.mxu0 %v975
      %1038 = vmatmul.f32.gmra.mxu0 %v1000
      %v1039 = vpop.f32.mrf.mxu0
      %v1040 = vadd.f32 0.0, %v1039
      %1041 = vdwg.mxu0
      %1042 = vmatpush.msra.mxu0 0.0
      %1043 = vmatpush.msra.mxu0 0.0
      %1044 = vmatpush.msra.mxu0 0.0
      %1045 = vmatpush.msra.mxu0 0.0
      %1046 = vmatpush.msra.mxu0 0.0
      %1047 = vmatpush.msra.mxu0 0.0
      %1048 = vmatpush.msra.mxu0 0.0
      %1049 = vmatpush.msra.mxu0 0.0
      %1050 = vmatpush.msra.mxu0 0.0
      %1051 = vmatpush.msra.mxu0 0.0
      %1052 = vmatpush.msra.mxu0 0.0
      %1053 = vmatpush.msra.mxu0 0.0
      %1054 = vmatpush.msra.mxu0 %v994
      %1055 = vmatpush.msra.mxu0 %v988
      %1056 = vmatpush.msra.mxu0 %v982
      %1057 = vmatpush.msra.mxu0 %v976
      %1058 = vmatmul.f32.gmra.mxu0 %v1000
      %v1059 = vpop.f32.mrf.mxu0
      %v1060 = vadd.f32 0.0, %v1059
      %1061 = vdwg.mxu0
      %1062 = vmatpush.msra.mxu0 0.0
      %1063 = vmatpush.msra.mxu0 0.0
      %1064 = vmatpush.msra.mxu0 0.0
      %1065 = vmatpush.msra.mxu0 0.0
      %1066 = vmatpush.msra.mxu0 0.0
      %1067 = vmatpush.msra.mxu0 0.0
      %1068 = vmatpush.msra.mxu0 0.0
      %1069 = vmatpush.msra.mxu0 0.0
      %1070 = vmatpush.msra.mxu0 0.0
      %1071 = vmatpush.msra.mxu0 0.0
      %1072 = vmatpush.msra.mxu0 0.0
      %1073 = vmatpush.msra.mxu0 0.0
      %1074 = vmatpush.msra.mxu0 %v995
      %1075 = vmatpush.msra.mxu0 %v989
      %1076 = vmatpush.msra.mxu0 %v983
      %1077 = vmatpush.msra.mxu0 %v977
      %1078 = vmatmul.f32.gmra.mxu0 %v1000
      %v1079 = vpop.f32.mrf.mxu0
      %v1080 = vadd.f32 0.0, %v1079
      %1081 = vdwg.mxu0
      %1082 = vmatpush.msra.mxu0 0.0
      %1083 = vmatpush.msra.mxu0 0.0
      %1084 = vmatpush.msra.mxu0 0.0
      %1085 = vmatpush.msra.mxu0 0.0
      %1086 = vmatpush.msra.mxu0 0.0
      %1087 = vmatpush.msra.mxu0 0.0
      %1088 = vmatpush.msra.mxu0 0.0
      %1089 = vmatpush.msra.mxu0 0.0
      %1090 = vmatpush.msra.mxu0 0.0
      %1091 = vmatpush.msra.mxu0 0.0
      %1092 = vmatpush.msra.mxu0 0.0
      %1093 = vmatpush.msra.mxu0 0.0
      %1094 = vmatpush.msra.mxu0 %v996
      %1095 = vmatpush.msra.mxu0 %v990
      %1096 = vmatpush.msra.mxu0 %v984
      %1097 = vmatpush.msra.mxu0 %v978
      %1098 = vmatmul.f32.gmra.mxu0 %v1000
      %v1099 = vpop.f32.mrf.mxu0
      %v1100 = vadd.f32 0.0, %v1099
      %1101 = vdwg.mxu0
      %1102 = vmatpush.msra.mxu0 0.0
      %1103 = vmatpush.msra.mxu0 0.0
      %1104 = vmatpush.msra.mxu0 0.0
      %1105 = vmatpush.msra.mxu0 0.0
      %1106 = vmatpush.msra.mxu0 0.0
      %1107 = vmatpush.msra.mxu0 0.0
      %1108 = vmatpush.msra.mxu0 0.0
      %1109 = vmatpush.msra.mxu0 0.0
      %1110 = vmatpush.msra.mxu0 0.0
      %1111 = vmatpush.msra.mxu0 0.0
      %1112 = vmatpush.msra.mxu0 0.0
      %1113 = vmatpush.msra.mxu0 0.0
      %1114 = vmatpush.msra.mxu0 %v997
      %1115 = vmatpush.msra.mxu0 %v991
      %1116 = vmatpush.msra.mxu0 %v985
      %1117 = vmatpush.msra.mxu0 %v979
      %1118 = vmatmul.f32.gmra.mxu0 %v1000
      %v1119 = vpop.f32.mrf.mxu0
      %v1120 = vadd.f32 0.0, %v1119
      %1121 = vdwg.mxu0
      %vm1122 = vcmask 523264
      %v1124 = vsel %vm1122, %v1020, 0
      %v1127 = vsel %vm1122, %v1060, 0
      %1129 = vmatpush.xpose.msra.mxu0 0.0
      %1130 = vmatpush.xpose.msra.mxu0 0.0
      %1131 = vmatpush.xpose.msra.mxu0 0.0
      %1132 = vmatpush.xpose.msra.mxu0 0.0
      %1133 = vmatpush.xpose.msra.mxu0 0.0
      %1134 = vmatpush.xpose.msra.mxu0 0.0
      %1135 = vmatpush.xpose.msra.mxu0 0.0
      %1136 = vmatpush.xpose.msra.mxu0 0.0
      %1137 = vmatpush.xpose.msra.mxu0 0.0
      %1138 = vmatpush.xpose.msra.mxu0 0.0
      %1139 = vmatpush.xpose.msra.mxu0 0.0
      %1140 = vmatpush.xpose.msra.mxu0 0.0
      %1141 = vmatpush.xpose.msra.mxu0 0.0
      %1142 = vmatpush.xpose.msra.mxu0 0.0
      %1143 = vmatpush.xpose.msra.mxu0 0.0
      %1144 = vmatpush.xpose.msra.mxu0 %v1127
      %1145 = vmatmul.f32.gmra.mxu0 %v1124
      %v1146 = vpop.f32.mrf.mxu0
      %v1147 = vadd.f32 0.0, %v1146
      %1148 = vdwg.mxu0
      %v1149 = vmul.f32 %v1147, 0.125
      %vm1150 = vcmask 36864
      %v1151 = vsel %vm1150, %v1149, -inf
      %1152 = vmax.xlane.f32.xlu0 %v1151
      %v1153 = vpop.xlane.xlu0 %1152
      %v1154 = vsub.f32 %v1149, %v1153
      %v1155 = vmul.f32 %v1154, 1.442695
      %v1156 = vpow.pop %v1155
      %v1157 = vsel %vm1150, %v1156, 0.0
      %1158 = vadd.xlane.f32.xlu0 %v1157
      %v1159 = vpop.xlane.xlu0 %1158
      %v1160 = vrcp.pop %v1159
      %v1161 = vmul.f32 %v1159, %v1160
      %v1162 = vsub.f32 1.0, %v1161
      %v1163 = vmul.f32 %v1160, %v1162
      %v1164 = vadd.f32 %v1160, %v1163
      %vm1165 = vweird.f32 %v1159
      %vm1166 = vweird.f32 %v1160
      %vm1167 = vmor %vm1165, %vm1166
      %v1168 = vsel %vm1167, %v1160, %v1164
      %v1169 = vand.u32 2147483647, %v1159
      %vm1170 = vcmp.eq.f32.partialorder %v1169, 8.507059e+37
      %v1171 = vand.u32 %v1159, 2147483648
      %v1172 = vor.u32 1.1754944e-38, %v1171
      %v1173 = vsel %vm1170, %v1172, %v1168
      %v1174 = vmul.f32 %v1156, %v1173
      %vm1175 = vcmask 39936
      %v1177 = vsel %vm1175, %v1174, 0
      %vm1179 = vcmask 1044480
      %v1181 = vsel %vm1179, %v1100, 0
      %1183 = vmatpush.msra.mxu0 0.0
      %1184 = vmatpush.msra.mxu0 0.0
      %1185 = vmatpush.msra.mxu0 0.0
      %1186 = vmatpush.msra.mxu0 0.0
      %1187 = vmatpush.msra.mxu0 0.0
      %1188 = vmatpush.msra.mxu0 0.0
      %1189 = vmatpush.msra.mxu0 0.0
      %1190 = vmatpush.msra.mxu0 0.0
      %1191 = vmatpush.msra.mxu0 0.0
      %1192 = vmatpush.msra.mxu0 0.0
      %1193 = vmatpush.msra.mxu0 0.0
      %1194 = vmatpush.msra.mxu0 0.0
      %1195 = vmatpush.msra.mxu0 0.0
      %1196 = vmatpush.msra.mxu0 0.0
      %1197 = vmatpush.msra.mxu0 0.0
      %1198 = vmatpush.msra.mxu0 %v1181
      %1199 = vmatmul.f32.gmra.mxu0 %v1177
      %v1200 = vpop.f32.mrf.mxu0
      %v1201 = vadd.f32 0.0, %v1200
      %1202 = vdwg.mxu0
      %1203 = vrot.lane.b32.xlu0 %v1020, 64
      %v1204 = vpop.permute.xlu0 %1203
      %1205 = vrot.lane.b32.xlu0 %v1060, 64
      %v1206 = vpop.permute.xlu0 %1205
      %v1207 = vsel %vm1122, %v1204, 0
      %v1209 = vsel %vm1122, %v1206, 0
      %1211 = vmatpush.xpose.msra.mxu0 0.0
      %1212 = vmatpush.xpose.msra.mxu0 0.0
      %1213 = vmatpush.xpose.msra.mxu0 0.0
      %1214 = vmatpush.xpose.msra.mxu0 0.0
      %1215 = vmatpush.xpose.msra.mxu0 0.0
      %1216 = vmatpush.xpose.msra.mxu0 0.0
      %1217 = vmatpush.xpose.msra.mxu0 0.0
      %1218 = vmatpush.xpose.msra.mxu0 0.0
      %1219 = vmatpush.xpose.msra.mxu0 0.0
      %1220 = vmatpush.xpose.msra.mxu0 0.0
      %1221 = vmatpush.xpose.msra.mxu0 0.0
      %1222 = vmatpush.xpose.msra.mxu0 0.0
      %1223 = vmatpush.xpose.msra.mxu0 0.0
      %1224 = vmatpush.xpose.msra.mxu0 0.0
      %1225 = vmatpush.xpose.msra.mxu0 0.0
      %1226 = vmatpush.xpose.msra.mxu0 %v1209
      %1227 = vmatmul.f32.gmra.mxu0 %v1207
      %v1228 = vpop.f32.mrf.mxu0
      %v1229 = vadd.f32 0.0, %v1228
      %1230 = vdwg.mxu0
      %v1231 = vmul.f32 %v1229, 0.125
      %v1232 = vsel %vm1150, %v1231, -inf
      %1233 = vmax.xlane.f32.xlu0 %v1232
      %v1234 = vpop.xlane.xlu0 %1233
      %v1235 = vsub.f32 %v1231, %v1234
      %v1236 = vmul.f32 %v1235, 1.442695
      %v1237 = vpow.pop %v1236
      %v1238 = vsel %vm1150, %v1237, 0.0
      %1239 = vadd.xlane.f32.xlu0 %v1238
      %v1240 = vpop.xlane.xlu0 %1239
      %v1241 = vrcp.pop %v1240
      %v1242 = vmul.f32 %v1240, %v1241
      %v1243 = vsub.f32 1.0, %v1242
      %v1244 = vmul.f32 %v1241, %v1243
      %v1245 = vadd.f32 %v1241, %v1244
      %vm1246 = vweird.f32 %v1240
      %vm1247 = vweird.f32 %v1241
      %vm1248 = vmor %vm1246, %vm1247
      %v1249 = vsel %vm1248, %v1241, %v1245
      %v1250 = vand.u32 2147483647, %v1240
      %vm1251 = vcmp.eq.f32.partialorder %v1250, 8.507059e+37
      %v1252 = vand.u32 %v1240, 2147483648
      %v1253 = vor.u32 1.1754944e-38, %v1252
      %v1254 = vsel %vm1251, %v1253, %v1249
      %v1255 = vmul.f32 %v1237, %v1254
      %1256 = vrot.lane.b32.xlu0 %v1100, 64
      %v1257 = vpop.permute.xlu0 %1256
      %v1259 = vsel %vm1175, %v1255, 0
      %v1261 = vsel %vm1179, %v1257, 0
      %1263 = vmatpush.msra.mxu0 0.0
      %1264 = vmatpush.msra.mxu0 0.0
      %1265 = vmatpush.msra.mxu0 0.0
      %1266 = vmatpush.msra.mxu0 0.0
      %1267 = vmatpush.msra.mxu0 0.0
      %1268 = vmatpush.msra.mxu0 0.0
      %1269 = vmatpush.msra.mxu0 0.0
      %1270 = vmatpush.msra.mxu0 0.0
      %1271 = vmatpush.msra.mxu0 0.0
      %1272 = vmatpush.msra.mxu0 0.0
      %1273 = vmatpush.msra.mxu0 0.0
      %1274 = vmatpush.msra.mxu0 0.0
      %1275 = vmatpush.msra.mxu0 0.0
      %1276 = vmatpush.msra.mxu0 0.0
      %1277 = vmatpush.msra.mxu0 0.0
      %1278 = vmatpush.msra.mxu0 %v1261
      %1279 = vmatmul.f32.gmra.mxu0 %v1259
      %v1280 = vpop.f32.mrf.mxu0
      %v1281 = vadd.f32 0.0, %v1280
      %1282 = vdwg.mxu0
      %v1284 = vsel %vm1122, %v1040, 0
      %v1287 = vsel %vm1122, %v1080, 0
      %1289 = vmatpush.xpose.msra.mxu0 0.0
      %1290 = vmatpush.xpose.msra.mxu0 0.0
      %1291 = vmatpush.xpose.msra.mxu0 0.0
      %1292 = vmatpush.xpose.msra.mxu0 0.0
      %1293 = vmatpush.xpose.msra.mxu0 0.0
      %1294 = vmatpush.xpose.msra.mxu0 0.0
      %1295 = vmatpush.xpose.msra.mxu0 0.0
      %1296 = vmatpush.xpose.msra.mxu0 0.0
      %1297 = vmatpush.xpose.msra.mxu0 0.0
      %1298 = vmatpush.xpose.msra.mxu0 0.0
      %1299 = vmatpush.xpose.msra.mxu0 0.0
      %1300 = vmatpush.xpose.msra.mxu0 0.0
      %1301 = vmatpush.xpose.msra.mxu0 0.0
      %1302 = vmatpush.xpose.msra.mxu0 0.0
      %1303 = vmatpush.xpose.msra.mxu0 0.0
      %1304 = vmatpush.xpose.msra.mxu0 %v1287
      %1305 = vmatmul.f32.gmra.mxu0 %v1284
      %v1306 = vpop.f32.mrf.mxu0
      %v1307 = vadd.f32 0.0, %v1306
      %1308 = vdwg.mxu0
      %v1309 = vmul.f32 %v1307, 0.125
      %v1310 = vsel %vm1150, %v1309, -inf
      %1311 = vmax.xlane.f32.xlu0 %v1310
      %v1312 = vpop.xlane.xlu0 %1311
      %v1313 = vsub.f32 %v1309, %v1312
      %v1314 = vmul.f32 %v1313, 1.442695
      %v1315 = vpow.pop %v1314
      %v1316 = vsel %vm1150, %v1315, 0.0
      %1317 = vadd.xlane.f32.xlu0 %v1316
      %v1318 = vpop.xlane.xlu0 %1317
      %v1319 = vrcp.pop %v1318
      %v1320 = vmul.f32 %v1318, %v1319
      %v1321 = vsub.f32 1.0, %v1320
      %v1322 = vmul.f32 %v1319, %v1321
      %v1323 = vadd.f32 %v1319, %v1322
      %vm1324 = vweird.f32 %v1318
      %vm1325 = vweird.f32 %v1319
      %vm1326 = vmor %vm1324, %vm1325
      %v1327 = vsel %vm1326, %v1319, %v1323
      %v1328 = vand.u32 2147483647, %v1318
      %vm1329 = vcmp.eq.f32.partialorder %v1328, 8.507059e+37
      %v1330 = vand.u32 %v1318, 2147483648
      %v1331 = vor.u32 1.1754944e-38, %v1330
      %v1332 = vsel %vm1329, %v1331, %v1327
      %v1333 = vmul.f32 %v1315, %v1332
      %v1335 = vsel %vm1175, %v1333, 0
      %v1338 = vsel %vm1179, %v1120, 0
      %1340 = vmatpush.msra.mxu0 0.0
      %1341 = vmatpush.msra.mxu0 0.0
      %1342 = vmatpush.msra.mxu0 0.0
      %1343 = vmatpush.msra.mxu0 0.0
      %1344 = vmatpush.msra.mxu0 0.0
      %1345 = vmatpush.msra.mxu0 0.0
      %1346 = vmatpush.msra.mxu0 0.0
      %1347 = vmatpush.msra.mxu0 0.0
      %1348 = vmatpush.msra.mxu0 0.0
      %1349 = vmatpush.msra.mxu0 0.0
      %1350 = vmatpush.msra.mxu0 0.0
      %1351 = vmatpush.msra.mxu0 0.0
      %1352 = vmatpush.msra.mxu0 0.0
      %1353 = vmatpush.msra.mxu0 0.0
      %1354 = vmatpush.msra.mxu0 0.0
      %1355 = vmatpush.msra.mxu0 %v1338
      %1356 = vmatmul.f32.gmra.mxu0 %v1335
      %v1357 = vpop.f32.mrf.mxu0
      %v1358 = vadd.f32 0.0, %v1357
      %1359 = vdwg.mxu0
      %1360 = vrot.lane.b32.xlu0 %v1040, 64
      %v1361 = vpop.permute.xlu0 %1360
      %1362 = vrot.lane.b32.xlu0 %v1080, 64
      %v1363 = vpop.permute.xlu0 %1362
      %v1364 = vsel %vm1122, %v1361, 0
      %v1366 = vsel %vm1122, %v1363, 0
      %1368 = vmatpush.xpose.msra.mxu0 0.0
      %1369 = vmatpush.xpose.msra.mxu0 0.0
      %1370 = vmatpush.xpose.msra.mxu0 0.0
      %1371 = vmatpush.xpose.msra.mxu0 0.0
      %1372 = vmatpush.xpose.msra.mxu0 0.0
      %1373 = vmatpush.xpose.msra.mxu0 0.0
      %1374 = vmatpush.xpose.msra.mxu0 0.0
      %1375 = vmatpush.xpose.msra.mxu0 0.0
      %1376 = vmatpush.xpose.msra.mxu0 0.0
      %1377 = vmatpush.xpose.msra.mxu0 0.0
      %1378 = vmatpush.xpose.msra.mxu0 0.0
      %1379 = vmatpush.xpose.msra.mxu0 0.0
      %1380 = vmatpush.xpose.msra.mxu0 0.0
      %1381 = vmatpush.xpose.msra.mxu0 0.0
      %1382 = vmatpush.xpose.msra.mxu0 0.0
      %1383 = vmatpush.xpose.msra.mxu0 %v1366
      %1384 = vmatmul.f32.gmra.mxu0 %v1364
      %v1385 = vpop.f32.mrf.mxu0
      %v1386 = vadd.f32 0.0, %v1385
      %1387 = vdwg.mxu0
      %v1388 = vmul.f32 %v1386, 0.125
      %v1389 = vsel %vm1150, %v1388, -inf
      %1390 = vmax.xlane.f32.xlu0 %v1389
      %v1391 = vpop.xlane.xlu0 %1390
      %v1392 = vsub.f32 %v1388, %v1391
      %v1393 = vmul.f32 %v1392, 1.442695
      %v1394 = vpow.pop %v1393
      %v1395 = vsel %vm1150, %v1394, 0.0
      %1396 = vadd.xlane.f32.xlu0 %v1395
      %v1397 = vpop.xlane.xlu0 %1396
      %v1398 = vrcp.pop %v1397
      %v1399 = vmul.f32 %v1397, %v1398
      %v1400 = vsub.f32 1.0, %v1399
      %v1401 = vmul.f32 %v1398, %v1400
      %v1402 = vadd.f32 %v1398, %v1401
      %vm1403 = vweird.f32 %v1397
      %vm1404 = vweird.f32 %v1398
      %vm1405 = vmor %vm1403, %vm1404
      %v1406 = vsel %vm1405, %v1398, %v1402
      %v1407 = vand.u32 2147483647, %v1397
      %vm1408 = vcmp.eq.f32.partialorder %v1407, 8.507059e+37
      %v1409 = vand.u32 %v1397, 2147483648
      %v1410 = vor.u32 1.1754944e-38, %v1409
      %v1411 = vsel %vm1408, %v1410, %v1406
      %v1412 = vmul.f32 %v1394, %v1411
      %1413 = vrot.lane.b32.xlu0 %v1120, 64
      %v1414 = vpop.permute.xlu0 %1413
      %v1416 = vsel %vm1175, %v1412, 0
      %v1418 = vsel %vm1179, %v1414, 0
      %1420 = vmatpush.msra.mxu0 0.0
      %1421 = vmatpush.msra.mxu0 0.0
      %1422 = vmatpush.msra.mxu0 0.0
      %1423 = vmatpush.msra.mxu0 0.0
      %1424 = vmatpush.msra.mxu0 0.0
      %1425 = vmatpush.msra.mxu0 0.0
      %1426 = vmatpush.msra.mxu0 0.0
      %1427 = vmatpush.msra.mxu0 0.0
      %1428 = vmatpush.msra.mxu0 0.0
      %1429 = vmatpush.msra.mxu0 0.0
      %1430 = vmatpush.msra.mxu0 0.0
      %1431 = vmatpush.msra.mxu0 0.0
      %1432 = vmatpush.msra.mxu0 0.0
      %1433 = vmatpush.msra.mxu0 0.0
      %1434 = vmatpush.msra.mxu0 0.0
      %1435 = vmatpush.msra.mxu0 %v1418
      %1436 = vmatmul.f32.gmra.mxu0 %v1416
      %v1437 = vpop.f32.mrf.mxu0
      %v1438 = vadd.f32 0.0, %v1437
      %1439 = vdwg.mxu0
      %1441 = vrot.lane.b32.xlu0 %v1281, 64
      %v1442 = vpop.permute.xlu0 %1441
      %1445 = vrot.lane.b32.xlu0 %v1438, 64
      %v1446 = vpop.permute.xlu0 %1445
      %v1448 = vsel %vm1122, %v1201, %v1442
      %v1449 = vsel %vm1122, %v1358, %v1446
      %v1450 = vld [vmem:[%s12] sm:$0xff]
      %v1451 = vld [vmem:[%s12 + $0x8] sm:$0xff]
      %v1452 = vld [vmem:[%s12 + $0x10] sm:$0xff]
      %v1453 = vld [vmem:[%s12 + $0x18] sm:$0xff]
      %v1454 = vld [vmem:[%s12 + $0x20] sm:$0xff]
      %v1455 = vld [vmem:[%s12 + $0x28] sm:$0xff]
      %v1456 = vld [vmem:[%s12 + $0x30] sm:$0xff]
      %v1457 = vld [vmem:[%s12 + $0x38] sm:$0xff]
      %v1458 = vld [vmem:[%s12 + $0x40] sm:$0xff]
      %v1459 = vld [vmem:[%s12 + $0x48] sm:$0xff]
      %v1460 = vld [vmem:[%s12 + $0x50] sm:$0xff]
      %v1461 = vld [vmem:[%s12 + $0x58] sm:$0xff]
      %v1462 = vld [vmem:[%s12 + $0x60] sm:$0xff]
      %v1463 = vld [vmem:[%s12 + $0x68] sm:$0xff]
      %v1464 = vld [vmem:[%s12 + $0x70] sm:$0xff]
      %v1465 = vld [vmem:[%s12 + $0x78] sm:$0xff]
      %v1466 = vld [vmem:[%s12 + $0x80] sm:$0xff]
      %v1467 = vld [vmem:[%s12 + $0x88] sm:$0xff]
      %v1468 = vld [vmem:[%s12 + $0x90] sm:$0xff]
      %v1469 = vld [vmem:[%s12 + $0x98] sm:$0xff]
      %v1470 = vld [vmem:[%s12 + $0xa0] sm:$0xff]
      %v1471 = vld [vmem:[%s12 + $0xa8] sm:$0xff]
      %v1472 = vld [vmem:[%s12 + $0xb0] sm:$0xff]
      %v1473 = vld [vmem:[%s12 + $0xb8] sm:$0xff]
      %v1474 = vld [vmem:[%s12 + $0xc0] sm:$0xff]
      %v1475 = vld [vmem:[%s12 + $0xc8] sm:$0xff]
      %v1476 = vld [vmem:[%s12 + $0xd0] sm:$0xff]
      %v1477 = vld [vmem:[%s12 + $0xd8] sm:$0xff]
      %v1478 = vld [vmem:[%s12 + $0xe0] sm:$0xff]
      %v1479 = vld [vmem:[%s12 + $0xe8] sm:$0xff]
      %v1480 = vld [vmem:[%s12 + $0xf0] sm:$0xff]
      %v1481 = vld [vmem:[%s12 + $0xf8] sm:$0xff]
      %1482 = vmatpush.msra.mxu0 %v1465
      %1483 = vmatpush.msra.mxu0 %v1464
      %1484 = vmatpush.msra.mxu0 %v1463
      %1485 = vmatpush.msra.mxu0 %v1462
      %1486 = vmatpush.msra.mxu0 %v1461
      %1487 = vmatpush.msra.mxu0 %v1460
      %1488 = vmatpush.msra.mxu0 %v1459
      %1489 = vmatpush.msra.mxu0 %v1458
      %1490 = vmatpush.msra.mxu0 %v1457
      %1491 = vmatpush.msra.mxu0 %v1456
      %1492 = vmatpush.msra.mxu0 %v1455
      %1493 = vmatpush.msra.mxu0 %v1454
      %1494 = vmatpush.msra.mxu0 %v1453
      %1495 = vmatpush.msra.mxu0 %v1452
      %1496 = vmatpush.msra.mxu0 %v1451
      %1497 = vmatpush.msra.mxu0 %v1450
      %1498 = vmatmul.f32.gmra.mxu0 %v1448
      %v1499 = vpop.f32.mrf.mxu0
      %v1500 = vadd.f32 0.0, %v1499
      %1501 = vdwg.mxu0
      %1502 = vmatpush.msra.mxu0 %v1481
      %1503 = vmatpush.msra.mxu0 %v1480
      %1504 = vmatpush.msra.mxu0 %v1479
      %1505 = vmatpush.msra.mxu0 %v1478
      %1506 = vmatpush.msra.mxu0 %v1477
      %1507 = vmatpush.msra.mxu0 %v1476
      %1508 = vmatpush.msra.mxu0 %v1475
      %1509 = vmatpush.msra.mxu0 %v1474
      %1510 = vmatpush.msra.mxu0 %v1473
      %1511 = vmatpush.msra.mxu0 %v1472
      %1512 = vmatpush.msra.mxu0 %v1471
      %1513 = vmatpush.msra.mxu0 %v1470
      %1514 = vmatpush.msra.mxu0 %v1469
      %1515 = vmatpush.msra.mxu0 %v1468
      %1516 = vmatpush.msra.mxu0 %v1467
      %1517 = vmatpush.msra.mxu0 %v1466
      %1518 = vmatmul.f32.gmra.mxu0 %v1449
      %v1519 = vpop.f32.mrf.mxu0
      %v1520 = vadd.f32 %v1500, %v1519
      %1521 = vdwg.mxu0
      %v1522 = vadd.f32 %v940, %v1520
      %v1523 = vld [vmem:[%s13] sm:$0x1]
      %v1525 = vperm.slane %v1523, 0
      %v1527 = vadd.f32 %v1522, %v1525
      %v1528 = vld [vmem:[%s14] sm:$0x1]
      %v1529 = vld [vmem:[%s15] sm:$0x1]
      %v1530 = vsel %vm943, %v1527, 0.0
      %1531 = vadd.xlane.f32.xlu0 %v1530
      %v1532 = vpop.xlane.xlu0 %1531
      %v1533 = vmul.f32 %v1532, %v905
      %v1534 = vsub.f32 %v1527, %v1533
      %v1535 = vmul.f32 %v1534, %v1534
      %v1536 = vsel %vm943, %v1535, 0.0
      %1537 = vadd.xlane.f32.xlu0 %v1536
      %v1538 = vpop.xlane.xlu0 %1537
      %v1539 = vmul.f32 %v1538, %v905
      %v1540 = vadd.f32 %v1539, 1e-05
      %v1541 = vrsqrt.pop %v1540
      %v1542 = vmul.f32 %v1541, %v1540
      %v1543 = vmul.f32 %v1542, %v1541
      %v1544 = vmul.f32 0.5, %v1543
      %v1545 = vsub.f32 1.5, %v1544
      %v1546 = vmul.f32 %v1541, %v1545
      %vm1547 = vweird.f32 %v1540
      %vm1548 = vweird.f32 %v1541
      %vm1549 = vmor %vm1547, %vm1548
      %v1550 = vsel %vm1549, %v1541, %v1546
      %v1551 = vmul.f32 %v1534, %v1550
      %v1553 = vperm.slane %v1528, 0
      %v1555 = vmul.f32 %v1551, %v1553
      %v1557 = vperm.slane %v1529, 0
      %v1559 = vadd.f32 %v1555, %v1557
      %v1560 = vld [vmem:[%s16] sm:$0xff]
      %v1561 = vld [vmem:[%s16 + $0x8] sm:$0xff]
      %v1562 = vld [vmem:[%s16 + $0x10] sm:$0xff]
      %v1563 = vld [vmem:[%s16 + $0x18] sm:$0xff]
      %v1564 = vld [vmem:[%s17] sm:$0x1]
      %v1566 = vperm.slane %v1564, 0
      %v1569 = vsel %vm998, %v1559, 0
      %1571 = vmatpush.msra.mxu0 0.0
      %1572 = vmatpush.msra.mxu0 0.0
      %1573 = vmatpush.msra.mxu0 0.0
      %1574 = vmatpush.msra.mxu0 0.0
      %1575 = vmatpush.msra.mxu0 0.0
      %1576 = vmatpush.msra.mxu0 0.0
      %1577 = vmatpush.msra.mxu0 0.0
      %1578 = vmatpush.msra.mxu0 0.0
      %1579 = vmatpush.msra.mxu0 0.0
      %1580 = vmatpush.msra.mxu0 0.0
      %1581 = vmatpush.msra.mxu0 0.0
      %1582 = vmatpush.msra.mxu0 0.0
      %1583 = vmatpush.msra.mxu0 %v1563
      %1584 = vmatpush.msra.mxu0 %v1562
      %1585 = vmatpush.msra.mxu0 %v1561
      %1586 = vmatpush.msra.mxu0 %v1560
      %1587 = vmatmul.f32.gmra.mxu0 %v1569
      %v1588 = vpop.f32.mrf.mxu0
      %v1589 = vadd.f32 %v1566, %v1588
      %1590 = vdwg.mxu0
      %v1591 = vmul.f32 %v1589, %v1589
      %v1592 = vmul.f32 %v1589, %v1591
      %v1593 = vmul.f32 %v1592, 0.044715
      %v1594 = vadd.f32 %v1589, %v1593
      %v1595 = vmul.f32 %v1594, 0.7978846
      %v1596 = vtanh.pop %v1595
      %v1597 = vadd.f32 %v1596, 1.0
      %v1598 = vmul.f32 %v1597, 0.5
      %v1599 = vmul.f32 %v1589, %v1598
      %v1600 = vld [vmem:[%s18] sm:$0xff]
      %v1601 = vld [vmem:[%s18 + $0x8] sm:$0xff]
      %v1602 = vld [vmem:[%s18 + $0x10] sm:$0xff]
      %v1603 = vld [vmem:[%s18 + $0x18] sm:$0xff]
      %v1605 = vsel %vm998, %v1599, 0
      %1607 = vmatpush.msra.mxu0 0.0
      %1608 = vmatpush.msra.mxu0 0.0
      %1609 = vmatpush.msra.mxu0 0.0
      %1610 = vmatpush.msra.mxu0 0.0
      %1611 = vmatpush.msra.mxu0 0.0
      %1612 = vmatpush.msra.mxu0 0.0
      %1613 = vmatpush.msra.mxu0 0.0
      %1614 = vmatpush.msra.mxu0 0.0
      %1615 = vmatpush.msra.mxu0 0.0
      %1616 = vmatpush.msra.mxu0 0.0
      %1617 = vmatpush.msra.mxu0 0.0
      %1618 = vmatpush.msra.mxu0 0.0
      %1619 = vmatpush.msra.mxu0 %v1603
      %1620 = vmatpush.msra.mxu0 %v1602
      %1621 = vmatpush.msra.mxu0 %v1601
      %1622 = vmatpush.msra.mxu0 %v1600
      %1623 = vmatmul.f32.gmra.mxu0 %v1605
      %v1624 = vpop.f32.mrf.mxu0
      %v1625 = vadd.f32 0.0, %v1624
      %1626 = vdwg.mxu0
      %v1627 = vadd.f32 %v1527, %v1625
      %v1628 = vld [vmem:[%s19] sm:$0x1]
      %v1630 = vperm.slane %v1628, 0
      %v1632 = vadd.f32 %v1627, %v1630
      %s1633 = scalar_lea.vmem %s9, 1
      %v1634 = vld [vmem:[%s1633] sm:$0x1]
      %s1635 = scalar_lea.vmem %s10, 1
      %v1636 = vld [vmem:[%s1635] sm:$0x1]
      %v1637 = vsel %vm943, %v1632, 0.0
      %1638 = vadd.xlane.f32.xlu0 %v1637
      %v1639 = vpop.xlane.xlu0 %1638
      %v1640 = vmul.f32 %v1639, %v905
      %v1641 = vsub.f32 %v1632, %v1640
      %v1642 = vmul.f32 %v1641, %v1641
      %v1643 = vsel %vm943, %v1642, 0.0
      %1644 = vadd.xlane.f32.xlu0 %v1643
      %v1645 = vpop.xlane.xlu0 %1644
      %v1646 = vmul.f32 %v1645, %v905
      %v1647 = vadd.f32 %v1646, 1e-05
      %v1648 = vrsqrt.pop %v1647
      %v1649 = vmul.f32 %v1648, %v1647
      %v1650 = vmul.f32 %v1649, %v1648
      %v1651 = vmul.f32 0.5, %v1650
      %v1652 = vsub.f32 1.5, %v1651
      %v1653 = vmul.f32 %v1648, %v1652
      %vm1654 = vweird.f32 %v1647
      %vm1655 = vweird.f32 %v1648
      %vm1656 = vmor %vm1654, %vm1655
      %v1657 = vsel %vm1656, %v1648, %v1653
      %v1658 = vmul.f32 %v1641, %v1657
      %v1660 = vperm.slane %v1634, 0
      %v1662 = vmul.f32 %v1658, %v1660
      %v1664 = vperm.slane %v1636, 0
      %v1666 = vadd.f32 %v1662, %v1664
      %s1667 = scalar_lea.vmem %s11, 192
      %v1668 = vld [vmem:[%s1667] sm:$0xff]
      %v1669 = vld [vmem:[%s1667 + $0x8] sm:$0xff]
      %v1670 = vld [vmem:[%s1667 + $0x10] sm:$0xff]
      %v1671 = vld [vmem:[%s1667 + $0x18] sm:$0xff]
      %v1672 = vld [vmem:[%s1667 + $0x20] sm:$0xff]
      %v1673 = vld [vmem:[%s1667 + $0x28] sm:$0xff]
      %v1674 = vld [vmem:[%s1667 + $0x30] sm:$0xff]
      %v1675 = vld [vmem:[%s1667 + $0x38] sm:$0xff]
      %v1676 = vld [vmem:[%s1667 + $0x40] sm:$0xff]
      %v1677 = vld [vmem:[%s1667 + $0x48] sm:$0xff]
      %v1678 = vld [vmem:[%s1667 + $0x50] sm:$0xff]
      %v1679 = vld [vmem:[%s1667 + $0x58] sm:$0xff]
      %v1680 = vld [vmem:[%s1667 + $0x60] sm:$0xff]
      %v1681 = vld [vmem:[%s1667 + $0x68] sm:$0xff]
      %v1682 = vld [vmem:[%s1667 + $0x70] sm:$0xff]
      %v1683 = vld [vmem:[%s1667 + $0x78] sm:$0xff]
      %v1684 = vld [vmem:[%s1667 + $0x80] sm:$0xff]
      %v1685 = vld [vmem:[%s1667 + $0x88] sm:$0xff]
      %v1686 = vld [vmem:[%s1667 + $0x90] sm:$0xff]
      %v1687 = vld [vmem:[%s1667 + $0x98] sm:$0xff]
      %v1688 = vld [vmem:[%s1667 + $0xa0] sm:$0xff]
      %v1689 = vld [vmem:[%s1667 + $0xa8] sm:$0xff]
      %v1690 = vld [vmem:[%s1667 + $0xb0] sm:$0xff]
      %v1691 = vld [vmem:[%s1667 + $0xb8] sm:$0xff]
      %v1693 = vsel %vm998, %v1666, 0
      %1695 = vmatpush.msra.mxu0 0.0
      %1696 = vmatpush.msra.mxu0 0.0
      %1697 = vmatpush.msra.mxu0 0.0
      %1698 = vmatpush.msra.mxu0 0.0
      %1699 = vmatpush.msra.mxu0 0.0
      %1700 = vmatpush.msra.mxu0 0.0
      %1701 = vmatpush.msra.mxu0 0.0
      %1702 = vmatpush.msra.mxu0 0.0
      %1703 = vmatpush.msra.mxu0 0.0
      %1704 = vmatpush.msra.mxu0 0.0
      %1705 = vmatpush.msra.mxu0 0.0
      %1706 = vmatpush.msra.mxu0 0.0
      %1707 = vmatpush.msra.mxu0 %v1686
      %1708 = vmatpush.msra.mxu0 %v1680
      %1709 = vmatpush.msra.mxu0 %v1674
      %1710 = vmatpush.msra.mxu0 %v1668
      %1711 = vmatmul.f32.gmra.mxu0 %v1693
      %v1712 = vpop.f32.mrf.mxu0
      %v1713 = vadd.f32 0.0, %v1712
      %1714 = vdwg.mxu0
      %1715 = vmatpush.msra.mxu0 0.0
      %1716 = vmatpush.msra.mxu0 0.0
      %1717 = vmatpush.msra.mxu0 0.0
      %1718 = vmatpush.msra.mxu0 0.0
      %1719 = vmatpush.msra.mxu0 0.0
      %1720 = vmatpush.msra.mxu0 0.0
      %1721 = vmatpush.msra.mxu0 0.0
      %1722 = vmatpush.msra.mxu0 0.0
      %1723 = vmatpush.msra.mxu0 0.0
      %1724 = vmatpush.msra.mxu0 0.0
      %1725 = vmatpush.msra.mxu0 0.0
      %1726 = vmatpush.msra.mxu0 0.0
      %1727 = vmatpush.msra.mxu0 %v1687
      %1728 = vmatpush.msra.mxu0 %v1681
      %1729 = vmatpush.msra.mxu0 %v1675
      %1730 = vmatpush.msra.mxu0 %v1669
      %1731 = vmatmul.f32.gmra.mxu0 %v1693
      %v1732 = vpop.f32.mrf.mxu0
      %v1733 = vadd.f32 0.0, %v1732
      %1734 = vdwg.mxu0
      %1735 = vmatpush.msra.mxu0 0.0
      %1736 = vmatpush.msra.mxu0 0.0
      %1737 = vmatpush.msra.mxu0 0.0
      %1738 = vmatpush.msra.mxu0 0.0
      %1739 = vmatpush.msra.mxu0 0.0
      %1740 = vmatpush.msra.mxu0 0.0
      %1741 = vmatpush.msra.mxu0 0.0
      %1742 = vmatpush.msra.mxu0 0.0
      %1743 = vmatpush.msra.mxu0 0.0
      %1744 = vmatpush.msra.mxu0 0.0
      %1745 = vmatpush.msra.mxu0 0.0
      %1746 = vmatpush.msra.mxu0 0.0
      %1747 = vmatpush.msra.mxu0 %v1688
      %1748 = vmatpush.msra.mxu0 %v1682
      %1749 = vmatpush.msra.mxu0 %v1676
      %1750 = vmatpush.msra.mxu0 %v1670
      %1751 = vmatmul.f32.gmra.mxu0 %v1693
      %v1752 = vpop.f32.mrf.mxu0
      %v1753 = vadd.f32 0.0, %v1752
      %1754 = vdwg.mxu0
      %1755 = vmatpush.msra.mxu0 0.0
      %1756 = vmatpush.msra.mxu0 0.0
      %1757 = vmatpush.msra.mxu0 0.0
      %1758 = vmatpush.msra.mxu0 0.0
      %1759 = vmatpush.msra.mxu0 0.0
      %1760 = vmatpush.msra.mxu0 0.0
      %1761 = vmatpush.msra.mxu0 0.0
      %1762 = vmatpush.msra.mxu0 0.0
      %1763 = vmatpush.msra.mxu0 0.0
      %1764 = vmatpush.msra.mxu0 0.0
      %1765 = vmatpush.msra.mxu0 0.0
      %1766 = vmatpush.msra.mxu0 0.0
      %1767 = vmatpush.msra.mxu0 %v1689
      %1768 = vmatpush.msra.mxu0 %v1683
      %1769 = vmatpush.msra.mxu0 %v1677
      %1770 = vmatpush.msra.mxu0 %v1671
      %1771 = vmatmul.f32.gmra.mxu0 %v1693
      %v1772 = vpop.f32.mrf.mxu0
      %v1773 = vadd.f32 0.0, %v1772
      %1774 = vdwg.mxu0
      %1775 = vmatpush.msra.mxu0 0.0
      %1776 = vmatpush.msra.mxu0 0.0
      %1777 = vmatpush.msra.mxu0 0.0
      %1778 = vmatpush.msra.mxu0 0.0
      %1779 = vmatpush.msra.mxu0 0.0
      %1780 = vmatpush.msra.mxu0 0.0
      %1781 = vmatpush.msra.mxu0 0.0
      %1782 = vmatpush.msra.mxu0 0.0
      %1783 = vmatpush.msra.mxu0 0.0
      %1784 = vmatpush.msra.mxu0 0.0
      %1785 = vmatpush.msra.mxu0 0.0
      %1786 = vmatpush.msra.mxu0 0.0
      %1787 = vmatpush.msra.mxu0 %v1690
      %1788 = vmatpush.msra.mxu0 %v1684
      %1789 = vmatpush.msra.mxu0 %v1678
      %1790 = vmatpush.msra.mxu0 %v1672
      %1791 = vmatmul.f32.gmra.mxu0 %v1693
      %v1792 = vpop.f32.mrf.mxu0
      %v1793 = vadd.f32 0.0, %v1792
      %1794 = vdwg.mxu0
      %1795 = vmatpush.msra.mxu0 0.0
      %1796 = vmatpush.msra.mxu0 0.0
      %1797 = vmatpush.msra.mxu0 0.0
      %1798 = vmatpush.msra.mxu0 0.0
      %1799 = vmatpush.msra.mxu0 0.0
      %1800 = vmatpush.msra.mxu0 0.0
      %1801 = vmatpush.msra.mxu0 0.0
      %1802 = vmatpush.msra.mxu0 0.0
      %1803 = vmatpush.msra.mxu0 0.0
      %1804 = vmatpush.msra.mxu0 0.0
      %1805 = vmatpush.msra.mxu0 0.0
      %1806 = vmatpush.msra.mxu0 0.0
      %1807 = vmatpush.msra.mxu0 %v1691
      %1808 = vmatpush.msra.mxu0 %v1685
      %1809 = vmatpush.msra.mxu0 %v1679
      %1810 = vmatpush.msra.mxu0 %v1673
      %1811 = vmatmul.f32.gmra.mxu0 %v1693
      %v1812 = vpop.f32.mrf.mxu0
      %v1813 = vadd.f32 0.0, %v1812
      %1814 = vdwg.mxu0
      %v1816 = vsel %vm1122, %v1713, 0
      %v1819 = vsel %vm1122, %v1753, 0
      %1821 = vmatpush.xpose.msra.mxu0 0.0
      %1822 = vmatpush.xpose.msra.mxu0 0.0
      %1823 = vmatpush.xpose.msra.mxu0 0.0
      %1824 = vmatpush.xpose.msra.mxu0 0.0
      %1825 = vmatpush.xpose.msra.mxu0 0.0
      %1826 = vmatpush.xpose.msra.mxu0 0.0
      %1827 = vmatpush.xpose.msra.mxu0 0.0
      %1828 = vmatpush.xpose.msra.mxu0 0.0
      %1829 = vmatpush.xpose.msra.mxu0 0.0
      %1830 = vmatpush.xpose.msra.mxu0 0.0
      %1831 = vmatpush.xpose.msra.mxu0 0.0
      %1832 = vmatpush.xpose.msra.mxu0 0.0
      %1833 = vmatpush.xpose.msra.mxu0 0.0
      %1834 = vmatpush.xpose.msra.mxu0 0.0
      %1835 = vmatpush.xpose.msra.mxu0 0.0
      %1836 = vmatpush.xpose.msra.mxu0 %v1819
      %1837 = vmatmul.f32.gmra.mxu0 %v1816
      %v1838 = vpop.f32.mrf.mxu0
      %v1839 = vadd.f32 0.0, %v1838
      %1840 = vdwg.mxu0
      %v1841 = vmul.f32 %v1839, 0.125
      %v1842 = vsel %vm1150, %v1841, -inf
      %1843 = vmax.xlane.f32.xlu0 %v1842
      %v1844 = vpop.xlane.xlu0 %1843
      %v1845 = vsub.f32 %v1841, %v1844
      %v1846 = vmul.f32 %v1845, 1.442695
      %v1847 = vpow.pop %v1846
      %v1848 = vsel %vm1150, %v1847, 0.0
      %1849 = vadd.xlane.f32.xlu0 %v1848
      %v1850 = vpop.xlane.xlu0 %1849
      %v1851 = vrcp.pop %v1850
      %v1852 = vmul.f32 %v1850, %v1851
      %v1853 = vsub.f32 1.0, %v1852
      %v1854 = vmul.f32 %v1851, %v1853
      %v1855 = vadd.f32 %v1851, %v1854
      %vm1856 = vweird.f32 %v1850
      %vm1857 = vweird.f32 %v1851
      %vm1858 = vmor %vm1856, %vm1857
      %v1859 = vsel %vm1858, %v1851, %v1855
      %v1860 = vand.u32 2147483647, %v1850
      %vm1861 = vcmp.eq.f32.partialorder %v1860, 8.507059e+37
      %v1862 = vand.u32 %v1850, 2147483648
      %v1863 = vor.u32 1.1754944e-38, %v1862
      %v1864 = vsel %vm1861, %v1863, %v1859
      %v1865 = vmul.f32 %v1847, %v1864
      %v1867 = vsel %vm1175, %v1865, 0
      %v1870 = vsel %vm1179, %v1793, 0
      %1872 = vmatpush.msra.mxu0 0.0
      %1873 = vmatpush.msra.mxu0 0.0
      %1874 = vmatpush.msra.mxu0 0.0
      %1875 = vmatpush.msra.mxu0 0.0
      %1876 = vmatpush.msra.mxu0 0.0
      %1877 = vmatpush.msra.mxu0 0.0
      %1878 = vmatpush.msra.mxu0 0.0
      %1879 = vmatpush.msra.mxu0 0.0
      %1880 = vmatpush.msra.mxu0 0.0
      %1881 = vmatpush.msra.mxu0 0.0
      %1882 = vmatpush.msra.mxu0 0.0
      %1883 = vmatpush.msra.mxu0 0.0
      %1884 = vmatpush.msra.mxu0 0.0
      %1885 = vmatpush.msra.mxu0 0.0
      %1886 = vmatpush.msra.mxu0 0.0
      %1887 = vmatpush.msra.mxu0 %v1870
      %1888 = vmatmul.f32.gmra.mxu0 %v1867
      %v1889 = vpop.f32.mrf.mxu0
      %v1890 = vadd.f32 0.0, %v1889
      %1891 = vdwg.mxu0
      %1892 = vrot.lane.b32.xlu0 %v1713, 64
      %v1893 = vpop.permute.xlu0 %1892
      %1894 = vrot.lane.b32.xlu0 %v1753, 64
      %v1895 = vpop.permute.xlu0 %1894
      %v1896 = vsel %vm1122, %v1893, 0
      %v1898 = vsel %vm1122, %v1895, 0
      %1900 = vmatpush.xpose.msra.mxu0 0.0
      %1901 = vmatpush.xpose.msra.mxu0 0.0
      %1902 = vmatpush.xpose.msra.mxu0 0.0
      %1903 = vmatpush.xpose.msra.mxu0 0.0
      %1904 = vmatpush.xpose.msra.mxu0 0.0
      %1905 = vmatpush.xpose.msra.mxu0 0.0
      %1906 = vmatpush.xpose.msra.mxu0 0.0
      %1907 = vmatpush.xpose.msra.mxu0 0.0
      %1908 = vmatpush.xpose.msra.mxu0 0.0
      %1909 = vmatpush.xpose.msra.mxu0 0.0
      %1910 = vmatpush.xpose.msra.mxu0 0.0
      %1911 = vmatpush.xpose.msra.mxu0 0.0
      %1912 = vmatpush.xpose.msra.mxu0 0.0
      %1913 = vmatpush.xpose.msra.mxu0 0.0
      %1914 = vmatpush.xpose.msra.mxu0 0.0
      %1915 = vmatpush.xpose.msra.mxu0 %v1898
      %1916 = vmatmul.f32.gmra.mxu0 %v1896
      %v1917 = vpop.f32.mrf.mxu0
      %v1918 = vadd.f32 0.0, %v1917
      %1919 = vdwg.mxu0
      %v1920 = vmul.f32 %v1918, 0.125
      %v1921 = vsel %vm1150, %v1920, -inf
      %1922 = vmax.xlane.f32.xlu0 %v1921
      %v1923 = vpop.xlane.xlu0 %1922
      %v1924 = vsub.f32 %v1920, %v1923
      %v1925 = vmul.f32 %v1924, 1.442695
      %v1926 = vpow.pop %v1925
      %v1927 = vsel %vm1150, %v1926, 0.0
      %1928 = vadd.xlane.f32.xlu0 %v1927
      %v1929 = vpop.xlane.xlu0 %1928
      %v1930 = vrcp.pop %v1929
      %v1931 = vmul.f32 %v1929, %v1930
      %v1932 = vsub.f32 1.0, %v1931
      %v1933 = vmul.f32 %v1930, %v1932
      %v1934 = vadd.f32 %v1930, %v1933
      %vm1935 = vweird.f32 %v1929
      %vm1936 = vweird.f32 %v1930
      %vm1937 = vmor %vm1935, %vm1936
      %v1938 = vsel %vm1937, %v1930, %v1934
      %v1939 = vand.u32 2147483647, %v1929
      %vm1940 = vcmp.eq.f32.partialorder %v1939, 8.507059e+37
      %v1941 = vand.u32 %v1929, 2147483648
      %v1942 = vor.u32 1.1754944e-38, %v1941
      %v1943 = vsel %vm1940, %v1942, %v1938
      %v1944 = vmul.f32 %v1926, %v1943
      %1945 = vrot.lane.b32.xlu0 %v1793, 64
      %v1946 = vpop.permute.xlu0 %1945
      %v1948 = vsel %vm1175, %v1944, 0
      %v1950 = vsel %vm1179, %v1946, 0
      %1952 = vmatpush.msra.mxu0 0.0
      %1953 = vmatpush.msra.mxu0 0.0
      %1954 = vmatpush.msra.mxu0 0.0
      %1955 = vmatpush.msra.mxu0 0.0
      %1956 = vmatpush.msra.mxu0 0.0
      %1957 = vmatpush.msra.mxu0 0.0
      %1958 = vmatpush.msra.mxu0 0.0
      %1959 = vmatpush.msra.mxu0 0.0
      %1960 = vmatpush.msra.mxu0 0.0
      %1961 = vmatpush.msra.mxu0 0.0
      %1962 = vmatpush.msra.mxu0 0.0
      %1963 = vmatpush.msra.mxu0 0.0
      %1964 = vmatpush.msra.mxu0 0.0
      %1965 = vmatpush.msra.mxu0 0.0
      %1966 = vmatpush.msra.mxu0 0.0
      %1967 = vmatpush.msra.mxu0 %v1950
      %1968 = vmatmul.f32.gmra.mxu0 %v1948
      %v1969 = vpop.f32.mrf.mxu0
      %v1970 = vadd.f32 0.0, %v1969
      %1971 = vdwg.mxu0
      %v1973 = vsel %vm1122, %v1733, 0
      %v1976 = vsel %vm1122, %v1773, 0
      %1978 = vmatpush.xpose.msra.mxu0 0.0
      %1979 = vmatpush.xpose.msra.mxu0 0.0
      %1980 = vmatpush.xpose.msra.mxu0 0.0
      %1981 = vmatpush.xpose.msra.mxu0 0.0
      %1982 = vmatpush.xpose.msra.mxu0 0.0
      %1983 = vmatpush.xpose.msra.mxu0 0.0
      %1984 = vmatpush.xpose.msra.mxu0 0.0
      %1985 = vmatpush.xpose.msra.mxu0 0.0
      %1986 = vmatpush.xpose.msra.mxu0 0.0
      %1987 = vmatpush.xpose.msra.mxu0 0.0
      %1988 = vmatpush.xpose.msra.mxu0 0.0
      %1989 = vmatpush.xpose.msra.mxu0 0.0
      %1990 = vmatpush.xpose.msra.mxu0 0.0
      %1991 = vmatpush.xpose.msra.mxu0 0.0
      %1992 = vmatpush.xpose.msra.mxu0 0.0
      %1993 = vmatpush.xpose.msra.mxu0 %v1976
      %1994 = vmatmul.f32.gmra.mxu0 %v1973
      %v1995 = vpop.f32.mrf.mxu0
      %v1996 = vadd.f32 0.0, %v1995
      %1997 = vdwg.mxu0
      %v1998 = vmul.f32 %v1996, 0.125
      %v1999 = vsel %vm1150, %v1998, -inf
      %2000 = vmax.xlane.f32.xlu0 %v1999
      %v2001 = vpop.xlane.xlu0 %2000
      %v2002 = vsub.f32 %v1998, %v2001
      %v2003 = vmul.f32 %v2002, 1.442695
      %v2004 = vpow.pop %v2003
      %v2005 = vsel %vm1150, %v2004, 0.0
      %2006 = vadd.xlane.f32.xlu0 %v2005
      %v2007 = vpop.xlane.xlu0 %2006
      %v2008 = vrcp.pop %v2007
      %v2009 = vmul.f32 %v2007, %v2008
      %v2010 = vsub.f32 1.0, %v2009
      %v2011 = vmul.f32 %v2008, %v2010
      %v2012 = vadd.f32 %v2008, %v2011
      %vm2013 = vweird.f32 %v2007
      %vm2014 = vweird.f32 %v2008
      %vm2015 = vmor %vm2013, %vm2014
      %v2016 = vsel %vm2015, %v2008, %v2012
      %v2017 = vand.u32 2147483647, %v2007
      %vm2018 = vcmp.eq.f32.partialorder %v2017, 8.507059e+37
      %v2019 = vand.u32 %v2007, 2147483648
      %v2020 = vor.u32 1.1754944e-38, %v2019
      %v2021 = vsel %vm2018, %v2020, %v2016
      %v2022 = vmul.f32 %v2004, %v2021
      %v2024 = vsel %vm1175, %v2022, 0
      %v2027 = vsel %vm1179, %v1813, 0
      %2029 = vmatpush.msra.mxu0 0.0
      %2030 = vmatpush.msra.mxu0 0.0
      %2031 = vmatpush.msra.mxu0 0.0
      %2032 = vmatpush.msra.mxu0 0.0
      %2033 = vmatpush.msra.mxu0 0.0
      %2034 = vmatpush.msra.mxu0 0.0
      %2035 = vmatpush.msra.mxu0 0.0
      %2036 = vmatpush.msra.mxu0 0.0
      %2037 = vmatpush.msra.mxu0 0.0
      %2038 = vmatpush.msra.mxu0 0.0
      %2039 = vmatpush.msra.mxu0 0.0
      %2040 = vmatpush.msra.mxu0 0.0
      %2041 = vmatpush.msra.mxu0 0.0
      %2042 = vmatpush.msra.mxu0 0.0
      %2043 = vmatpush.msra.mxu0 0.0
      %2044 = vmatpush.msra.mxu0 %v2027
      %2045 = vmatmul.f32.gmra.mxu0 %v2024
      %v2046 = vpop.f32.mrf.mxu0
      %v2047 = vadd.f32 0.0, %v2046
      %2048 = vdwg.mxu0
      %2049 = vrot.lane.b32.xlu0 %v1733, 64
      %v2050 = vpop.permute.xlu0 %2049
      %2051 = vrot.lane.b32.xlu0 %v1773, 64
      %v2052 = vpop.permute.xlu0 %2051
      %v2053 = vsel %vm1122, %v2050, 0
      %v2055 = vsel %vm1122, %v2052, 0
      %2057 = vmatpush.xpose.msra.mxu0 0.0
      %2058 = vmatpush.xpose.msra.mxu0 0.0
      %2059 = vmatpush.xpose.msra.mxu0 0.0
      %2060 = vmatpush.xpose.msra.mxu0 0.0
      %2061 = vmatpush.xpose.msra.mxu0 0.0
      %2062 = vmatpush.xpose.msra.mxu0 0.0
      %2063 = vmatpush.xpose.msra.mxu0 0.0
      %2064 = vmatpush.xpose.msra.mxu0 0.0
      %2065 = vmatpush.xpose.msra.mxu0 0.0
      %2066 = vmatpush.xpose.msra.mxu0 0.0
      %2067 = vmatpush.xpose.msra.mxu0 0.0
      %2068 = vmatpush.xpose.msra.mxu0 0.0
      %2069 = vmatpush.xpose.msra.mxu0 0.0
      %2070 = vmatpush.xpose.msra.mxu0 0.0
      %2071 = vmatpush.xpose.msra.mxu0 0.0
      %2072 = vmatpush.xpose.msra.mxu0 %v2055
      %2073 = vmatmul.f32.gmra.mxu0 %v2053
      %v2074 = vpop.f32.mrf.mxu0
      %v2075 = vadd.f32 0.0, %v2074
      %2076 = vdwg.mxu0
      %v2077 = vmul.f32 %v2075, 0.125
      %v2078 = vsel %vm1150, %v2077, -inf
      %2079 = vmax.xlane.f32.xlu0 %v2078
      %v2080 = vpop.xlane.xlu0 %2079
      %v2081 = vsub.f32 %v2077, %v2080
      %v2082 = vmul.f32 %v2081, 1.442695
      %v2083 = vpow.pop %v2082
      %v2084 = vsel %vm1150, %v2083, 0.0
      %2085 = vadd.xlane.f32.xlu0 %v2084
      %v2086 = vpop.xlane.xlu0 %2085
      %v2087 = vrcp.pop %v2086
      %v2088 = vmul.f32 %v2086, %v2087
      %v2089 = vsub.f32 1.0, %v2088
      %v2090 = vmul.f32 %v2087, %v2089
      %v2091 = vadd.f32 %v2087, %v2090
      %vm2092 = vweird.f32 %v2086
      %vm2093 = vweird.f32 %v2087
      %vm2094 = vmor %vm2092, %vm2093
      %v2095 = vsel %vm2094, %v2087, %v2091
      %v2096 = vand.u32 2147483647, %v2086
      %vm2097 = vcmp.eq.f32.partialorder %v2096, 8.507059e+37
      %v2098 = vand.u32 %v2086, 2147483648
      %v2099 = vor.u32 1.1754944e-38, %v2098
      %v2100 = vsel %vm2097, %v2099, %v2095
      %v2101 = vmul.f32 %v2083, %v2100
      %2102 = vrot.lane.b32.xlu0 %v1813, 64
      %v2103 = vpop.permute.xlu0 %2102
      %v2105 = vsel %vm1175, %v2101, 0
      %v2107 = vsel %vm1179, %v2103, 0
      %2109 = vmatpush.msra.mxu0 0.0
      %2110 = vmatpush.msra.mxu0 0.0
      %2111 = vmatpush.msra.mxu0 0.0
      %2112 = vmatpush.msra.mxu0 0.0
      %2113 = vmatpush.msra.mxu0 0.0
      %2114 = vmatpush.msra.mxu0 0.0
      %2115 = vmatpush.msra.mxu0 0.0
      %2116 = vmatpush.msra.mxu0 0.0
      %2117 = vmatpush.msra.mxu0 0.0
      %2118 = vmatpush.msra.mxu0 0.0
      %2119 = vmatpush.msra.mxu0 0.0
      %2120 = vmatpush.msra.mxu0 0.0
      %2121 = vmatpush.msra.mxu0 0.0
      %2122 = vmatpush.msra.mxu0 0.0
      %2123 = vmatpush.msra.mxu0 0.0
      %2124 = vmatpush.msra.mxu0 %v2107
      %2125 = vmatmul.f32.gmra.mxu0 %v2105
      %v2126 = vpop.f32.mrf.mxu0
      %v2127 = vadd.f32 0.0, %v2126
      %2128 = vdwg.mxu0
      %2130 = vrot.lane.b32.xlu0 %v1970, 64
      %v2131 = vpop.permute.xlu0 %2130
      %2134 = vrot.lane.b32.xlu0 %v2127, 64
      %v2135 = vpop.permute.xlu0 %2134
      %v2137 = vsel %vm1122, %v1890, %v2131
      %v2138 = vsel %vm1122, %v2047, %v2135
      %s2139 = scalar_lea.vmem %s12, 256
      %v2140 = vld [vmem:[%s2139] sm:$0xff]
      %v2141 = vld [vmem:[%s2139 + $0x8] sm:$0xff]
      %v2142 = vld [vmem:[%s2139 + $0x10] sm:$0xff]
      %v2143 = vld [vmem:[%s2139 + $0x18] sm:$0xff]
      %v2144 = vld [vmem:[%s2139 + $0x20] sm:$0xff]
      %v2145 = vld [vmem:[%s2139 + $0x28] sm:$0xff]
      %v2146 = vld [vmem:[%s2139 + $0x30] sm:$0xff]
      %v2147 = vld [vmem:[%s2139 + $0x38] sm:$0xff]
      %v2148 = vld [vmem:[%s2139 + $0x40] sm:$0xff]
      %v2149 = vld [vmem:[%s2139 + $0x48] sm:$0xff]
      %v2150 = vld [vmem:[%s2139 + $0x50] sm:$0xff]
      %v2151 = vld [vmem:[%s2139 + $0x58] sm:$0xff]
      %v2152 = vld [vmem:[%s2139 + $0x60] sm:$0xff]
      %v2153 = vld [vmem:[%s2139 + $0x68] sm:$0xff]
      %v2154 = vld [vmem:[%s2139 + $0x70] sm:$0xff]
      %v2155 = vld [vmem:[%s2139 + $0x78] sm:$0xff]
      %v2156 = vld [vmem:[%s2139 + $0x80] sm:$0xff]
      %v2157 = vld [vmem:[%s2139 + $0x88] sm:$0xff]
      %v2158 = vld [vmem:[%s2139 + $0x90] sm:$0xff]
      %v2159 = vld [vmem:[%s2139 + $0x98] sm:$0xff]
      %v2160 = vld [vmem:[%s2139 + $0xa0] sm:$0xff]
      %v2161 = vld [vmem:[%s2139 + $0xa8] sm:$0xff]
      %v2162 = vld [vmem:[%s2139 + $0xb0] sm:$0xff]
      %v2163 = vld [vmem:[%s2139 + $0xb8] sm:$0xff]
      %v2164 = vld [vmem:[%s2139 + $0xc0] sm:$0xff]
      %v2165 = vld [vmem:[%s2139 + $0xc8] sm:$0xff]
      %v2166 = vld [vmem:[%s2139 + $0xd0] sm:$0xff]
      %v2167 = vld [vmem:[%s2139 + $0xd8] sm:$0xff]
      %v2168 = vld [vmem:[%s2139 + $0xe0] sm:$0xff]
      %v2169 = vld [vmem:[%s2139 + $0xe8] sm:$0xff]
      %v2170 = vld [vmem:[%s2139 + $0xf0] sm:$0xff]
      %v2171 = vld [vmem:[%s2139 + $0xf8] sm:$0xff]
      %2172 = vmatpush.msra.mxu0 %v2155
      %2173 = vmatpush.msra.mxu0 %v2154
      %2174 = vmatpush.msra.mxu0 %v2153
      %2175 = vmatpush.msra.mxu0 %v2152
      %2176 = vmatpush.msra.mxu0 %v2151
      %2177 = vmatpush.msra.mxu0 %v2150
      %2178 = vmatpush.msra.mxu0 %v2149
      %2179 = vmatpush.msra.mxu0 %v2148
      %2180 = vmatpush.msra.mxu0 %v2147
      %2181 = vmatpush.msra.mxu0 %v2146
      %2182 = vmatpush.msra.mxu0 %v2145
      %2183 = vmatpush.msra.mxu0 %v2144
      %2184 = vmatpush.msra.mxu0 %v2143
      %2185 = vmatpush.msra.mxu0 %v2142
      %2186 = vmatpush.msra.mxu0 %v2141
      %2187 = vmatpush.msra.mxu0 %v2140
      %2188 = vmatmul.f32.gmra.mxu0 %v2137
      %v2189 = vpop.f32.mrf.mxu0
      %v2190 = vadd.f32 0.0, %v2189
      %2191 = vdwg.mxu0
      %2192 = vmatpush.msra.mxu0 %v2171
      %2193 = vmatpush.msra.mxu0 %v2170
      %2194 = vmatpush.msra.mxu0 %v2169
      %2195 = vmatpush.msra.mxu0 %v2168
      %2196 = vmatpush.msra.mxu0 %v2167
      %2197 = vmatpush.msra.mxu0 %v2166
      %2198 = vmatpush.msra.mxu0 %v2165
      %2199 = vmatpush.msra.mxu0 %v2164
      %2200 = vmatpush.msra.mxu0 %v2163
      %2201 = vmatpush.msra.mxu0 %v2162
      %2202 = vmatpush.msra.mxu0 %v2161
      %2203 = vmatpush.msra.mxu0 %v2160
      %2204 = vmatpush.msra.mxu0 %v2159
      %2205 = vmatpush.msra.mxu0 %v2158
      %2206 = vmatpush.msra.mxu0 %v2157
      %2207 = vmatpush.msra.mxu0 %v2156
      %2208 = vmatmul.f32.gmra.mxu0 %v2138
      %v2209 = vpop.f32.mrf.mxu0
      %v2210 = vadd.f32 %v2190, %v2209
      %2211 = vdwg.mxu0
      %v2212 = vadd.f32 %v1632, %v2210
      %s2213 = scalar_lea.vmem %s13, 1
      %v2214 = vld [vmem:[%s2213] sm:$0x1]
      %v2216 = vperm.slane %v2214, 0
      %v2218 = vadd.f32 %v2212, %v2216
      %s2219 = scalar_lea.vmem %s14, 1
      %v2220 = vld [vmem:[%s2219] sm:$0x1]
      %s2221 = scalar_lea.vmem %s15, 1
      %v2222 = vld [vmem:[%s2221] sm:$0x1]
      %v2223 = vsel %vm943, %v2218, 0.0
      %2224 = vadd.xlane.f32.xlu0 %v2223
      %v2225 = vpop.xlane.xlu0 %2224
      %v2226 = vmul.f32 %v2225, %v905
      %v2227 = vsub.f32 %v2218, %v2226
      %v2228 = vmul.f32 %v2227, %v2227
      %v2229 = vsel %vm943, %v2228, 0.0
      %2230 = vadd.xlane.f32.xlu0 %v2229
      %v2231 = vpop.xlane.xlu0 %2230
      %v2232 = vmul.f32 %v2231, %v905
      %v2233 = vadd.f32 %v2232, 1e-05
      %v2234 = vrsqrt.pop %v2233
      %v2235 = vmul.f32 %v2234, %v2233
      %v2236 = vmul.f32 %v2235, %v2234
      %v2237 = vmul.f32 0.5, %v2236
      %v2238 = vsub.f32 1.5, %v2237
      %v2239 = vmul.f32 %v2234, %v2238
      %vm2240 = vweird.f32 %v2233
      %vm2241 = vweird.f32 %v2234
      %vm2242 = vmor %vm2240, %vm2241
      %v2243 = vsel %vm2242, %v2234, %v2239
      %v2244 = vmul.f32 %v2227, %v2243
      %v2246 = vperm.slane %v2220, 0
      %v2248 = vmul.f32 %v2244, %v2246
      %v2250 = vperm.slane %v2222, 0
      %v2252 = vadd.f32 %v2248, %v2250
      %s2253 = scalar_lea.vmem %s16, 32
      %v2254 = vld [vmem:[%s2253] sm:$0xff]
      %v2255 = vld [vmem:[%s2253 + $0x8] sm:$0xff]
      %v2256 = vld [vmem:[%s2253 + $0x10] sm:$0xff]
      %v2257 = vld [vmem:[%s2253 + $0x18] sm:$0xff]
      %s2258 = scalar_lea.vmem %s17, 1
      %v2259 = vld [vmem:[%s2258] sm:$0x1]
      %v2261 = vperm.slane %v2259, 0
      %v2264 = vsel %vm998, %v2252, 0
      %2266 = vmatpush.msra.mxu0 0.0
      %2267 = vmatpush.msra.mxu0 0.0
      %2268 = vmatpush.msra.mxu0 0.0
      %2269 = vmatpush.msra.mxu0 0.0
      %2270 = vmatpush.msra.mxu0 0.0
      %2271 = vmatpush.msra.mxu0 0.0
      %2272 = vmatpush.msra.mxu0 0.0
      %2273 = vmatpush.msra.mxu0 0.0
      %2274 = vmatpush.msra.mxu0 0.0
      %2275 = vmatpush.msra.mxu0 0.0
      %2276 = vmatpush.msra.mxu0 0.0
      %2277 = vmatpush.msra.mxu0 0.0
      %2278 = vmatpush.msra.mxu0 %v2257
      %2279 = vmatpush.msra.mxu0 %v2256
      %2280 = vmatpush.msra.mxu0 %v2255
      %2281 = vmatpush.msra.mxu0 %v2254
      %2282 = vmatmul.f32.gmra.mxu0 %v2264
      %v2283 = vpop.f32.mrf.mxu0
      %v2284 = vadd.f32 %v2261, %v2283
      %2285 = vdwg.mxu0
      %v2286 = vmul.f32 %v2284, %v2284
      %v2287 = vmul.f32 %v2284, %v2286
      %v2288 = vmul.f32 %v2287, 0.044715
      %v2289 = vadd.f32 %v2284, %v2288
      %v2290 = vmul.f32 %v2289, 0.7978846
      %v2291 = vtanh.pop %v2290
      %v2292 = vadd.f32 %v2291, 1.0
      %v2293 = vmul.f32 %v2292, 0.5
      %v2294 = vmul.f32 %v2284, %v2293
      %s2295 = scalar_lea.vmem %s18, 32
      %v2296 = vld [vmem:[%s2295] sm:$0xff]
      %v2297 = vld [vmem:[%s2295 + $0x8] sm:$0xff]
      %v2298 = vld [vmem:[%s2295 + $0x10] sm:$0xff]
      %v2299 = vld [vmem:[%s2295 + $0x18] sm:$0xff]
      %v2301 = vsel %vm998, %v2294, 0
      %2303 = vmatpush.msra.mxu0 0.0
      %2304 = vmatpush.msra.mxu0 0.0
      %2305 = vmatpush.msra.mxu0 0.0
      %2306 = vmatpush.msra.mxu0 0.0
      %2307 = vmatpush.msra.mxu0 0.0
      %2308 = vmatpush.msra.mxu0 0.0
      %2309 = vmatpush.msra.mxu0 0.0
      %2310 = vmatpush.msra.mxu0 0.0
      %2311 = vmatpush.msra.mxu0 0.0
      %2312 = vmatpush.msra.mxu0 0.0
      %2313 = vmatpush.msra.mxu0 0.0
      %2314 = vmatpush.msra.mxu0 0.0
      %2315 = vmatpush.msra.mxu0 %v2299
      %2316 = vmatpush.msra.mxu0 %v2298
      %2317 = vmatpush.msra.mxu0 %v2297
      %2318 = vmatpush.msra.mxu0 %v2296
      %2319 = vmatmul.f32.gmra.mxu0 %v2301
      %v2320 = vpop.f32.mrf.mxu0
      %v2321 = vadd.f32 0.0, %v2320
      %2322 = vdwg.mxu0
      %v2323 = vadd.f32 %v2218, %v2321
      %s2324 = scalar_lea.vmem %s19, 1
      %v2325 = vld [vmem:[%s2324] sm:$0x1]
      %v2327 = vperm.slane %v2325, 0
      %v2329 = vadd.f32 %v2323, %v2327
      %v2330 = vld [vmem:[%s20] sm:$0x1]
      %v2331 = vld [vmem:[%s21] sm:$0x1]
      %vm2332 = vcmask 253952
      %v2333 = vsel %vm2332, %v2329, 0.0
      %2334 = vadd.xlane.f32.xlu0 %v2333
      %v2335 = vpop.xlane.xlu0 %2334
      %v2336 = vmul.f32 %v2335, %v905
      %v2337 = vsub.f32 %v2329, %v2336
      %v2338 = vmul.f32 %v2337, %v2337
      %v2339 = vsel %vm2332, %v2338, 0.0
      %2340 = vadd.xlane.f32.xlu0 %v2339
      %v2341 = vpop.xlane.xlu0 %2340
      %v2342 = vmul.f32 %v2341, %v905
      %v2343 = vadd.f32 %v2342, 1e-05
      %v2344 = vrsqrt.pop %v2343
      %v2345 = vmul.f32 %v2344, %v2343
      %v2346 = vmul.f32 %v2345, %v2344
      %v2347 = vmul.f32 0.5, %v2346
      %v2348 = vsub.f32 1.5, %v2347
      %v2349 = vmul.f32 %v2344, %v2348
      %vm2350 = vweird.f32 %v2343
      %vm2351 = vweird.f32 %v2344
      %vm2352 = vmor %vm2350, %vm2351
      %v2353 = vsel %vm2352, %v2344, %v2349
      %v2354 = vmul.f32 %v2337, %v2353
      %v2355 = vmul.f32 %v2354, %v2330
      %v2356 = vadd.f32 %v2355, %v2331
      %v2357 = vld [vmem:[%s22] sm:$0xff]
      %v2358 = vld [vmem:[%s22 + $0x8] sm:$0xff]
      %v2359 = vld [vmem:[%s22 + $0x10] sm:$0xff]
      %v2360 = vld [vmem:[%s22 + $0x18] sm:$0xff]
      %v2361 = vld [vmem:[%s22 + $0x20] sm:$0xff]
      %v2362 = vld [vmem:[%s22 + $0x28] sm:$0xff]
      %v2363 = vld [vmem:[%s22 + $0x30] sm:$0xff]
      %v2364 = vld [vmem:[%s22 + $0x38] sm:$0xff]
      %v2365 = vld [vmem:[%s22 + $0x40] sm:$0xff]
      %v2366 = vld [vmem:[%s22 + $0x48] sm:$0xff]
      %v2367 = vld [vmem:[%s22 + $0x50] sm:$0xff]
      %v2368 = vld [vmem:[%s22 + $0x58] sm:$0xff]
      %v2369 = vld [vmem:[%s22 + $0x60] sm:$0xff]
      %v2370 = vld [vmem:[%s22 + $0x68] sm:$0xff]
      %v2371 = vld [vmem:[%s22 + $0x70] sm:$0xff]
      %v2372 = vld [vmem:[%s22 + $0x78] sm:$0xff]
      %v2373 = vld [vmem:[%s23] sm:$0xf]
      %v2375 = vperm.slane %v2373, 0
      %v2376 = vperm.slane %v2373, 1
      %v2377 = vperm.slane %v2373, 2
      %v2378 = vperm.slane %v2373, 3
      %v2384 = vsel %vm998, %v2356, 0
      %2386 = vmatpush.msra.mxu0 0.0
      %2387 = vmatpush.msra.mxu0 0.0
      %2388 = vmatpush.msra.mxu0 0.0
      %2389 = vmatpush.msra.mxu0 0.0
      %2390 = vmatpush.msra.mxu0 0.0
      %2391 = vmatpush.msra.mxu0 0.0
      %2392 = vmatpush.msra.mxu0 0.0
      %2393 = vmatpush.msra.mxu0 0.0
      %2394 = vmatpush.msra.mxu0 0.0
      %2395 = vmatpush.msra.mxu0 0.0
      %2396 = vmatpush.msra.mxu0 0.0
      %2397 = vmatpush.msra.mxu0 0.0
      %2398 = vmatpush.msra.mxu0 %v2369
      %2399 = vmatpush.msra.mxu0 %v2365
      %2400 = vmatpush.msra.mxu0 %v2361
      %2401 = vmatpush.msra.mxu0 %v2357
      %2402 = vmatmul.f32.gmra.mxu0 %v2384
      %v2403 = vpop.f32.mrf.mxu0
      %v2404 = vadd.f32 %v2375, %v2403
      %2405 = vdwg.mxu0
      %2406 = vmatpush.msra.mxu0 0.0
      %2407 = vmatpush.msra.mxu0 0.0
      %2408 = vmatpush.msra.mxu0 0.0
      %2409 = vmatpush.msra.mxu0 0.0
      %2410 = vmatpush.msra.mxu0 0.0
      %2411 = vmatpush.msra.mxu0 0.0
      %2412 = vmatpush.msra.mxu0 0.0
      %2413 = vmatpush.msra.mxu0 0.0
      %2414 = vmatpush.msra.mxu0 0.0
      %2415 = vmatpush.msra.mxu0 0.0
      %2416 = vmatpush.msra.mxu0 0.0
      %2417 = vmatpush.msra.mxu0 0.0
      %2418 = vmatpush.msra.mxu0 %v2370
      %2419 = vmatpush.msra.mxu0 %v2366
      %2420 = vmatpush.msra.mxu0 %v2362
      %2421 = vmatpush.msra.mxu0 %v2358
      %2422 = vmatmul.f32.gmra.mxu0 %v2384
      %v2423 = vpop.f32.mrf.mxu0
      %v2424 = vadd.f32 %v2376, %v2423
      %2425 = vdwg.mxu0
      %2426 = vmatpush.msra.mxu0 0.0
      %2427 = vmatpush.msra.mxu0 0.0
      %2428 = vmatpush.msra.mxu0 0.0
      %2429 = vmatpush.msra.mxu0 0.0
      %2430 = vmatpush.msra.mxu0 0.0
      %2431 = vmatpush.msra.mxu0 0.0
      %2432 = vmatpush.msra.mxu0 0.0
      %2433 = vmatpush.msra.mxu0 0.0
      %2434 = vmatpush.msra.mxu0 0.0
      %2435 = vmatpush.msra.mxu0 0.0
      %2436 = vmatpush.msra.mxu0 0.0
      %2437 = vmatpush.msra.mxu0 0.0
      %2438 = vmatpush.msra.mxu0 %v2371
      %2439 = vmatpush.msra.mxu0 %v2367
      %2440 = vmatpush.msra.mxu0 %v2363
      %2441 = vmatpush.msra.mxu0 %v2359
      %2442 = vmatmul.f32.gmra.mxu0 %v2384
      %v2443 = vpop.f32.mrf.mxu0
      %v2444 = vadd.f32 %v2377, %v2443
      %2445 = vdwg.mxu0
      %2446 = vmatpush.msra.mxu0 0.0
      %2447 = vmatpush.msra.mxu0 0.0
      %2448 = vmatpush.msra.mxu0 0.0
      %2449 = vmatpush.msra.mxu0 0.0
      %2450 = vmatpush.msra.mxu0 0.0
      %2451 = vmatpush.msra.mxu0 0.0
      %2452 = vmatpush.msra.mxu0 0.0
      %2453 = vmatpush.msra.mxu0 0.0
      %2454 = vmatpush.msra.mxu0 0.0
      %2455 = vmatpush.msra.mxu0 0.0
      %2456 = vmatpush.msra.mxu0 0.0
      %2457 = vmatpush.msra.mxu0 0.0
      %2458 = vmatpush.msra.mxu0 %v2372
      %2459 = vmatpush.msra.mxu0 %v2368
      %2460 = vmatpush.msra.mxu0 %v2364
      %2461 = vmatpush.msra.mxu0 %v2360
      %2462 = vmatmul.f32.gmra.mxu0 %v2384
      %v2463 = vpop.f32.mrf.mxu0
      %v2464 = vadd.f32 %v2378, %v2463
      %2465 = vdwg.mxu0
      %v2470 = vrot.slane %v2424, 7
      %v2471 = vrot.slane %v2444, 6
      %v2472 = vrot.slane %v2464, 5
      %v2473 = vsel %vm937, %v2404, %v2470
      %vm2474 = vcmask 1042434
      %v2475 = vsel %vm2474, %v2471, %v2472
      %vm2476 = vcmask 1041408
      %v2477 = vsel %vm2476, %v2473, %v2475
      %v2479 = vlaneseq
      %vm2480 = vcmp.ge.s32.totalorder %v2479, 0
      %vm2481 = vcmp.lt.s32.totalorder %v2479, 512
      %vm2482 = vmand %vm2480, %vm2481
      %2483 = vst.msk [vmem:[%s735] sm:$0xf] %vm2482, %v2477
      %p2484 = scmp.lt.s32.totalorder %s35, 1
      %s2485 = scalar_select %p2484, %s35, 1
      %s2486 = smul.addr %s2485, 4
      %s2487 = scalar_lea.vmem %s24, %s2486
      // Predicated region
      $region117: #{vit_forward.1} parent=115 // pred_check
        %p2488 = pneg %p562
      $region118: #{vit_forward.1} parent=115 // pred_check_branch
        %2490 = sbr.rel (%p2488) target = $region120
      $region119: #{vit_forward.1} parent=115 // pred_region
        _
      $region120: #{vit_forward.1} parent=115 // pred_fallthru
        _
    $region116: #{vit_forward.1} parent=5 // pred_fallthru
      _
    %p2491 = scmp.le.s32.totalorder 2, %s30
    // Predicated region
    $region121: #{vit_forward.1} parent=5 // pred_check
      %p2492 = pneg %p2491
    $region122: #{vit_forward.1} parent=5 // pred_check_branch
      %2494 = sbr.rel (%p2492) target = $region124
    $region123: #{vit_forward.1} parent=5 // pred_region
      %s2495 = ssub.s32 %s30, 2
      // Predicated region
      $region125: #{vit_forward.1} parent=123 // pred_check
        %p2496 = pneg %p568
      $region126: #{vit_forward.1} parent=123 // pred_check_branch
        %2498 = sbr.rel (%p2496) target = $region128
      $region127: #{vit_forward.1} parent=123 // pred_region
        %p2499 = scmp.lt.s32.totalorder %s36, 1
        %s2500 = scalar_select %p2499, %s36, 1
        %s2501 = smul.addr %s2500, 4
        %s2502 = scalar_lea.vmem %s24, %s2501
      $region128: #{vit_forward.1} parent=123 // pred_fallthru
        _
    $region124: #{vit_forward.1} parent=5 // pred_fallthru
      _
  $region6: #{vit_forward.1} parent=0 // loop_footer
    %s34 = sadd.s32 1, %s30
  $region7: #{vit_forward.1} parent=0 // loop_footer_branch
    %29 = sbr.rel target = $region3
  $region8: #{vit_forward.1} parent=0 // loop_exit
    _

</llo_original>
